<compile_context>
chip_gen: v7x
topology: tpu7x:2x2x1
jax: 0.10.0
libtpu: 0.0.40
codegen_flags: <defaults>
</compile_context>

<pallas_src>
import functools
import math

import jax
import jax.numpy as jnp
from jax import lax
from jax.experimental import pallas as pl
from jax.experimental.pallas import tpu as pltpu


def _layernorm(x, w, b, eps=1e-5):
    # PyTorch nn.LayerNorm over last dim (biased variance), eps=1e-5. f32 math.
    mu = jnp.mean(x, axis=-1, keepdims=True)
    xc = x - mu
    var = jnp.mean(xc * xc, axis=-1, keepdims=True)
    return xc * lax.rsqrt(var + eps) * w + b


def _gelu_exact(x):
    # nn.GELU() default: exact erf-based GELU (f32).
    return 0.5 * x * (1.0 + lax.erf(x * (1.0 / math.sqrt(2.0))))


def transformer_level_kernel(num_heads,
                             x_ref,
                             ln1_w_ref, ln1_b_ref,
                             in_w_ref, in_b_ref,
                             out_w_ref, out_b_ref,
                             ln2_w_ref, ln2_b_ref,
                             fc1_w_ref, fc1_b_ref,
                             fc2_w_ref, fc2_b_ref,
                             o_ref,
                             acc_ref):
    layer = pl.program_id(1)

    # Load the residual stream into the resident f32 accumulator once per batch.
    @pl.when(layer == 0)
    def _():
        acc_ref[...] = x_ref[0].astype(jnp.float32)

    x = acc_ref[...]                                   # (S, D) f32
    S, D = x.shape
    H = num_heads
    Dh = D // H
    scale = 1.0 / math.sqrt(Dh)

    # ---------------- attention branch (pre-norm) ----------------
    h = _layernorm(x, ln1_w_ref[0], ln1_b_ref[0])      # (S, D) f32

    # qkv = h @ W_in (D, 3D) + b_in   (bf16 MXU inputs, f32 accumulation).
    qkv = jnp.dot(h.astype(jnp.bfloat16), in_w_ref[0],
                  preferred_element_type=jnp.float32) + in_b_ref[0]   # (S, 3D)

    q = qkv[:, 0:D] * scale                            # fold 1/sqrt(Dh) into q
    k = qkv[:, D:2 * D]
    v = qkv[:, 2 * D:3 * D]

    # (S, D) -> (H, S, Dh): batched-head layout, one MXU einsum per step.
    q = q.reshape(S, H, Dh).transpose(1, 0, 2).astype(jnp.bfloat16)
    k = k.reshape(S, H, Dh).transpose(1, 0, 2).astype(jnp.bfloat16)
    v = v.reshape(S, H, Dh).transpose(1, 0, 2).astype(jnp.bfloat16)

    scores = jnp.einsum('hqd,hkd->hqk', q, k,
                        preferred_element_type=jnp.float32)           # (H,S,S)
    smax = jnp.max(scores, axis=-1, keepdims=True)
    p = jnp.exp(scores - smax)
    denom = jnp.sum(p, axis=-1, keepdims=True)
    p = p * pl.reciprocal(denom, approx=True)

    ctx = jnp.einsum('hqk,hkd->hqd', p.astype(jnp.bfloat16), v,
                     preferred_element_type=jnp.float32)              # (H,S,Dh)
    attn = ctx.transpose(1, 0, 2).reshape(S, D)                       # (S, D)

    attn = jnp.dot(attn.astype(jnp.bfloat16), out_w_ref[0],
                   preferred_element_type=jnp.float32) + out_b_ref[0]
    x = x + attn                                       # residual 1

    # ---------------- MLP branch (pre-norm) ----------------
    h2 = _layernorm(x, ln2_w_ref[0], ln2_b_ref[0])
    m = jnp.dot(h2.astype(jnp.bfloat16), fc1_w_ref[0],
                preferred_element_type=jnp.float32) + fc1_b_ref[0]
    m = _gelu_exact(m)
    m = jnp.dot(m.astype(jnp.bfloat16), fc2_w_ref[0],
                preferred_element_type=jnp.float32) + fc2_b_ref[0]
    x = x + m                                          # residual 2

    acc_ref[...] = x

    # Write the output only after the last layer; the output block stays
    # resident in VMEM across the layer axis (its block index is fixed).
    @pl.when(layer == pl.num_programs(1) - 1)
    def _():
        o_ref[0] = x.astype(o_ref.dtype)


_WEIGHT_NAMES = ('ln1_w', 'ln1_b', 'in_w', 'in_b', 'out_w', 'out_b',
                 'ln2_w', 'ln2_b', 'fc1_w', 'fc1_b', 'fc2_w', 'fc2_b')


def transformer_level(x, params, num_heads):
    """Fused TransformerLevel forward. `params` are depth-stacked (see init)."""
    B, S, D = x.shape
    depth = params['ln1_w'].shape[0]
    weights = [params[n] for n in _WEIGHT_NAMES]

    def weight_spec(w):
        rank = w.ndim
        block = (1,) + w.shape[1:]
        return pl.BlockSpec(block, lambda b, l, _r=rank: (l,) + (0,) * (_r - 1))

    in_specs = ([pl.BlockSpec((1, S, D), lambda b, l: (b, 0, 0))]
                + [weight_spec(w) for w in weights])

    return pl.pallas_call(
        functools.partial(transformer_level_kernel, num_heads),
        out_shape=jax.ShapeDtypeStruct((B, S, D), x.dtype),
        grid=(B, depth),
        in_specs=in_specs,
        out_specs=pl.BlockSpec((1, S, D), lambda b, l: (b, 0, 0)),
        scratch_shapes=[pltpu.VMEM((S, D), jnp.float32)],
        compiler_params=pltpu.CompilerParams(
            # Batch axis shards across TensorCores (v7x win, no-op on v5e/v6e);
            # layer axis is a sequential carry through the VMEM accumulator.
            dimension_semantics=("parallel", "arbitrary")),
    )(x, *weights)


def init_block_params(key, hidden_dim, mlp_dim):
    keys = jax.random.split(key, 4)
    s = 0.02
    f32, bf16 = jnp.float32, jnp.bfloat16
    D = hidden_dim
    # Matmul weights are stored pre-transposed (in_features, out_features) so
    # every in-kernel dot contracts lhs dim 1 against rhs dim 0 (MXU-native),
    # and kept in bf16 (halves weight DMA bytes). LN params / biases stay f32.
    return dict(
        ln1_w=jnp.ones((1, D), f32),
        ln1_b=jnp.zeros((1, D), f32),
        in_w=(jax.random.normal(keys[0], (D, 3 * D)) * s).astype(bf16),
        in_b=jnp.zeros((1, 3 * D), f32),
        out_w=(jax.random.normal(keys[1], (D, D)) * s).astype(bf16),
        out_b=jnp.zeros((1, D), f32),
        ln2_w=jnp.ones((1, D), f32),
        ln2_b=jnp.zeros((1, D), f32),
        fc1_w=(jax.random.normal(keys[2], (D, mlp_dim)) * s).astype(bf16),
        fc1_b=jnp.zeros((1, mlp_dim), f32),
        fc2_w=(jax.random.normal(keys[3], (mlp_dim, D)) * s).astype(bf16),
        fc2_b=jnp.zeros((1, D), f32),
    )


def init_level_params(key, depth, hidden_dim, mlp_dim):
    layer_keys = jax.random.split(key, depth)
    per_layer = [init_block_params(k, hidden_dim, mlp_dim) for k in layer_keys]
    return {name: jnp.stack([p[name] for p in per_layer], axis=0)
            for name in _WEIGHT_NAMES}


def transformer_level_ref(x, params, num_heads):
    """Pure-JAX f32 reference matching PyTorch inference semantics."""
    B, S, D = x.shape
    H = num_heads
    Dh = D // H
    depth = params['ln1_w'].shape[0]
    x = x.astype(jnp.float32)
    for l in range(depth):
        h = _layernorm(x, params['ln1_w'][l], params['ln1_b'][l])
        qkv = h @ params['in_w'][l].astype(jnp.float32) + params['in_b'][l]
        q, k, v = qkv[..., :D], qkv[..., D:2 * D], qkv[..., 2 * D:]
        q = q.reshape(B, S, H, Dh).transpose(0, 2, 1, 3) / math.sqrt(Dh)
        k = k.reshape(B, S, H, Dh).transpose(0, 2, 1, 3)
        v = v.reshape(B, S, H, Dh).transpose(0, 2, 1, 3)
        p = jax.nn.softmax(jnp.einsum('bhqd,bhkd->bhqk', q, k), axis=-1)
        ctx = jnp.einsum('bhqk,bhkd->bhqd', p, v)
        attn = ctx.transpose(0, 2, 1, 3).reshape(B, S, D)
        attn = attn @ params['out_w'][l].astype(jnp.float32) + params['out_b'][l]
        x = x + attn
        h2 = _layernorm(x, params['ln2_w'][l], params['ln2_b'][l])
        m = h2 @ params['fc1_w'][l].astype(jnp.float32) + params['fc1_b'][l]
        m = _gelu_exact(m)
        m = m @ params['fc2_w'][l].astype(jnp.float32) + params['fc2_b'][l]
        x = x + m
    return x


if __name__ == "__main__":
    # Small, module-consistent shapes; D=128 keeps the last dim lane-dense.
    depth = 2
    B, S, D = 2, 16, 128        # batch, seq, hidden_dim
    num_heads = 4               # head_dim = 32
    mlp_dim = 256

    key = jax.random.PRNGKey(0)
    kx, kp = jax.random.split(key)
    x = jax.random.normal(kx, (B, S, D), dtype=jnp.float32)
    params = init_level_params(kp, depth, D, mlp_dim)

    out = jax.block_until_ready(transformer_level(x, params, num_heads))
    assert out.shape == (B, S, D) and out.dtype == jnp.float32

    ref = transformer_level_ref(x, params, num_heads)
    max_err = float(jnp.max(jnp.abs(out - ref)))
    assert max_err < 5e-2, f"kernel/reference mismatch: max abs err {max_err}"
    print("KERNEL_OK")
</pallas_src>

<mosaic_0001>
module attributes {stable_mosaic.version = 11 : i64} {
  func.func @transformer_level_kernel(%arg0: i32, %arg1: i32, %arg2: memref<1x16x128xf32, #tpu.memory_space<vmem>>, %arg3: memref<1x1x128xf32, #tpu.memory_space<vmem>>, %arg4: memref<1x1x128xf32, #tpu.memory_space<vmem>>, %arg5: memref<1x128x384xbf16, #tpu.memory_space<vmem>>, %arg6: memref<1x1x384xf32, #tpu.memory_space<vmem>>, %arg7: memref<1x128x128xbf16, #tpu.memory_space<vmem>>, %arg8: memref<1x1x128xf32, #tpu.memory_space<vmem>>, %arg9: memref<1x1x128xf32, #tpu.memory_space<vmem>>, %arg10: memref<1x1x128xf32, #tpu.memory_space<vmem>>, %arg11: memref<1x128x256xbf16, #tpu.memory_space<vmem>>, %arg12: memref<1x1x256xf32, #tpu.memory_space<vmem>>, %arg13: memref<1x256x128xbf16, #tpu.memory_space<vmem>>, %arg14: memref<1x1x128xf32, #tpu.memory_space<vmem>>, %arg15: memref<1x16x128xf32, #tpu.memory_space<vmem>>, %arg16: memref<16x128xf32, #tpu.memory_space<vmem>>) attributes {dimension_semantics = [#tpu.dimension_semantics<parallel>, #tpu.dimension_semantics<arbitrary>], iteration_bounds = array<i64: 2, 2>, scalar_prefetch = 0 : i64, scratch_operands = 1 : i64, tpu.core_type = #tpu.core_type<tc>, window_params = [{transform_indices = @transform_0, window_bounds = array<i64: 1, 16, 128>}, {transform_indices = @transform_1, window_bounds = array<i64: 1, 1, 128>}, {transform_indices = @transform_2, window_bounds = array<i64: 1, 1, 128>}, {transform_indices = @transform_3, window_bounds = array<i64: 1, 128, 384>}, {transform_indices = @transform_4, window_bounds = array<i64: 1, 1, 384>}, {transform_indices = @transform_5, window_bounds = array<i64: 1, 128, 128>}, {transform_indices = @transform_6, window_bounds = array<i64: 1, 1, 128>}, {transform_indices = @transform_7, window_bounds = array<i64: 1, 1, 128>}, {transform_indices = @transform_8, window_bounds = array<i64: 1, 1, 128>}, {transform_indices = @transform_9, window_bounds = array<i64: 1, 128, 256>}, {transform_indices = @transform_10, window_bounds = array<i64: 1, 1, 256>}, {transform_indices = @transform_11, window_bounds = array<i64: 1, 256, 128>}, {transform_indices = @transform_12, window_bounds = array<i64: 1, 1, 128>}, {transform_indices = @transform_13, window_bounds = array<i64: 1, 16, 128>}]} {
    %c0_i32 = arith.constant 0 : i32
    %0 = arith.cmpi eq, %arg1, %c0_i32 : i32
    %1 = arith.extui %0 : i1 to i32
    %c0_i32_0 = arith.constant 0 : i32
    %2 = arith.cmpi ne, %1, %c0_i32_0 : i32
    scf.if %2 {
      %c0_62 = arith.constant 0 : index
      %c0_63 = arith.constant 0 : index
      %c0_64 = arith.constant 0 : index
      %127 = vector.load %arg2[%c0_62, %c0_63, %c0_64] : memref<1x16x128xf32, #tpu.memory_space<vmem>>, vector<1x16x128xf32>
      %128 = vector.shape_cast %127 : vector<1x16x128xf32> to vector<16x128xf32>
      %c0_65 = arith.constant 0 : index
      %c0_66 = arith.constant 0 : index
      %129 = vector.load %arg16[%c0_65, %c0_66] : memref<16x128xf32, #tpu.memory_space<vmem>>, vector<16x128xf32>
      tpu.vector_store %arg16[%c0_65, %c0_66], %128 {strides = array<i32>} : memref<16x128xf32, #tpu.memory_space<vmem>>, vector<16x128xf32>,
    } else {
    }
    %c0 = arith.constant 0 : index
    %c0_1 = arith.constant 0 : index
    %3 = vector.load %arg16[%c0, %c0_1] : memref<16x128xf32, #tpu.memory_space<vmem>>, vector<16x128xf32>
    %c0_2 = arith.constant 0 : index
    %c0_3 = arith.constant 0 : index
    %c0_4 = arith.constant 0 : index
    %4 = vector.load %arg3[%c0_2, %c0_3, %c0_4] : memref<1x1x128xf32, #tpu.memory_space<vmem>>, vector<1x1x128xf32>
    %5 = vector.shape_cast %4 : vector<1x1x128xf32> to vector<1x128xf32>
    %c0_5 = arith.constant 0 : index
    %c0_6 = arith.constant 0 : index
    %c0_7 = arith.constant 0 : index
    %6 = vector.load %arg4[%c0_5, %c0_6, %c0_7] : memref<1x1x128xf32, #tpu.memory_space<vmem>>, vector<1x1x128xf32>
    %7 = vector.shape_cast %6 : vector<1x1x128xf32> to vector<1x128xf32>
    %cst = arith.constant dense<0.000000e+00> : vector<16xf32>
    %8 = vector.multi_reduction <add>, %3, %cst [1] : vector<16x128xf32> to vector<16xf32>
    %9 = vector.shape_cast %8 : vector<16xf32> to vector<16x1xf32>
    %cst_8 = arith.constant 1.280000e+02 : f32
    %10 = vector.broadcast %cst_8 : f32 to vector<16x1xf32>
    %11 = arith.divf %9, %10 : vector<16x1xf32>
    %12 = vector.broadcast %11 : vector<16x1xf32> to vector<16x128xf32>
    %13 = arith.subf %3, %12 : vector<16x128xf32>
    %14 = arith.mulf %13, %13 : vector<16x128xf32>
    %cst_9 = arith.constant dense<0.000000e+00> : vector<16xf32>
    %15 = vector.multi_reduction <add>, %14, %cst_9 [1] : vector<16x128xf32> to vector<16xf32>
    %16 = vector.shape_cast %15 : vector<16xf32> to vector<16x1xf32>
    %cst_10 = arith.constant 1.280000e+02 : f32
    %17 = vector.broadcast %cst_10 : f32 to vector<16x1xf32>
    %18 = arith.divf %16, %17 : vector<16x1xf32>
    %cst_11 = arith.constant 9.99999974E-6 : f32
    %19 = vector.broadcast %cst_11 : f32 to vector<16x1xf32>
    %20 = arith.addf %18, %19 : vector<16x1xf32>
    %21 = math.rsqrt %20 : vector<16x1xf32>
    %22 = vector.broadcast %21 : vector<16x1xf32> to vector<16x128xf32>
    %23 = arith.mulf %13, %22 : vector<16x128xf32>
    %24 = vector.broadcast %5 : vector<1x128xf32> to vector<16x128xf32>
    %25 = arith.mulf %23, %24 : vector<16x128xf32>
    %26 = vector.broadcast %7 : vector<1x128xf32> to vector<16x128xf32>
    %27 = arith.addf %25, %26 : vector<16x128xf32>
    %28 = arith.truncf %27 : vector<16x128xf32> to vector<16x128xbf16>
    %c0_12 = arith.constant 0 : index
    %c0_13 = arith.constant 0 : index
    %c0_14 = arith.constant 0 : index
    %29 = vector.load %arg5[%c0_12, %c0_13, %c0_14] : memref<1x128x384xbf16, #tpu.memory_space<vmem>>, vector<1x128x384xbf16>
    %30 = vector.shape_cast %29 : vector<1x128x384xbf16> to vector<128x384xbf16>
    %cst_15 = arith.constant dense<0.000000e+00> : vector<16x384xf32>
    %31 = tpu.matmul %28, %30, %cst_15 {dimension_numbers = #tpu.dot_dimension_numbers<[1], [0], [0], [1], [0, 0, 1, 1], [], []>} : vector<16x128xbf16>, vector<128x384xbf16>, vector<16x384xf32> -> vector<16x384xf32>
    %c0_16 = arith.constant 0 : index
    %c0_17 = arith.constant 0 : index
    %c0_18 = arith.constant 0 : index
    %32 = vector.load %arg6[%c0_16, %c0_17, %c0_18] : memref<1x1x384xf32, #tpu.memory_space<vmem>>, vector<1x1x384xf32>
    %33 = vector.shape_cast %32 : vector<1x1x384xf32> to vector<1x384xf32>
    %34 = vector.broadcast %33 : vector<1x384xf32> to vector<16x384xf32>
    %35 = arith.addf %31, %34 : vector<16x384xf32>
    %36 = vector.extract_strided_slice %35 {offsets = [0, 0], sizes = [16, 128], strides = [1, 1]} : vector<16x384xf32> to vector<16x128xf32>
    %cst_19 = arith.constant 0.176776692 : f32
    %37 = vector.broadcast %cst_19 : f32 to vector<16x128xf32>
    %38 = arith.mulf %36, %37 : vector<16x128xf32>
    %39 = vector.extract_strided_slice %35 {offsets = [0, 128], sizes = [16, 128], strides = [1, 1]} : vector<16x384xf32> to vector<16x128xf32>
    %40 = vector.extract_strided_slice %35 {offsets = [0, 256], sizes = [16, 128], strides = [1, 1]} : vector<16x384xf32> to vector<16x128xf32>
    %41 = vector.shape_cast %38 : vector<16x128xf32> to vector<16x4x32xf32>
    %42 = tpu.transpose %41, [1, 0, 2] : vector<16x4x32xf32> -> vector<4x16x32xf32>
    %43 = arith.truncf %42 : vector<4x16x32xf32> to vector<4x16x32xbf16>
    %44 = vector.shape_cast %39 : vector<16x128xf32> to vector<16x4x32xf32>
    %45 = tpu.transpose %44, [1, 0, 2] : vector<16x4x32xf32> -> vector<4x16x32xf32>
    %46 = arith.truncf %45 : vector<4x16x32xf32> to vector<4x16x32xbf16>
    %47 = vector.shape_cast %40 : vector<16x128xf32> to vector<16x4x32xf32>
    %48 = tpu.transpose %47, [1, 0, 2] : vector<16x4x32xf32> -> vector<4x16x32xf32>
    %49 = arith.truncf %48 : vector<4x16x32xf32> to vector<4x16x32xbf16>
    "tpu.trace_start"() <{level = 10 : i32, message = "hqd,hkd->hqk"}> : () -> ()
    %cst_20 = arith.constant dense<0.000000e+00> : vector<4x16x16xf32>
    %50 = tpu.matmul %43, %46, %cst_20 {dimension_numbers = #tpu.dot_dimension_numbers<[2], [2], [1], [1], [0, 0, 0, 1, 1, 1], [0], [0]>} : vector<4x16x32xbf16>, vector<4x16x32xbf16>, vector<4x16x16xf32> -> vector<4x16x16xf32>
    "tpu.trace_stop"() : () -> ()
    %cst_21 = arith.constant dense<0xFF800000> : vector<4x16xf32>
    %51 = vector.multi_reduction <maximumf>, %50, %cst_21 [2] : vector<4x16x16xf32> to vector<4x16xf32>
    %52 = vector.shape_cast %51 : vector<4x16xf32> to vector<4x16x1xf32>
    %53 = vector.broadcast %52 : vector<4x16x1xf32> to vector<4x16x16xf32>
    %54 = arith.subf %50, %53 : vector<4x16x16xf32>
    %55 = math.exp %54 : vector<4x16x16xf32>
    %cst_22 = arith.constant dense<0.000000e+00> : vector<4x16xf32>
    %56 = vector.multi_reduction <add>, %55, %cst_22 [2] : vector<4x16x16xf32> to vector<4x16xf32>
    %57 = vector.shape_cast %56 : vector<4x16xf32> to vector<4x16x1xf32>
    %58 = tpu.reciprocal %57 {approx = true} : vector<4x16x1xf32> -> vector<4x16x1xf32>
    %59 = vector.broadcast %58 : vector<4x16x1xf32> to vector<4x16x16xf32>
    %60 = arith.mulf %55, %59 : vector<4x16x16xf32>
    %61 = arith.truncf %60 : vector<4x16x16xf32> to vector<4x16x16xbf16>
    "tpu.trace_start"() <{level = 10 : i32, message = "hqk,hkd->hqd"}> : () -> ()
    %cst_23 = arith.constant dense<0.000000e+00> : vector<4x16x32xf32>
    %62 = tpu.matmul %61, %49, %cst_23 {dimension_numbers = #tpu.dot_dimension_numbers<[2], [1], [1], [2], [0, 0, 0, 1, 1, 2], [0], [0]>} : vector<4x16x16xbf16>, vector<4x16x32xbf16>, vector<4x16x32xf32> -> vector<4x16x32xf32>
    "tpu.trace_stop"() : () -> ()
    %63 = tpu.transpose %62, [1, 0, 2] : vector<4x16x32xf32> -> vector<16x4x32xf32>
    %64 = vector.shape_cast %63 : vector<16x4x32xf32> to vector<16x128xf32>
    %65 = arith.truncf %64 : vector<16x128xf32> to vector<16x128xbf16>
    %c0_24 = arith.constant 0 : index
    %c0_25 = arith.constant 0 : index
    %c0_26 = arith.constant 0 : index
    %66 = vector.load %arg7[%c0_24, %c0_25, %c0_26] : memref<1x128x128xbf16, #tpu.memory_space<vmem>>, vector<1x128x128xbf16>
    %67 = vector.shape_cast %66 : vector<1x128x128xbf16> to vector<128x128xbf16>
    %cst_27 = arith.constant dense<0.000000e+00> : vector<16x128xf32>
    %68 = tpu.matmul %65, %67, %cst_27 {dimension_numbers = #tpu.dot_dimension_numbers<[1], [0], [0], [1], [0, 0, 1, 1], [], []>} : vector<16x128xbf16>, vector<128x128xbf16>, vector<16x128xf32> -> vector<16x128xf32>
    %c0_28 = arith.constant 0 : index
    %c0_29 = arith.constant 0 : index
    %c0_30 = arith.constant 0 : index
    %69 = vector.load %arg8[%c0_28, %c0_29, %c0_30] : memref<1x1x128xf32, #tpu.memory_space<vmem>>, vector<1x1x128xf32>
    %70 = vector.shape_cast %69 : vector<1x1x128xf32> to vector<1x128xf32>
    %71 = vector.broadcast %70 : vector<1x128xf32> to vector<16x128xf32>
    %72 = arith.addf %68, %71 : vector<16x128xf32>
    %73 = arith.addf %3, %72 : vector<16x128xf32>
    %c0_31 = arith.constant 0 : index
    %c0_32 = arith.constant 0 : index
    %c0_33 = arith.constant 0 : index
    %74 = vector.load %arg9[%c0_31, %c0_32, %c0_33] : memref<1x1x128xf32, #tpu.memory_space<vmem>>, vector<1x1x128xf32>
    %75 = vector.shape_cast %74 : vector<1x1x128xf32> to vector<1x128xf32>
    %c0_34 = arith.constant 0 : index
    %c0_35 = arith.constant 0 : index
    %c0_36 = arith.constant 0 : index
    %76 = vector.load %arg10[%c0_34, %c0_35, %c0_36] : memref<1x1x128xf32, #tpu.memory_space<vmem>>, vector<1x1x128xf32>
    %77 = vector.shape_cast %76 : vector<1x1x128xf32> to vector<1x128xf32>
    %cst_37 = arith.constant dense<0.000000e+00> : vector<16xf32>
    %78 = vector.multi_reduction <add>, %73, %cst_37 [1] : vector<16x128xf32> to vector<16xf32>
    %79 = vector.shape_cast %78 : vector<16xf32> to vector<16x1xf32>
    %cst_38 = arith.constant 1.280000e+02 : f32
    %80 = vector.broadcast %cst_38 : f32 to vector<16x1xf32>
    %81 = arith.divf %79, %80 : vector<16x1xf32>
    %82 = vector.broadcast %81 : vector<16x1xf32> to vector<16x128xf32>
    %83 = arith.subf %73, %82 : vector<16x128xf32>
    %84 = arith.mulf %83, %83 : vector<16x128xf32>
    %cst_39 = arith.constant dense<0.000000e+00> : vector<16xf32>
    %85 = vector.multi_reduction <add>, %84, %cst_39 [1] : vector<16x128xf32> to vector<16xf32>
    %86 = vector.shape_cast %85 : vector<16xf32> to vector<16x1xf32>
    %cst_40 = arith.constant 1.280000e+02 : f32
    %87 = vector.broadcast %cst_40 : f32 to vector<16x1xf32>
    %88 = arith.divf %86, %87 : vector<16x1xf32>
    %cst_41 = arith.constant 9.99999974E-6 : f32
    %89 = vector.broadcast %cst_41 : f32 to vector<16x1xf32>
    %90 = arith.addf %88, %89 : vector<16x1xf32>
    %91 = math.rsqrt %90 : vector<16x1xf32>
    %92 = vector.broadcast %91 : vector<16x1xf32> to vector<16x128xf32>
    %93 = arith.mulf %83, %92 : vector<16x128xf32>
    %94 = vector.broadcast %75 : vector<1x128xf32> to vector<16x128xf32>
    %95 = arith.mulf %93, %94 : vector<16x128xf32>
    %96 = vector.broadcast %77 : vector<1x128xf32> to vector<16x128xf32>
    %97 = arith.addf %95, %96 : vector<16x128xf32>
    %98 = arith.truncf %97 : vector<16x128xf32> to vector<16x128xbf16>
    %c0_42 = arith.constant 0 : index
    %c0_43 = arith.constant 0 : index
    %c0_44 = arith.constant 0 : index
    %99 = vector.load %arg11[%c0_42, %c0_43, %c0_44] : memref<1x128x256xbf16, #tpu.memory_space<vmem>>, vector<1x128x256xbf16>
    %100 = vector.shape_cast %99 : vector<1x128x256xbf16> to vector<128x256xbf16>
    %cst_45 = arith.constant dense<0.000000e+00> : vector<16x256xf32>
    %101 = tpu.matmul %98, %100, %cst_45 {dimension_numbers = #tpu.dot_dimension_numbers<[1], [0], [0], [1], [0, 0, 1, 1], [], []>} : vector<16x128xbf16>, vector<128x256xbf16>, vector<16x256xf32> -> vector<16x256xf32>
    %c0_46 = arith.constant 0 : index
    %c0_47 = arith.constant 0 : index
    %c0_48 = arith.constant 0 : index
    %102 = vector.load %arg12[%c0_46, %c0_47, %c0_48] : memref<1x1x256xf32, #tpu.memory_space<vmem>>, vector<1x1x256xf32>
    %103 = vector.shape_cast %102 : vector<1x1x256xf32> to vector<1x256xf32>
    %104 = vector.broadcast %103 : vector<1x256xf32> to vector<16x256xf32>
    %105 = arith.addf %101, %104 : vector<16x256xf32>
    %cst_49 = arith.constant 5.000000e-01 : f32
    %106 = vector.broadcast %cst_49 : f32 to vector<16x256xf32>
    %107 = arith.mulf %106, %105 : vector<16x256xf32>
    %cst_50 = arith.constant 0.707106769 : f32
    %108 = vector.broadcast %cst_50 : f32 to vector<16x256xf32>
    %109 = arith.mulf %105, %108 : vector<16x256xf32>
    %110 = math.erf %109 : vector<16x256xf32>
    %cst_51 = arith.constant 1.000000e+00 : f32
    %111 = vector.broadcast %cst_51 : f32 to vector<16x256xf32>
    %112 = arith.addf %111, %110 : vector<16x256xf32>
    %113 = arith.mulf %107, %112 : vector<16x256xf32>
    %114 = arith.truncf %113 : vector<16x256xf32> to vector<16x256xbf16>
    %c0_52 = arith.constant 0 : index
    %c0_53 = arith.constant 0 : index
    %c0_54 = arith.constant 0 : index
    %115 = vector.load %arg13[%c0_52, %c0_53, %c0_54] : memref<1x256x128xbf16, #tpu.memory_space<vmem>>, vector<1x256x128xbf16>
    %116 = vector.shape_cast %115 : vector<1x256x128xbf16> to vector<256x128xbf16>
    %cst_55 = arith.constant dense<0.000000e+00> : vector<16x128xf32>
    %117 = tpu.matmul %114, %116, %cst_55 {dimension_numbers = #tpu.dot_dimension_numbers<[1], [0], [0], [1], [0, 0, 1, 1], [], []>} : vector<16x256xbf16>, vector<256x128xbf16>, vector<16x128xf32> -> vector<16x128xf32>
    %c0_56 = arith.constant 0 : index
    %c0_57 = arith.constant 0 : index
    %c0_58 = arith.constant 0 : index
    %118 = vector.load %arg14[%c0_56, %c0_57, %c0_58] : memref<1x1x128xf32, #tpu.memory_space<vmem>>, vector<1x1x128xf32>
    %119 = vector.shape_cast %118 : vector<1x1x128xf32> to vector<1x128xf32>
    %120 = vector.broadcast %119 : vector<1x128xf32> to vector<16x128xf32>
    %121 = arith.addf %117, %120 : vector<16x128xf32>
    %122 = arith.addf %73, %121 : vector<16x128xf32>
    %c0_59 = arith.constant 0 : index
    %c0_60 = arith.constant 0 : index
    %123 = vector.load %arg16[%c0_59, %c0_60] : memref<16x128xf32, #tpu.memory_space<vmem>>, vector<16x128xf32>
    tpu.vector_store %arg16[%c0_59, %c0_60], %122 {strides = array<i32>} : memref<16x128xf32, #tpu.memory_space<vmem>>, vector<16x128xf32>,
    %c1_i32 = arith.constant 1 : i32
    %124 = arith.cmpi eq, %arg1, %c1_i32 : i32
    %125 = arith.extui %124 : i1 to i32
    %c0_i32_61 = arith.constant 0 : i32
    %126 = arith.cmpi ne, %125, %c0_i32_61 : i32
    scf.if %126 {
      %c0_62 = arith.constant 0 : index
      %c0_63 = arith.constant 0 : index
      %c0_64 = arith.constant 0 : index
      %127 = vector.load %arg15[%c0_62, %c0_63, %c0_64] : memref<1x16x128xf32, #tpu.memory_space<vmem>>, vector<1x16x128xf32>
      %128 = vector.shape_cast %127 : vector<1x16x128xf32> to vector<16x128xf32>
      %129 = vector.shape_cast %122 : vector<16x128xf32> to vector<1x16x128xf32>
      tpu.vector_store %arg15[%c0_62, %c0_63, %c0_64], %129 {strides = array<i32>} : memref<1x16x128xf32, #tpu.memory_space<vmem>>, vector<1x16x128xf32>,
    } else {
    }
    return
  }
  func.func @transform_0(%arg0: i32, %arg1: i32) -> (i32, i32, i32) {
    %c0_i32 = arith.constant 0 : i32
    %c0_i32_0 = arith.constant 0 : i32
    %c0_i32_1 = arith.constant 0 : i32
    return %arg0, %c0_i32, %c0_i32_0 : i32, i32, i32
  }
  func.func @transform_1(%arg0: i32, %arg1: i32) -> (i32, i32, i32) {
    %c0_i32 = arith.constant 0 : i32
    %c0_i32_0 = arith.constant 0 : i32
    %c0_i32_1 = arith.constant 0 : i32
    return %arg1, %c0_i32, %c0_i32_0 : i32, i32, i32
  }
  func.func @transform_2(%arg0: i32, %arg1: i32) -> (i32, i32, i32) {
    %c0_i32 = arith.constant 0 : i32
    %c0_i32_0 = arith.constant 0 : i32
    %c0_i32_1 = arith.constant 0 : i32
    return %arg1, %c0_i32, %c0_i32_0 : i32, i32, i32
  }
  func.func @transform_3(%arg0: i32, %arg1: i32) -> (i32, i32, i32) {
    %c0_i32 = arith.constant 0 : i32
    %c0_i32_0 = arith.constant 0 : i32
    %c0_i32_1 = arith.constant 0 : i32
    return %arg1, %c0_i32, %c0_i32_0 : i32, i32, i32
  }
  func.func @transform_4(%arg0: i32, %arg1: i32) -> (i32, i32, i32) {
    %c0_i32 = arith.constant 0 : i32
    %c0_i32_0 = arith.constant 0 : i32
    %c0_i32_1 = arith.constant 0 : i32
    return %arg1, %c0_i32, %c0_i32_0 : i32, i32, i32
  }
  func.func @transform_5(%arg0: i32, %arg1: i32) -> (i32, i32, i32) {
    %c0_i32 = arith.constant 0 : i32
    %c0_i32_0 = arith.constant 0 : i32
    %c0_i32_1 = arith.constant 0 : i32
    return %arg1, %c0_i32, %c0_i32_0 : i32, i32, i32
  }
  func.func @transform_6(%arg0: i32, %arg1: i32) -> (i32, i32, i32) {
    %c0_i32 = arith.constant 0 : i32
    %c0_i32_0 = arith.constant 0 : i32
    %c0_i32_1 = arith.constant 0 : i32
    return %arg1, %c0_i32, %c0_i32_0 : i32, i32, i32
  }
  func.func @transform_7(%arg0: i32, %arg1: i32) -> (i32, i32, i32) {
    %c0_i32 = arith.constant 0 : i32
    %c0_i32_0 = arith.constant 0 : i32
    %c0_i32_1 = arith.constant 0 : i32
    return %arg1, %c0_i32, %c0_i32_0 : i32, i32, i32
  }
  func.func @transform_8(%arg0: i32, %arg1: i32) -> (i32, i32, i32) {
    %c0_i32 = arith.constant 0 : i32
    %c0_i32_0 = arith.constant 0 : i32
    %c0_i32_1 = arith.constant 0 : i32
    return %arg1, %c0_i32, %c0_i32_0 : i32, i32, i32
  }
  func.func @transform_9(%arg0: i32, %arg1: i32) -> (i32, i32, i32) {
    %c0_i32 = arith.constant 0 : i32
    %c0_i32_0 = arith.constant 0 : i32
    %c0_i32_1 = arith.constant 0 : i32
    return %arg1, %c0_i32, %c0_i32_0 : i32, i32, i32
  }
  func.func @transform_10(%arg0: i32, %arg1: i32) -> (i32, i32, i32) {
    %c0_i32 = arith.constant 0 : i32
    %c0_i32_0 = arith.constant 0 : i32
    %c0_i32_1 = arith.constant 0 : i32
    return %arg1, %c0_i32, %c0_i32_0 : i32, i32, i32
  }
  func.func @transform_11(%arg0: i32, %arg1: i32) -> (i32, i32, i32) {
    %c0_i32 = arith.constant 0 : i32
    %c0_i32_0 = arith.constant 0 : i32
    %c0_i32_1 = arith.constant 0 : i32
    return %arg1, %c0_i32, %c0_i32_0 : i32, i32, i32
  }
  func.func @transform_12(%arg0: i32, %arg1: i32) -> (i32, i32, i32) {
    %c0_i32 = arith.constant 0 : i32
    %c0_i32_0 = arith.constant 0 : i32
    %c0_i32_1 = arith.constant 0 : i32
    return %arg1, %c0_i32, %c0_i32_0 : i32, i32, i32
  }
  func.func @transform_13(%arg0: i32, %arg1: i32) -> (i32, i32, i32) {
    %c0_i32 = arith.constant 0 : i32
    %c0_i32_0 = arith.constant 0 : i32
    %c0_i32_1 = arith.constant 0 : i32
    return %arg0, %c0_i32, %c0_i32_0 : i32, i32, i32
  }
}

</mosaic_0001>

<llo_original>
// kernel: tpu_custom_call.1
$region0: #{tpu_custom_call.1}
  #allocation0 [shape = 'u32[]', space=smem, size = 0x4, offset = 0x4, fixed_abs, tag = 'smem constant byte address 0x4 - core index']
  #allocation1 [shape = 'u32[144,128]{1,0:T(1,128)}', space=vmem, size = 0x12000, scoped, tag = 'internal scratch']
  #allocation2 [shape = 'f32[16,128]{1,0:T(8,128)}', space=vmem, size = 0x2000, scoped, tag = 'scratch operand']
  %s0 = inlined_call_operand.hbm [shape: f32[2,16,128], index: 0, kind: input, shape index: {}]
  %s1 = inlined_call_operand.hbm [shape: f32[2,1,128], index: 1, kind: input, shape index: {}]
  %s2 = inlined_call_operand.hbm [shape: f32[2,1,128], index: 2, kind: input, shape index: {}]
  %s3 = inlined_call_operand.hbm [shape: bf16[2,128,384], index: 3, kind: input, shape index: {}]
  %s4 = inlined_call_operand.vmem [shape: f32[2,1,384], index: 4, kind: input, shape index: {}]
  %s5 = inlined_call_operand.hbm [shape: bf16[2,128,128], index: 5, kind: input, shape index: {}]
  %s6 = inlined_call_operand.vmem [shape: f32[2,1,128], index: 6, kind: input, shape index: {}]
  %s7 = inlined_call_operand.vmem [shape: f32[2,1,128], index: 7, kind: input, shape index: {}]
  %s8 = inlined_call_operand.vmem [shape: f32[2,1,128], index: 8, kind: input, shape index: {}]
  %s9 = inlined_call_operand.hbm [shape: bf16[2,128,256], index: 9, kind: input, shape index: {}]
  %s10 = inlined_call_operand.vmem [shape: f32[2,1,256], index: 10, kind: input, shape index: {}]
  %s11 = inlined_call_operand.hbm [shape: bf16[2,256,128], index: 11, kind: input, shape index: {}]
  %s12 = inlined_call_operand.vmem [shape: f32[2,1,128], index: 12, kind: input, shape index: {}]
  %s13 = inlined_call_operand.hbm [shape: f32[2,16,128], index: 13, kind: output, shape index: {}]
  %s14 = sld [smem:[#allocation0]]
  $region121: #{tpu_custom_call.1} parent=0
    _
  %s16 = ssub.s32 1, %s14
  %s17 = scalar_select 0, %s16, %s14
  $region1: #{tpu_custom_call.1} parent=0
    #allocation3 [shape = 'u8[16384]{0}', space=vmem, size = 0x4000, scoped, tag = 'input window, operand 0']
    #allocation4 [shape = 's32[2]{0}', space=sflag, size = 0x8, scoped, tag = 'scoped memory for tpu_custom_call.1']
    #allocation5 [shape = 's32[2]{0}', space=sflag, size = 0x8, scoped, tag = 'scoped memory for tpu_custom_call.1']
    #allocation6 [shape = 'u8[1024]{0}', space=vmem, size = 0x400, scoped, tag = 'input window, operand 1']
    #allocation7 [shape = 's32[2]{0}', space=sflag, size = 0x8, scoped, tag = 'scoped memory for tpu_custom_call.1']
    #allocation8 [shape = 'u8[1024]{0}', space=vmem, size = 0x400, scoped, tag = 'input window, operand 2']
    #allocation9 [shape = 'u8[196608]{0}', space=vmem, size = 0x30000, scoped, tag = 'input window, operand 3']
    #allocation10 [shape = 's32[2]{0}', space=sflag, size = 0x8, scoped, tag = 'scoped memory for tpu_custom_call.1']
    #allocation11 [shape = 'u8[65536]{0}', space=vmem, size = 0x10000, scoped, tag = 'input window, operand 5']
    #allocation12 [shape = 'u8[131072]{0}', space=vmem, size = 0x20000, scoped, tag = 'input window, operand 9']
    #allocation13 [shape = 's32[2]{0}', space=sflag, size = 0x8, scoped, tag = 'scoped memory for tpu_custom_call.1']
    #allocation14 [shape = 'u8[131072]{0}', space=vmem, size = 0x20000, scoped, tag = 'input window, operand 11']
    #allocation15 [shape = 'u8[16384]{0}', space=vmem, size = 0x4000, scoped, tag = 'output window, operand 0']
    %18 = vsyncpa [#allocation4], 0
    %s19 = scalar_lea.sflag [#allocation4], 1
    %20 = vsyncpa %s19, 0
    %21 = vsyncpa [#allocation7], 0
    %s22 = scalar_lea.sflag [#allocation7], 1
    %23 = vsyncpa %s22, 0
    %24 = vsyncpa [#allocation10], 0
    %s25 = scalar_lea.sflag [#allocation10], 1
    %26 = vsyncpa %s25, 0
    %27 = vsyncpa [#allocation13], 0
    %s28 = scalar_lea.sflag [#allocation13], 1
    %29 = vsyncpa %s28, 0
    %30 = vsyncpa [#allocation5], 0
    %s31 = scalar_lea.sflag [#allocation5], 1
    %32 = vsyncpa %s31, 0
    loop: start=0, step=1, limit=6
    $region2: #{tpu_custom_call.1} parent=1 // loop_pre_header
      _
    $region3: #{tpu_custom_call.1} parent=1 // loop_header
      %s34 = sphi 0, %s38
      %p35 = scmp.ge.s32.totalorder %s34, 6
      %s41 = sphi 0, %s53
      %s42 = sphi 0, %s49
      %s43 = sphi 0, %s41
      %s44 = sphi 0, %s42
      %s45 = sphi 0, %s43
      %s46 = sphi 0, %s44
      %s56 = sphi 0, %s58
      %s59 = sphi 0, %s56
      %s60 = sphi 0, %s59
      %s76 = sphi 0, %s60
      %s82 = sphi 0, %s84
      %s85 = sphi 0, %s82
      %s86 = sphi 0, %s85
      %s102 = sphi 0, %s86
      %s108 = sphi 0, %s110
      %s111 = sphi 0, %s108
      %s112 = sphi 0, %s111
      %s128 = sphi 0, %s112
      %s134 = sphi 0, %s136
      %s137 = sphi 0, %s134
      %s138 = sphi 0, %s137
      %s154 = sphi 0, %s138
      %s160 = sphi 0, %s162
      %s163 = sphi 0, %s160
      %s164 = sphi 0, %s163
      %s180 = sphi 0, %s164
      %s186 = sphi 0, %s188
      %s189 = sphi 0, %s186
      %s190 = sphi 0, %s189
      %s206 = sphi 0, %s190
      %s212 = sphi 0, %s214
      %s215 = sphi 0, %s212
      %s216 = sphi 0, %s215
      %s232 = sphi 0, %s216
      %s238 = sphi 0, %s240
      %s241 = sphi 0, %s238
      %s242 = sphi 0, %s241
      %s258 = sphi 0, %s242
      %s264 = sphi 0, %s266
      %s267 = sphi 0, %s264
      %s268 = sphi 0, %s267
      %s284 = sphi 0, %s268
      %s290 = sphi 0, %s292
      %s293 = sphi 0, %s290
      %s294 = sphi 0, %s293
      %s310 = sphi 0, %s294
      %s316 = sphi 0, %s318
      %s319 = sphi 0, %s316
      %s320 = sphi 0, %s319
      %s336 = sphi 0, %s320
      %s342 = sphi 0, %s344
      %s345 = sphi 0, %s342
      %s346 = sphi 0, %s345
      %s362 = sphi 0, %s346
      %s368 = sphi 0, %s370
      %s371 = sphi 0, %s368
      %s372 = sphi 0, %s371
      %s388 = sphi 0, %s372
      %s394 = sphi 0, %s396
      %s397 = sphi 0, %s394
      %s398 = sphi 0, %s397
      %s414 = sphi 0, %s398
    $region4: #{tpu_custom_call.1} parent=1 // loop_header_branch
      %37 = sbr.rel (%p35) target = $region8
    $region5: #{tpu_custom_call.1} parent=1 // loop_body
      %s39 = ssub.s32 %s34, 1
      %s40 = ssub.s32 %s34, 2
      %s47 = sadd.s32 1, %s42
      %p48 = scmp.ge.s32.totalorder %s47, 2
      %s49 = scalar_select %p48, 0, %s47
      %s50 = sadd.s32 1, %s41
      %s51 = scalar_select %p48, %s50, %s41
      %p52 = scmp.ge.s32.totalorder %s51, 2
      %s53 = scalar_select %p52, 0, %s51
      %s54 = ssub.s32 %s41, %s53
      %p55 = scmp.eq.s32.totalorder %s54, 0
      %s57 = sadd.s32 %s56, 1
      %s58 = scalar_select %p55, %s56, %s57
      %p61 = pneg %p55
      %p62 = scmp.eq.s32.totalorder %s34, 3
      %p63 = por %p61, %p62
      %p64 = scmp.ne.s32.totalorder %s56, %s59
      %p65 = scmp.eq.s32.totalorder %s34, 0
      %p66 = por %p64, %p65
      %p67 = scmp.ne.s32.totalorder %s56, %s59
      %p68 = scmp.eq.s32.totalorder %s39, 3
      %p69 = por %p67, %p68
      %p70 = scmp.ne.s32.totalorder %s59, %s60
      %p71 = scmp.eq.s32.totalorder %s39, 0
      %p72 = por %p70, %p71
      %p73 = scmp.ne.s32.totalorder %s59, %s60
      %p74 = scmp.eq.s32.totalorder %s40, 3
      %p75 = por %p73, %p74
      %p77 = scmp.ne.s32.totalorder %s60, %s76
      %p78 = scmp.eq.s32.totalorder %s40, 0
      %p79 = por %p77, %p78
      %s80 = ssub.s32 %s42, %s49
      %p81 = scmp.eq.s32.totalorder %s80, 0
      %s83 = sadd.s32 %s82, 1
      %s84 = scalar_select %p81, %s82, %s83
      %p87 = pneg %p81
      %p88 = scmp.eq.s32.totalorder %s34, 3
      %p89 = por %p87, %p88
      %p90 = scmp.ne.s32.totalorder %s82, %s85
      %p91 = scmp.eq.s32.totalorder %s34, 0
      %p92 = por %p90, %p91
      %p93 = scmp.ne.s32.totalorder %s82, %s85
      %p94 = scmp.eq.s32.totalorder %s39, 3
      %p95 = por %p93, %p94
      %p96 = scmp.ne.s32.totalorder %s85, %s86
      %p97 = scmp.eq.s32.totalorder %s39, 0
      %p98 = por %p96, %p97
      %p99 = scmp.ne.s32.totalorder %s85, %s86
      %p100 = scmp.eq.s32.totalorder %s40, 3
      %p101 = por %p99, %p100
      %p103 = scmp.ne.s32.totalorder %s86, %s102
      %p104 = scmp.eq.s32.totalorder %s40, 0
      %p105 = por %p103, %p104
      %s106 = ssub.s32 %s42, %s49
      %p107 = scmp.eq.s32.totalorder %s106, 0
      %s109 = sadd.s32 %s108, 1
      %s110 = scalar_select %p107, %s108, %s109
      %p113 = pneg %p107
      %p114 = scmp.eq.s32.totalorder %s34, 3
      %p115 = por %p113, %p114
      %p116 = scmp.ne.s32.totalorder %s108, %s111
      %p117 = scmp.eq.s32.totalorder %s34, 0
      %p118 = por %p116, %p117
      %p119 = scmp.ne.s32.totalorder %s108, %s111
      %p120 = scmp.eq.s32.totalorder %s39, 3
      %p121 = por %p119, %p120
      %p122 = scmp.ne.s32.totalorder %s111, %s112
      %p123 = scmp.eq.s32.totalorder %s39, 0
      %p124 = por %p122, %p123
      %p125 = scmp.ne.s32.totalorder %s111, %s112
      %p126 = scmp.eq.s32.totalorder %s40, 3
      %p127 = por %p125, %p126
      %p129 = scmp.ne.s32.totalorder %s112, %s128
      %p130 = scmp.eq.s32.totalorder %s40, 0
      %p131 = por %p129, %p130
      %s132 = ssub.s32 %s42, %s49
      %p133 = scmp.eq.s32.totalorder %s132, 0
      %s135 = sadd.s32 %s134, 1
      %s136 = scalar_select %p133, %s134, %s135
      %p139 = pneg %p133
      %p140 = scmp.eq.s32.totalorder %s34, 3
      %p141 = por %p139, %p140
      %p142 = scmp.ne.s32.totalorder %s134, %s137
      %p143 = scmp.eq.s32.totalorder %s34, 0
      %p144 = por %p142, %p143
      %p145 = scmp.ne.s32.totalorder %s134, %s137
      %p146 = scmp.eq.s32.totalorder %s39, 3
      %p147 = por %p145, %p146
      %p148 = scmp.ne.s32.totalorder %s137, %s138
      %p149 = scmp.eq.s32.totalorder %s39, 0
      %p150 = por %p148, %p149
      %p151 = scmp.ne.s32.totalorder %s137, %s138
      %p152 = scmp.eq.s32.totalorder %s40, 3
      %p153 = por %p151, %p152
      %p155 = scmp.ne.s32.totalorder %s138, %s154
      %p156 = scmp.eq.s32.totalorder %s40, 0
      %p157 = por %p155, %p156
      %s158 = ssub.s32 %s42, %s49
      %p159 = scmp.eq.s32.totalorder %s158, 0
      %s161 = sadd.s32 %s160, 1
      %s162 = scalar_select %p159, %s160, %s161
      %p165 = pneg %p159
      %p166 = scmp.eq.s32.totalorder %s34, 3
      %p167 = por %p165, %p166
      %p168 = scmp.ne.s32.totalorder %s160, %s163
      %p169 = scmp.eq.s32.totalorder %s34, 0
      %p170 = por %p168, %p169
      %p171 = scmp.ne.s32.totalorder %s160, %s163
      %p172 = scmp.eq.s32.totalorder %s39, 3
      %p173 = por %p171, %p172
      %p174 = scmp.ne.s32.totalorder %s163, %s164
      %p175 = scmp.eq.s32.totalorder %s39, 0
      %p176 = por %p174, %p175
      %p177 = scmp.ne.s32.totalorder %s163, %s164
      %p178 = scmp.eq.s32.totalorder %s40, 3
      %p179 = por %p177, %p178
      %p181 = scmp.ne.s32.totalorder %s164, %s180
      %p182 = scmp.eq.s32.totalorder %s40, 0
      %p183 = por %p181, %p182
      %s184 = ssub.s32 %s42, %s49
      %p185 = scmp.eq.s32.totalorder %s184, 0
      %s187 = sadd.s32 %s186, 1
      %s188 = scalar_select %p185, %s186, %s187
      %p191 = pneg %p185
      %p192 = scmp.eq.s32.totalorder %s34, 3
      %p193 = por %p191, %p192
      %p194 = scmp.ne.s32.totalorder %s186, %s189
      %p195 = scmp.eq.s32.totalorder %s34, 0
      %p196 = por %p194, %p195
      %p197 = scmp.ne.s32.totalorder %s186, %s189
      %p198 = scmp.eq.s32.totalorder %s39, 3
      %p199 = por %p197, %p198
      %p200 = scmp.ne.s32.totalorder %s189, %s190
      %p201 = scmp.eq.s32.totalorder %s39, 0
      %p202 = por %p200, %p201
      %p203 = scmp.ne.s32.totalorder %s189, %s190
      %p204 = scmp.eq.s32.totalorder %s40, 3
      %p205 = por %p203, %p204
      %p207 = scmp.ne.s32.totalorder %s190, %s206
      %p208 = scmp.eq.s32.totalorder %s40, 0
      %p209 = por %p207, %p208
      %s210 = ssub.s32 %s42, %s49
      %p211 = scmp.eq.s32.totalorder %s210, 0
      %s213 = sadd.s32 %s212, 1
      %s214 = scalar_select %p211, %s212, %s213
      %p217 = pneg %p211
      %p218 = scmp.eq.s32.totalorder %s34, 3
      %p219 = por %p217, %p218
      %p220 = scmp.ne.s32.totalorder %s212, %s215
      %p221 = scmp.eq.s32.totalorder %s34, 0
      %p222 = por %p220, %p221
      %p223 = scmp.ne.s32.totalorder %s212, %s215
      %p224 = scmp.eq.s32.totalorder %s39, 3
      %p225 = por %p223, %p224
      %p226 = scmp.ne.s32.totalorder %s215, %s216
      %p227 = scmp.eq.s32.totalorder %s39, 0
      %p228 = por %p226, %p227
      %p229 = scmp.ne.s32.totalorder %s215, %s216
      %p230 = scmp.eq.s32.totalorder %s40, 3
      %p231 = por %p229, %p230
      %p233 = scmp.ne.s32.totalorder %s216, %s232
      %p234 = scmp.eq.s32.totalorder %s40, 0
      %p235 = por %p233, %p234
      %s236 = ssub.s32 %s42, %s49
      %p237 = scmp.eq.s32.totalorder %s236, 0
      %s239 = sadd.s32 %s238, 1
      %s240 = scalar_select %p237, %s238, %s239
      %p243 = pneg %p237
      %p244 = scmp.eq.s32.totalorder %s34, 3
      %p245 = por %p243, %p244
      %p246 = scmp.ne.s32.totalorder %s238, %s241
      %p247 = scmp.eq.s32.totalorder %s34, 0
      %p248 = por %p246, %p247
      %p249 = scmp.ne.s32.totalorder %s238, %s241
      %p250 = scmp.eq.s32.totalorder %s39, 3
      %p251 = por %p249, %p250
      %p252 = scmp.ne.s32.totalorder %s241, %s242
      %p253 = scmp.eq.s32.totalorder %s39, 0
      %p254 = por %p252, %p253
      %p255 = scmp.ne.s32.totalorder %s241, %s242
      %p256 = scmp.eq.s32.totalorder %s40, 3
      %p257 = por %p255, %p256
      %p259 = scmp.ne.s32.totalorder %s242, %s258
      %p260 = scmp.eq.s32.totalorder %s40, 0
      %p261 = por %p259, %p260
      %s262 = ssub.s32 %s42, %s49
      %p263 = scmp.eq.s32.totalorder %s262, 0
      %s265 = sadd.s32 %s264, 1
      %s266 = scalar_select %p263, %s264, %s265
      %p269 = pneg %p263
      %p270 = scmp.eq.s32.totalorder %s34, 3
      %p271 = por %p269, %p270
      %p272 = scmp.ne.s32.totalorder %s264, %s267
      %p273 = scmp.eq.s32.totalorder %s34, 0
      %p274 = por %p272, %p273
      %p275 = scmp.ne.s32.totalorder %s264, %s267
      %p276 = scmp.eq.s32.totalorder %s39, 3
      %p277 = por %p275, %p276
      %p278 = scmp.ne.s32.totalorder %s267, %s268
      %p279 = scmp.eq.s32.totalorder %s39, 0
      %p280 = por %p278, %p279
      %p281 = scmp.ne.s32.totalorder %s267, %s268
      %p282 = scmp.eq.s32.totalorder %s40, 3
      %p283 = por %p281, %p282
      %p285 = scmp.ne.s32.totalorder %s268, %s284
      %p286 = scmp.eq.s32.totalorder %s40, 0
      %p287 = por %p285, %p286
      %s288 = ssub.s32 %s42, %s49
      %p289 = scmp.eq.s32.totalorder %s288, 0
      %s291 = sadd.s32 %s290, 1
      %s292 = scalar_select %p289, %s290, %s291
      %p295 = pneg %p289
      %p296 = scmp.eq.s32.totalorder %s34, 3
      %p297 = por %p295, %p296
      %p298 = scmp.ne.s32.totalorder %s290, %s293
      %p299 = scmp.eq.s32.totalorder %s34, 0
      %p300 = por %p298, %p299
      %p301 = scmp.ne.s32.totalorder %s290, %s293
      %p302 = scmp.eq.s32.totalorder %s39, 3
      %p303 = por %p301, %p302
      %p304 = scmp.ne.s32.totalorder %s293, %s294
      %p305 = scmp.eq.s32.totalorder %s39, 0
      %p306 = por %p304, %p305
      %p307 = scmp.ne.s32.totalorder %s293, %s294
      %p308 = scmp.eq.s32.totalorder %s40, 3
      %p309 = por %p307, %p308
      %p311 = scmp.ne.s32.totalorder %s294, %s310
      %p312 = scmp.eq.s32.totalorder %s40, 0
      %p313 = por %p311, %p312
      %s314 = ssub.s32 %s42, %s49
      %p315 = scmp.eq.s32.totalorder %s314, 0
      %s317 = sadd.s32 %s316, 1
      %s318 = scalar_select %p315, %s316, %s317
      %p321 = pneg %p315
      %p322 = scmp.eq.s32.totalorder %s34, 3
      %p323 = por %p321, %p322
      %p324 = scmp.ne.s32.totalorder %s316, %s319
      %p325 = scmp.eq.s32.totalorder %s34, 0
      %p326 = por %p324, %p325
      %p327 = scmp.ne.s32.totalorder %s316, %s319
      %p328 = scmp.eq.s32.totalorder %s39, 3
      %p329 = por %p327, %p328
      %p330 = scmp.ne.s32.totalorder %s319, %s320
      %p331 = scmp.eq.s32.totalorder %s39, 0
      %p332 = por %p330, %p331
      %p333 = scmp.ne.s32.totalorder %s319, %s320
      %p334 = scmp.eq.s32.totalorder %s40, 3
      %p335 = por %p333, %p334
      %p337 = scmp.ne.s32.totalorder %s320, %s336
      %p338 = scmp.eq.s32.totalorder %s40, 0
      %p339 = por %p337, %p338
      %s340 = ssub.s32 %s42, %s49
      %p341 = scmp.eq.s32.totalorder %s340, 0
      %s343 = sadd.s32 %s342, 1
      %s344 = scalar_select %p341, %s342, %s343
      %p347 = pneg %p341
      %p348 = scmp.eq.s32.totalorder %s34, 3
      %p349 = por %p347, %p348
      %p350 = scmp.ne.s32.totalorder %s342, %s345
      %p351 = scmp.eq.s32.totalorder %s34, 0
      %p352 = por %p350, %p351
      %p353 = scmp.ne.s32.totalorder %s342, %s345
      %p354 = scmp.eq.s32.totalorder %s39, 3
      %p355 = por %p353, %p354
      %p356 = scmp.ne.s32.totalorder %s345, %s346
      %p357 = scmp.eq.s32.totalorder %s39, 0
      %p358 = por %p356, %p357
      %p359 = scmp.ne.s32.totalorder %s345, %s346
      %p360 = scmp.eq.s32.totalorder %s40, 3
      %p361 = por %p359, %p360
      %p363 = scmp.ne.s32.totalorder %s346, %s362
      %p364 = scmp.eq.s32.totalorder %s40, 0
      %p365 = por %p363, %p364
      %s366 = ssub.s32 %s42, %s49
      %p367 = scmp.eq.s32.totalorder %s366, 0
      %s369 = sadd.s32 %s368, 1
      %s370 = scalar_select %p367, %s368, %s369
      %p373 = pneg %p367
      %p374 = scmp.eq.s32.totalorder %s34, 3
      %p375 = por %p373, %p374
      %p376 = scmp.ne.s32.totalorder %s368, %s371
      %p377 = scmp.eq.s32.totalorder %s34, 0
      %p378 = por %p376, %p377
      %p379 = scmp.ne.s32.totalorder %s368, %s371
      %p380 = scmp.eq.s32.totalorder %s39, 3
      %p381 = por %p379, %p380
      %p382 = scmp.ne.s32.totalorder %s371, %s372
      %p383 = scmp.eq.s32.totalorder %s39, 0
      %p384 = por %p382, %p383
      %p385 = scmp.ne.s32.totalorder %s371, %s372
      %p386 = scmp.eq.s32.totalorder %s40, 3
      %p387 = por %p385, %p386
      %p389 = scmp.ne.s32.totalorder %s372, %s388
      %p390 = scmp.eq.s32.totalorder %s40, 0
      %p391 = por %p389, %p390
      %s392 = ssub.s32 %s41, %s53
      %p393 = scmp.eq.s32.totalorder %s392, 0
      %s395 = sadd.s32 %s394, 1
      %s396 = scalar_select %p393, %s394, %s395
      %p399 = pneg %p393
      %p400 = scmp.eq.s32.totalorder %s34, 3
      %p401 = por %p399, %p400
      %p402 = scmp.ne.s32.totalorder %s394, %s397
      %p403 = scmp.eq.s32.totalorder %s34, 0
      %p404 = por %p402, %p403
      %p405 = scmp.ne.s32.totalorder %s394, %s397
      %p406 = scmp.eq.s32.totalorder %s39, 3
      %p407 = por %p405, %p406
      %p408 = scmp.ne.s32.totalorder %s397, %s398
      %p409 = scmp.eq.s32.totalorder %s39, 0
      %p410 = por %p408, %p409
      %p411 = scmp.ne.s32.totalorder %s397, %s398
      %p412 = scmp.eq.s32.totalorder %s40, 3
      %p413 = por %p411, %p412
      %p415 = scmp.ne.s32.totalorder %s398, %s414
      %p416 = scmp.eq.s32.totalorder %s40, 0
      %p417 = por %p415, %p416
      %p418 = scmp.le.s32.totalorder 1, %s34
      %p419 = scmp.lt.s32.totalorder %s34, 5
      %p420 = pnand %p418, %p419
      %p421 = pneg %p420
      // Predicated region
      $region9: #{tpu_custom_call.1} parent=5 // pred_check
        _
      $region10: #{tpu_custom_call.1} parent=5 // pred_check_branch
        %423 = sbr.rel (%p420) target = $region12
      $region11: #{tpu_custom_call.1} parent=5 // pred_region
        %s424 = ssub.s32 %s34, 1
      $region12: #{tpu_custom_call.1} parent=5 // pred_fallthru
        _
      %p425 = scmp.lt.s32.totalorder %s34, 4
      // Predicated region
      $region13: #{tpu_custom_call.1} parent=5 // pred_check
        %p426 = pneg %p425
      $region14: #{tpu_custom_call.1} parent=5 // pred_check_branch
        %428 = sbr.rel (%p426) target = $region16
      $region15: #{tpu_custom_call.1} parent=5 // pred_region
        // Predicated region
        $region17: #{tpu_custom_call.1} parent=15 // pred_check
          %p429 = pneg %p66
        $region18: #{tpu_custom_call.1} parent=15 // pred_check_branch
          %431 = sbr.rel (%p429) target = $region20
        $region19: #{tpu_custom_call.1} parent=15 // pred_region
          %s432 = sand.u32 %s56, 1
          %s433 = scalar_lea.sflag [#allocation4], %s432
          %s434 = sand.u32 %s56, 1
          %s435 = smul.addr %s434, 16
          %s436 = scalar_lea.vmem [#allocation3], %s435
          %s438 = ssub.s32 256, 256
          %439 = vsyncadd %s433, %s438
          %s440 = smul.addr %s41, 2
          %s441 = smul.addr %s440, 128
          %s442 = scalar_lea.hbm %s0, %s441
          %s443 = sshll.u32 %s436, 4
          %s444 = int_to_ptr.vmem [resolvable:$true] %s443
          %449 = dma.hbm_to_vmem [thread:$0]  %s442, 256, %s444, %s433, 128, 128, 8
        $region20: #{tpu_custom_call.1} parent=15 // pred_fallthru
          _
        // Predicated region
        $region21: #{tpu_custom_call.1} parent=15 // pred_check
          %p450 = pneg %p92
        $region22: #{tpu_custom_call.1} parent=15 // pred_check_branch
          %452 = sbr.rel (%p450) target = $region24
        $region23: #{tpu_custom_call.1} parent=15 // pred_region
          %s453 = sand.u32 %s34, 1
          %s454 = scalar_lea.sflag [#allocation7], %s453
          %s455 = sand.u32 %s82, 1
          %s456 = scalar_lea.vmem [#allocation6], %s455
          %s458 = ssub.s32 16, 16
          %459 = vsyncadd %s454, %s458
          %s460 = smul.addr %s42, 16
          %s461 = scalar_lea.hbm %s1, %s460
          %s463 = sshll.u32 %s456, 4
          %s464 = int_to_ptr.vmem [resolvable:$true] %s463
          %466 = dma.hbm_to_vmem [thread:$0]  %s461, 16, %s464, %s454
        $region24: #{tpu_custom_call.1} parent=15 // pred_fallthru
          _
        // Predicated region
        $region25: #{tpu_custom_call.1} parent=15 // pred_check
          %p467 = pneg %p118
        $region26: #{tpu_custom_call.1} parent=15 // pred_check_branch
          %469 = sbr.rel (%p467) target = $region28
        $region27: #{tpu_custom_call.1} parent=15 // pred_region
          %s470 = sand.u32 %s34, 1
          %s471 = scalar_lea.sflag [#allocation7], %s470
          %s472 = sand.u32 %s108, 1
          %s473 = scalar_lea.vmem [#allocation8], %s472
          %s475 = ssub.s32 16, 16
          %476 = vsyncadd %s471, %s475
          %s477 = smul.addr %s42, 16
          %s478 = scalar_lea.hbm %s2, %s477
          %s480 = sshll.u32 %s473, 4
          %s481 = int_to_ptr.vmem [resolvable:$true] %s480
          %483 = dma.hbm_to_vmem [thread:$0]  %s478, 16, %s481, %s471
        $region28: #{tpu_custom_call.1} parent=15 // pred_fallthru
          _
        // Predicated region
        $region29: #{tpu_custom_call.1} parent=15 // pred_check
          %p484 = pneg %p144
        $region30: #{tpu_custom_call.1} parent=15 // pred_check_branch
          %486 = sbr.rel (%p484) target = $region32
        $region31: #{tpu_custom_call.1} parent=15 // pred_region
          %s487 = sand.u32 %s34, 1
          %s488 = scalar_lea.sflag [#allocation10], %s487
          %s489 = sand.u32 %s134, 1
          %s490 = smul.addr %s489, 192
          %s491 = scalar_lea.vmem [#allocation9], %s490
          %s493 = ssub.s32 3072, 3072
          %494 = vsyncadd %s488, %s493
          %s495 = smul.addr %s42, 48
          %s496 = smul.addr %s495, 64
          %s497 = scalar_lea.hbm %s3, %s496
          %s498 = sshll.u32 %s491, 4
          %s499 = int_to_ptr.vmem [resolvable:$true] %s498
          %504 = dma.hbm_to_vmem [thread:$0]  %s497, 3072, %s499, %s488, 192, 192, 12
        $region32: #{tpu_custom_call.1} parent=15 // pred_fallthru
          _
        // Predicated region
        $region33: #{tpu_custom_call.1} parent=15 // pred_check
          %p505 = pneg %p170
        $region34: #{tpu_custom_call.1} parent=15 // pred_check_branch
          %507 = sbr.rel (%p505) target = $region36
        $region35: #{tpu_custom_call.1} parent=15 // pred_region
          %p508 = scmp.lt.s32.totalorder %s42, 1
          %s509 = scalar_select %p508, %s42, 1
          %s510 = smul.addr %s509, 3
          %s511 = scalar_lea.vmem %s4, %s510
        $region36: #{tpu_custom_call.1} parent=15 // pred_fallthru
          _
        // Predicated region
        $region37: #{tpu_custom_call.1} parent=15 // pred_check
          %p512 = pneg %p196
        $region38: #{tpu_custom_call.1} parent=15 // pred_check_branch
          %514 = sbr.rel (%p512) target = $region40
        $region39: #{tpu_custom_call.1} parent=15 // pred_region
          %s515 = sand.u32 %s34, 1
          %s516 = scalar_lea.sflag [#allocation10], %s515
          %s517 = sand.u32 %s186, 1
          %s518 = smul.addr %s517, 64
          %s519 = scalar_lea.vmem [#allocation11], %s518
          %s521 = ssub.s32 1024, 1024
          %522 = vsyncadd %s516, %s521
          %s523 = smul.addr %s42, 16
          %s524 = smul.addr %s523, 64
          %s525 = scalar_lea.hbm %s5, %s524
          %s526 = sshll.u32 %s519, 4
          %s527 = int_to_ptr.vmem [resolvable:$true] %s526
          %532 = dma.hbm_to_vmem [thread:$0]  %s525, 1024, %s527, %s516, 64, 64, 4
        $region40: #{tpu_custom_call.1} parent=15 // pred_fallthru
          _
        // Predicated region
        $region41: #{tpu_custom_call.1} parent=15 // pred_check
          %p533 = pneg %p222
        $region42: #{tpu_custom_call.1} parent=15 // pred_check_branch
          %535 = sbr.rel (%p533) target = $region44
        $region43: #{tpu_custom_call.1} parent=15 // pred_region
          %p536 = scmp.lt.s32.totalorder %s42, 1
          %s537 = scalar_select %p536, %s42, 1
          %s538 = scalar_lea.vmem %s6, %s537
        $region44: #{tpu_custom_call.1} parent=15 // pred_fallthru
          _
        // Predicated region
        $region45: #{tpu_custom_call.1} parent=15 // pred_check
          %p539 = pneg %p248
        $region46: #{tpu_custom_call.1} parent=15 // pred_check_branch
          %541 = sbr.rel (%p539) target = $region48
        $region47: #{tpu_custom_call.1} parent=15 // pred_region
          %p542 = scmp.lt.s32.totalorder %s42, 1
          %s543 = scalar_select %p542, %s42, 1
          %s544 = scalar_lea.vmem %s7, %s543
        $region48: #{tpu_custom_call.1} parent=15 // pred_fallthru
          _
        // Predicated region
        $region49: #{tpu_custom_call.1} parent=15 // pred_check
          %p545 = pneg %p274
        $region50: #{tpu_custom_call.1} parent=15 // pred_check_branch
          %547 = sbr.rel (%p545) target = $region52
        $region51: #{tpu_custom_call.1} parent=15 // pred_region
          %p548 = scmp.lt.s32.totalorder %s42, 1
          %s549 = scalar_select %p548, %s42, 1
          %s550 = scalar_lea.vmem %s8, %s549
        $region52: #{tpu_custom_call.1} parent=15 // pred_fallthru
          _
        // Predicated region
        $region53: #{tpu_custom_call.1} parent=15 // pred_check
          %p551 = pneg %p300
        $region54: #{tpu_custom_call.1} parent=15 // pred_check_branch
          %553 = sbr.rel (%p551) target = $region56
        $region55: #{tpu_custom_call.1} parent=15 // pred_region
          %s554 = sand.u32 %s34, 1
          %s555 = scalar_lea.sflag [#allocation13], %s554
          %s556 = sand.u32 %s290, 1
          %s557 = smul.addr %s556, 128
          %s558 = scalar_lea.vmem [#allocation12], %s557
          %s560 = ssub.s32 2048, 2048
          %561 = vsyncadd %s555, %s560
          %s562 = smul.addr %s42, 32
          %s563 = smul.addr %s562, 64
          %s564 = scalar_lea.hbm %s9, %s563
          %s565 = sshll.u32 %s558, 4
          %s566 = int_to_ptr.vmem [resolvable:$true] %s565
          %571 = dma.hbm_to_vmem [thread:$0]  %s564, 2048, %s566, %s555, 128, 128, 8
        $region56: #{tpu_custom_call.1} parent=15 // pred_fallthru
          _
        // Predicated region
        $region57: #{tpu_custom_call.1} parent=15 // pred_check
          %p572 = pneg %p326
        $region58: #{tpu_custom_call.1} parent=15 // pred_check_branch
          %574 = sbr.rel (%p572) target = $region60
        $region59: #{tpu_custom_call.1} parent=15 // pred_region
          %p575 = scmp.lt.s32.totalorder %s42, 1
          %s576 = scalar_select %p575, %s42, 1
          %s577 = smul.addr %s576, 2
          %s578 = scalar_lea.vmem %s10, %s577
        $region60: #{tpu_custom_call.1} parent=15 // pred_fallthru
          _
        // Predicated region
        $region61: #{tpu_custom_call.1} parent=15 // pred_check
          %p579 = pneg %p352
        $region62: #{tpu_custom_call.1} parent=15 // pred_check_branch
          %581 = sbr.rel (%p579) target = $region64
        $region63: #{tpu_custom_call.1} parent=15 // pred_region
          %s582 = sand.u32 %s34, 1
          %s583 = scalar_lea.sflag [#allocation13], %s582
          %s584 = sand.u32 %s342, 1
          %s585 = smul.addr %s584, 128
          %s586 = scalar_lea.vmem [#allocation14], %s585
          %s588 = ssub.s32 2048, 2048
          %589 = vsyncadd %s583, %s588
          %s590 = smul.addr %s42, 32
          %s591 = smul.addr %s590, 64
          %s592 = scalar_lea.hbm %s11, %s591
          %s593 = sshll.u32 %s586, 4
          %s594 = int_to_ptr.vmem [resolvable:$true] %s593
          %599 = dma.hbm_to_vmem [thread:$0]  %s592, 2048, %s594, %s583, 64, 64, 4
        $region64: #{tpu_custom_call.1} parent=15 // pred_fallthru
          _
        // Predicated region
        $region65: #{tpu_custom_call.1} parent=15 // pred_check
          %p600 = pneg %p378
        $region66: #{tpu_custom_call.1} parent=15 // pred_check_branch
          %602 = sbr.rel (%p600) target = $region68
        $region67: #{tpu_custom_call.1} parent=15 // pred_region
          %p603 = scmp.lt.s32.totalorder %s42, 1
          %s604 = scalar_select %p603, %s42, 1
          %s605 = scalar_lea.vmem %s12, %s604
        $region68: #{tpu_custom_call.1} parent=15 // pred_fallthru
          _
      $region16: #{tpu_custom_call.1} parent=5 // pred_fallthru
        _
      %p606 = scmp.le.s32.totalorder 1, %s34
      %p607 = scmp.lt.s32.totalorder %s34, 5
      %p608 = pnand %p606, %p607
      %p609 = pneg %p608
      // Predicated region
      $region69: #{tpu_custom_call.1} parent=5 // pred_check
        _
      $region70: #{tpu_custom_call.1} parent=5 // pred_check_branch
        %611 = sbr.rel (%p608) target = $region72
      $region71: #{tpu_custom_call.1} parent=5 // pred_region
        %s612 = ssub.s32 %s34, 1
        %s613 = sand.u32 %s59, 1
        %s614 = scalar_lea.sflag [#allocation4], %s613
        %s615 = sand.u32 %s59, 1
        %s616 = smul.addr %s615, 16
        %s617 = scalar_lea.vmem [#allocation3], %s616
        // Predicated region
        $region73: #{tpu_custom_call.1} parent=71 // pred_check
          %p618 = pneg %p72
        $region74: #{tpu_custom_call.1} parent=71 // pred_check_branch
          %620 = sbr.rel (%p618) target = $region76
        $region75: #{tpu_custom_call.1} parent=71 // pred_region
          %621 = dma.done %s614, 256
        $region76: #{tpu_custom_call.1} parent=71 // pred_fallthru
          _
        %s622 = sand.u32 %s39, 1
        %s623 = scalar_lea.sflag [#allocation7], %s622
        %s624 = sand.u32 %s85, 1
        %s625 = scalar_lea.vmem [#allocation6], %s624
        // Predicated region
        $region77: #{tpu_custom_call.1} parent=71 // pred_check
          %p626 = pneg %p98
        $region78: #{tpu_custom_call.1} parent=71 // pred_check_branch
          %628 = sbr.rel (%p626) target = $region80
        $region79: #{tpu_custom_call.1} parent=71 // pred_region
          %629 = dma.done %s623, 16
        $region80: #{tpu_custom_call.1} parent=71 // pred_fallthru
          _
        %s630 = sand.u32 %s39, 1
        %s631 = scalar_lea.sflag [#allocation7], %s630
        %s632 = sand.u32 %s111, 1
        %s633 = scalar_lea.vmem [#allocation8], %s632
        // Predicated region
        $region81: #{tpu_custom_call.1} parent=71 // pred_check
          %p634 = pneg %p124
        $region82: #{tpu_custom_call.1} parent=71 // pred_check_branch
          %636 = sbr.rel (%p634) target = $region84
        $region83: #{tpu_custom_call.1} parent=71 // pred_region
          %637 = dma.done %s631, 16
        $region84: #{tpu_custom_call.1} parent=71 // pred_fallthru
          _
        %s638 = sand.u32 %s39, 1
        %s639 = scalar_lea.sflag [#allocation10], %s638
        %s640 = sand.u32 %s137, 1
        %s641 = smul.addr %s640, 192
        %s642 = scalar_lea.vmem [#allocation9], %s641
        // Predicated region
        $region85: #{tpu_custom_call.1} parent=71 // pred_check
          %p643 = pneg %p150
        $region86: #{tpu_custom_call.1} parent=71 // pred_check_branch
          %645 = sbr.rel (%p643) target = $region88
        $region87: #{tpu_custom_call.1} parent=71 // pred_region
          %646 = dma.done %s639, 3072
        $region88: #{tpu_custom_call.1} parent=71 // pred_fallthru
          _
        %s647 = sand.u32 %s39, 1
        %s648 = scalar_lea.sflag [#allocation10], %s647
        %s649 = sand.u32 %s189, 1
        %s650 = smul.addr %s649, 64
        %s651 = scalar_lea.vmem [#allocation11], %s650
        // Predicated region
        $region89: #{tpu_custom_call.1} parent=71 // pred_check
          %p652 = pneg %p202
        $region90: #{tpu_custom_call.1} parent=71 // pred_check_branch
          %654 = sbr.rel (%p652) target = $region92
        $region91: #{tpu_custom_call.1} parent=71 // pred_region
          %655 = dma.done %s648, 1024
        $region92: #{tpu_custom_call.1} parent=71 // pred_fallthru
          _
        %s656 = sand.u32 %s39, 1
        %s657 = scalar_lea.sflag [#allocation13], %s656
        %s658 = sand.u32 %s293, 1
        %s659 = smul.addr %s658, 128
        %s660 = scalar_lea.vmem [#allocation12], %s659
        // Predicated region
        $region93: #{tpu_custom_call.1} parent=71 // pred_check
          %p661 = pneg %p306
        $region94: #{tpu_custom_call.1} parent=71 // pred_check_branch
          %663 = sbr.rel (%p661) target = $region96
        $region95: #{tpu_custom_call.1} parent=71 // pred_region
          %664 = dma.done %s657, 2048
        $region96: #{tpu_custom_call.1} parent=71 // pred_fallthru
          _
        %s665 = sand.u32 %s39, 1
        %s666 = scalar_lea.sflag [#allocation13], %s665
        %s667 = sand.u32 %s345, 1
        %s668 = smul.addr %s667, 128
        %s669 = scalar_lea.vmem [#allocation14], %s668
        // Predicated region
        $region97: #{tpu_custom_call.1} parent=71 // pred_check
          %p670 = pneg %p358
        $region98: #{tpu_custom_call.1} parent=71 // pred_check_branch
          %672 = sbr.rel (%p670) target = $region100
        $region99: #{tpu_custom_call.1} parent=71 // pred_region
          %673 = dma.done %s666, 2048
        $region100: #{tpu_custom_call.1} parent=71 // pred_fallthru
          _
        %s674 = sand.u32 %s59, 1
        %s675 = scalar_lea.sflag [#allocation4], %s674
        %s676 = sand.u32 %s59, 1
        %s677 = smul.addr %s676, 16
        %s678 = scalar_lea.vmem [#allocation3], %s677
        %p679 = pneg %p72
        %p680 = pneg %p69
        %s681 = sand.u32 %s39, 1
        %s682 = scalar_lea.sflag [#allocation7], %s681
        %s683 = sand.u32 %s85, 1
        %s684 = scalar_lea.vmem [#allocation6], %s683
        %p685 = pneg %p98
        %p686 = pneg %p95
        %s687 = sand.u32 %s39, 1
        %s688 = scalar_lea.sflag [#allocation7], %s687
        %s689 = sand.u32 %s111, 1
        %s690 = scalar_lea.vmem [#allocation8], %s689
        %p691 = pneg %p124
        %p692 = pneg %p121
        %s693 = sand.u32 %s39, 1
        %s694 = scalar_lea.sflag [#allocation10], %s693
        %s695 = sand.u32 %s137, 1
        %s696 = smul.addr %s695, 192
        %s697 = scalar_lea.vmem [#allocation9], %s696
        %p698 = pneg %p150
        %p699 = pneg %p147
        %p700 = scmp.lt.s32.totalorder %s44, 1
        %s701 = scalar_select %p700, %s44, 1
        %s702 = smul.addr %s701, 3
        %s703 = scalar_lea.vmem %s4, %s702
        %p704 = pneg %p176
        %p705 = pneg %p173
        %s706 = sand.u32 %s39, 1
        %s707 = scalar_lea.sflag [#allocation10], %s706
        %s708 = sand.u32 %s189, 1
        %s709 = smul.addr %s708, 64
        %s710 = scalar_lea.vmem [#allocation11], %s709
        %p711 = pneg %p202
        %p712 = pneg %p199
        %p713 = scmp.lt.s32.totalorder %s44, 1
        %s714 = scalar_select %p713, %s44, 1
        %s715 = scalar_lea.vmem %s6, %s714
        %p716 = pneg %p228
        %p717 = pneg %p225
        %p718 = scmp.lt.s32.totalorder %s44, 1
        %s719 = scalar_select %p718, %s44, 1
        %s720 = scalar_lea.vmem %s7, %s719
        %p721 = pneg %p254
        %p722 = pneg %p251
        %p723 = scmp.lt.s32.totalorder %s44, 1
        %s724 = scalar_select %p723, %s44, 1
        %s725 = scalar_lea.vmem %s8, %s724
        %p726 = pneg %p280
        %p727 = pneg %p277
        %s728 = sand.u32 %s39, 1
        %s729 = scalar_lea.sflag [#allocation13], %s728
        %s730 = sand.u32 %s293, 1
        %s731 = smul.addr %s730, 128
        %s732 = scalar_lea.vmem [#allocation12], %s731
        %p733 = pneg %p306
        %p734 = pneg %p303
        %p735 = scmp.lt.s32.totalorder %s44, 1
        %s736 = scalar_select %p735, %s44, 1
        %s737 = smul.addr %s736, 2
        %s738 = scalar_lea.vmem %s10, %s737
        %p739 = pneg %p332
        %p740 = pneg %p329
        %s741 = sand.u32 %s39, 1
        %s742 = scalar_lea.sflag [#allocation13], %s741
        %s743 = sand.u32 %s345, 1
        %s744 = smul.addr %s743, 128
        %s745 = scalar_lea.vmem [#allocation14], %s744
        %p746 = pneg %p358
        %p747 = pneg %p355
        %p748 = scmp.lt.s32.totalorder %s44, 1
        %s749 = scalar_select %p748, %s44, 1
        %s750 = scalar_lea.vmem %s12, %s749
        %p751 = pneg %p384
        %p752 = pneg %p381
        %p753 = pneg %p410
        %p754 = pneg %p407
        %s755 = sand.u32 %s397, 1
        %s756 = scalar_lea.sflag [#allocation5], %s755
        %s757 = sand.u32 %s397, 1
        %s758 = smul.addr %s757, 16
        %s759 = scalar_lea.vmem [#allocation15], %s758
        %p760 = scmp.lt.s32.totalorder %s44, 1
        %s761 = scalar_select %p760, %s44, 1
        %s762 = smul.addr %s761, 3
        %s763 = scalar_lea.vmem %s4, %s762
        %p764 = scmp.lt.s32.totalorder %s44, 1
        %s765 = scalar_select %p764, %s44, 1
        %s766 = scalar_lea.vmem %s6, %s765
        %p767 = scmp.lt.s32.totalorder %s44, 1
        %s768 = scalar_select %p767, %s44, 1
        %s769 = scalar_lea.vmem %s7, %s768
        %p770 = scmp.lt.s32.totalorder %s44, 1
        %s771 = scalar_select %p770, %s44, 1
        %s772 = scalar_lea.vmem %s8, %s771
        %p773 = scmp.lt.s32.totalorder %s44, 1
        %s774 = scalar_select %p773, %s44, 1
        %s775 = smul.addr %s774, 2
        %s776 = scalar_lea.vmem %s10, %s775
        %p777 = scmp.lt.s32.totalorder %s44, 1
        %s778 = scalar_select %p777, %s44, 1
        %s779 = scalar_lea.vmem %s12, %s778
        %p781 = scmp.eq.s32.totalorder %s44, 0
        // Predicated region
        $region101: #{tpu_custom_call.1} parent=71 // pred_check
          %p782 = pneg %p781
        $region102: #{tpu_custom_call.1} parent=71 // pred_check_branch
          %784 = sbr.rel (%p782) target = $region104
        $region103: #{tpu_custom_call.1} parent=71 // pred_region
          %v785 = vld [vmem:[%s617] sm:$0xff]
          %v786 = vld [vmem:[%s617 + $0x8] sm:$0xff]
          %787 = vst [vmem:[#allocation2] sm:$0xff] %v785
          %788 = vst [vmem:[#allocation2 + $0x8] sm:$0xff] %v786
        $region104: #{tpu_custom_call.1} parent=71 // pred_fallthru
          _
        %v789 = vld [vmem:[#allocation2] sm:$0xff]
        %v790 = vld [vmem:[#allocation2 + $0x8] sm:$0xff]
        %v791 = vld [vmem:[%s625] sm:$0x1]
        %v792 = vld [vmem:[%s633] sm:$0x1]
        %793 = vadd.xlane.f32.xlu0 %v789
        %v794 = vpop.xlane.xlu0 %793
        %795 = vadd.xlane.f32.xlu0 %v790
        %v796 = vpop.xlane.xlu0 %795
        %v797 = vrcp.pop 128.0
        %v798 = vmul.f32 %v794, %v797
        %v799 = vmul.f32 %v796, %v797
        %v800 = vsub.f32 %v789, %v798
        %v801 = vsub.f32 %v790, %v799
        %v802 = vmul.f32 %v800, %v800
        %v803 = vmul.f32 %v801, %v801
        %804 = vadd.xlane.f32.xlu0 %v802
        %v805 = vpop.xlane.xlu0 %804
        %806 = vadd.xlane.f32.xlu0 %v803
        %v807 = vpop.xlane.xlu0 %806
        %v808 = vmul.f32 %v805, %v797
        %v809 = vmul.f32 %v807, %v797
        %v810 = vadd.f32 %v808, 1e-05
        %v811 = vadd.f32 %v809, 1e-05
        %v812 = vrsqrt.pop %v810
        %v813 = vrsqrt.pop %v811
        %v814 = vmul.f32 %v800, %v812
        %v815 = vmul.f32 %v801, %v813
        %v817 = vlaneseq
        %v818 = vshrl.u32 %v817, 7
        %v819 = vsub.s32 0, %v818
        %v820 = vrot.slane %v791, %v819
        %v822 = vmul.f32 %v814, %v820
        %v823 = vmul.f32 %v815, %v820
        %v825 = vlaneseq
        %v826 = vshrl.u32 %v825, 7
        %v827 = vsub.s32 0, %v826
        %v828 = vrot.slane %v792, %v827
        %v830 = vadd.f32 %v822, %v828
        %v831 = vadd.f32 %v823, %v828
        %v832 = vpack.c.bf16 %v831, %v830
        %v833 = vld [vmem:[%s642] sm:$0xff]
        %v834 = vld [vmem:[%s642 + $0x8] sm:$0xf]
        %v835 = vld [vmem:[%s642 + $0xc] sm:$0xff]
        %v836 = vld [vmem:[%s642 + $0x14] sm:$0xf]
        %v837 = vld [vmem:[%s642 + $0x18] sm:$0xff]
        %v838 = vld [vmem:[%s642 + $0x20] sm:$0xf]
        %v839 = vld [vmem:[%s642 + $0x24] sm:$0xff]
        %v840 = vld [vmem:[%s642 + $0x2c] sm:$0xf]
        %v841 = vld [vmem:[%s642 + $0x30] sm:$0xff]
        %v842 = vld [vmem:[%s642 + $0x38] sm:$0xf]
        %v843 = vld [vmem:[%s642 + $0x3c] sm:$0xff]
        %v844 = vld [vmem:[%s642 + $0x44] sm:$0xf]
        %v845 = vld [vmem:[%s642 + $0x48] sm:$0xff]
        %v846 = vld [vmem:[%s642 + $0x50] sm:$0xf]
        %v847 = vld [vmem:[%s642 + $0x54] sm:$0xff]
        %v848 = vld [vmem:[%s642 + $0x5c] sm:$0xf]
        %v849 = vld [vmem:[%s642 + $0x60] sm:$0xff]
        %v850 = vld [vmem:[%s642 + $0x68] sm:$0xf]
        %v851 = vld [vmem:[%s642 + $0x6c] sm:$0xff]
        %v852 = vld [vmem:[%s642 + $0x74] sm:$0xf]
        %v853 = vld [vmem:[%s642 + $0x78] sm:$0xff]
        %v854 = vld [vmem:[%s642 + $0x80] sm:$0xf]
        %v855 = vld [vmem:[%s642 + $0x84] sm:$0xff]
        %v856 = vld [vmem:[%s642 + $0x8c] sm:$0xf]
        %v857 = vld [vmem:[%s642 + $0x90] sm:$0xff]
        %v858 = vld [vmem:[%s642 + $0x98] sm:$0xf]
        %v859 = vld [vmem:[%s642 + $0x9c] sm:$0xff]
        %v860 = vld [vmem:[%s642 + $0xa4] sm:$0xf]
        %v861 = vld [vmem:[%s642 + $0xa8] sm:$0xff]
        %v862 = vld [vmem:[%s642 + $0xb0] sm:$0xf]
        %v863 = vld [vmem:[%s642 + $0xb4] sm:$0xff]
        %v864 = vld [vmem:[%s642 + $0xbc] sm:$0xf]
        %v865 = vld [vmem:[%s763] sm:$0x7]
        %v867 = vlaneseq
        %v868 = vshrl.u32 %v867, 7
        %v869 = vsub.s32 0, %v868
        %v870 = vrot.slane %v865, %v869
        %v871 = vlaneseq
        %v872 = vshrl.u32 %v871, 7
        %v873 = vsub.s32 1, %v872
        %v874 = vrot.slane %v865, %v873
        %v875 = vlaneseq
        %v876 = vshrl.u32 %v875, 7
        %v877 = vsub.s32 2, %v876
        %v878 = vrot.slane %v865, %v877
        %v914 = vunpack.c.l.b16 %v833
        %v915 = vunpack.c.h.b16 %v833
        %v916 = vunpack.c.l.b16 %v834
        %v917 = vunpack.c.l.b16 %v835
        %v918 = vunpack.c.h.b16 %v835
        %v919 = vunpack.c.l.b16 %v836
        %v920 = vunpack.c.l.b16 %v837
        %v921 = vunpack.c.h.b16 %v837
        %v922 = vunpack.c.l.b16 %v838
        %v923 = vunpack.c.l.b16 %v839
        %v924 = vunpack.c.h.b16 %v839
        %v925 = vunpack.c.l.b16 %v840
        %v926 = vunpack.c.l.b16 %v841
        %v927 = vunpack.c.h.b16 %v841
        %v928 = vunpack.c.l.b16 %v842
        %v929 = vunpack.c.l.b16 %v843
        %v930 = vunpack.c.h.b16 %v843
        %v931 = vunpack.c.l.b16 %v844
        %v932 = vunpack.c.l.b16 %v845
        %v933 = vunpack.c.h.b16 %v845
        %v934 = vunpack.c.l.b16 %v846
        %v935 = vunpack.c.l.b16 %v847
        %v936 = vunpack.c.h.b16 %v847
        %v937 = vunpack.c.l.b16 %v848
        %v938 = vunpack.c.l.b16 %v849
        %v939 = vunpack.c.h.b16 %v849
        %v940 = vunpack.c.l.b16 %v850
        %v941 = vunpack.c.l.b16 %v851
        %v942 = vunpack.c.h.b16 %v851
        %v943 = vunpack.c.l.b16 %v852
        %v944 = vunpack.c.l.b16 %v853
        %v945 = vunpack.c.h.b16 %v853
        %v946 = vunpack.c.l.b16 %v854
        %v947 = vunpack.c.l.b16 %v855
        %v948 = vunpack.c.h.b16 %v855
        %v949 = vunpack.c.l.b16 %v856
        %v950 = vunpack.c.l.b16 %v857
        %v951 = vunpack.c.h.b16 %v857
        %v952 = vunpack.c.l.b16 %v858
        %v953 = vunpack.c.l.b16 %v859
        %v954 = vunpack.c.h.b16 %v859
        %v955 = vunpack.c.l.b16 %v860
        %v956 = vunpack.c.l.b16 %v861
        %v957 = vunpack.c.h.b16 %v861
        %v958 = vunpack.c.l.b16 %v862
        %v959 = vunpack.c.l.b16 %v863
        %v960 = vunpack.c.h.b16 %v863
        %v961 = vunpack.c.l.b16 %v864
        %v962 = vpack.c.b16 %v917, %v914
        %v963 = vpack.c.b16 %v918, %v915
        %v964 = vpack.c.b16 %v919, %v916
        %v965 = vpack.c.b16 %v923, %v920
        %v966 = vpack.c.b16 %v924, %v921
        %v967 = vpack.c.b16 %v925, %v922
        %v968 = vpack.c.b16 %v929, %v926
        %v969 = vpack.c.b16 %v930, %v927
        %v970 = vpack.c.b16 %v931, %v928
        %v971 = vpack.c.b16 %v935, %v932
        %v972 = vpack.c.b16 %v936, %v933
        %v973 = vpack.c.b16 %v937, %v934
        %v974 = vpack.c.b16 %v941, %v938
        %v975 = vpack.c.b16 %v942, %v939
        %v976 = vpack.c.b16 %v943, %v940
        %v977 = vpack.c.b16 %v947, %v944
        %v978 = vpack.c.b16 %v948, %v945
        %v979 = vpack.c.b16 %v949, %v946
        %v980 = vpack.c.b16 %v953, %v950
        %v981 = vpack.c.b16 %v954, %v951
        %v982 = vpack.c.b16 %v955, %v952
        %v983 = vpack.c.b16 %v959, %v956
        %v984 = vpack.c.b16 %v960, %v957
        %v985 = vpack.c.b16 %v961, %v958
        %1010 = vmatprep.subr.bf16.mxu0 %v963
        %1011 = vmatpush1.bf16.msra.mxu0 %v962
        %1012 = vmatprep.subr.bf16.mxu0 %v966
        %1013 = vmatpush1.bf16.msra.mxu0 %v965
        %1014 = vmatprep.subr.bf16.mxu0 %v969
        %1015 = vmatpush1.bf16.msra.mxu0 %v968
        %1016 = vmatprep.subr.bf16.mxu0 %v972
        %1017 = vmatpush1.bf16.msra.mxu0 %v971
        %1018 = vmatprep.subr.bf16.mxu0 %v975
        %1019 = vmatpush1.bf16.msra.mxu0 %v974
        %1020 = vmatprep.subr.bf16.mxu0 %v978
        %1021 = vmatpush1.bf16.msra.mxu0 %v977
        %1022 = vmatprep.subr.bf16.mxu0 %v981
        %1023 = vmatpush1.bf16.msra.mxu0 %v980
        %1024 = vmatprep.subr.bf16.mxu0 %v984
        %1025 = vmatpush1.bf16.msra.mxu0 %v983
        %1026 = vmatprep.subr.bf16.mxu0 0
        %1027 = vmatpush1.bf16.msra.mxu0 0
        %1028 = vmatprep.subr.bf16.mxu0 0
        %1029 = vmatpush1.bf16.msra.mxu0 0
        %1030 = vmatprep.subr.bf16.mxu0 0
        %1031 = vmatpush1.bf16.msra.mxu0 0
        %1032 = vmatprep.subr.bf16.mxu0 0
        %1033 = vmatpush1.bf16.msra.mxu0 0
        %1034 = vmatprep.subr.bf16.mxu0 0
        %1035 = vmatpush1.bf16.msra.mxu0 0
        %1036 = vmatprep.subr.bf16.mxu0 0
        %1037 = vmatpush1.bf16.msra.mxu0 0
        %1038 = vmatprep.subr.bf16.mxu0 0
        %1039 = vmatpush1.bf16.msra.mxu0 0
        %1040 = vmatprep.subr.bf16.mxu0 0
        %1041 = vmatpush1.bf16.msra.mxu0 0
        %1042 = vmatprep.mubr.bf16.mxu0 0
        %1043 = vmatmul.mubr.bf16.gmra.mrb[0].mxu0 %v832
        %v1044 = vpop.f32.mrb[0].mxu0
        %v1045 = vadd.f32 %v870, %v1044
        %v1046 = vpop.f32.mrb[0].mxu0
        %v1047 = vadd.f32 %v874, %v1046
        %v1048 = vpop.f32.mrb[0].mxu0
        %v1049 = vadd.f32 %v870, %v1048
        %v1050 = vpop.f32.mrb[0].mxu0
        %v1051 = vadd.f32 %v874, %v1050
        %1052 = vdwg.mxu0
        %1053 = vmatprep.subr.bf16.mxu0 0
        %1054 = vmatpush1.bf16.msra.mxu0 %v964
        %1055 = vmatprep.subr.bf16.mxu0 0
        %1056 = vmatpush1.bf16.msra.mxu0 %v967
        %1057 = vmatprep.subr.bf16.mxu0 0
        %1058 = vmatpush1.bf16.msra.mxu0 %v970
        %1059 = vmatprep.subr.bf16.mxu0 0
        %1060 = vmatpush1.bf16.msra.mxu0 %v973
        %1061 = vmatprep.subr.bf16.mxu0 0
        %1062 = vmatpush1.bf16.msra.mxu0 %v976
        %1063 = vmatprep.subr.bf16.mxu0 0
        %1064 = vmatpush1.bf16.msra.mxu0 %v979
        %1065 = vmatprep.subr.bf16.mxu0 0
        %1066 = vmatpush1.bf16.msra.mxu0 %v982
        %1067 = vmatprep.subr.bf16.mxu0 0
        %1068 = vmatpush1.bf16.msra.mxu0 %v985
        %1069 = vmatprep.subr.bf16.mxu0 0
        %1070 = vmatpush1.bf16.msra.mxu0 0
        %1071 = vmatprep.subr.bf16.mxu0 0
        %1072 = vmatpush1.bf16.msra.mxu0 0
        %1073 = vmatprep.subr.bf16.mxu0 0
        %1074 = vmatpush1.bf16.msra.mxu0 0
        %1075 = vmatprep.subr.bf16.mxu0 0
        %1076 = vmatpush1.bf16.msra.mxu0 0
        %1077 = vmatprep.subr.bf16.mxu0 0
        %1078 = vmatpush1.bf16.msra.mxu0 0
        %1079 = vmatprep.subr.bf16.mxu0 0
        %1080 = vmatpush1.bf16.msra.mxu0 0
        %1081 = vmatprep.subr.bf16.mxu0 0
        %1082 = vmatpush1.bf16.msra.mxu0 0
        %1083 = vmatprep.subr.bf16.mxu0 0
        %1084 = vmatpush1.bf16.msra.mxu0 0
        %1085 = vmatprep.mubr.bf16.mxu0 0
        %1086 = vmatmul.mubr.bf16.gmra.mrb[0].mxu0 %v832
        %v1087 = vpop.f32.mrb[0].mxu0
        %v1088 = vadd.f32 %v878, %v1087
        %v1089 = vpop.f32.mrb[0].mxu0
        %v1090 = vpop.f32.mrb[0].mxu0
        %v1091 = vadd.f32 %v878, %v1090
        %v1092 = vpop.f32.mrb[0].mxu0
        %1093 = vdwg.mxu0
        %v1094 = vmul.f32 %v1045, 0.17677669
        %v1095 = vmul.f32 %v1049, 0.17677669
        %1098 = vrot.lane.b32.xlu0 %v1094, 96
        %v1099 = vpop.permute.xlu0 %1098
        %1100 = vrot.lane.b32.xlu0 %v1095, 96
        %v1101 = vpop.permute.xlu0 %1100
        %1104 = vrot.lane.b32.xlu0 %v1094, 64
        %v1105 = vpop.permute.xlu0 %1104
        %1106 = vrot.lane.b32.xlu0 %v1095, 64
        %v1107 = vpop.permute.xlu0 %1106
        %1110 = vrot.lane.b32.xlu0 %v1094, 32
        %v1111 = vpop.permute.xlu0 %1110
        %1112 = vrot.lane.b32.xlu0 %v1095, 32
        %v1113 = vpop.permute.xlu0 %1112
        %v1116 = vcombine.low %v1094, %v1105
        %v1117 = vcombine.high %v1094, %v1105
        %v1119 = vunpack.c.l.s4 1983009808
        %v1120 = vunpack.c.0.s8 %v1119
        %v1121 = vlaneseq
        %v1122 = vshrl.u32 %v1121, 7
        %v1123 = vsub.s32 %v1120, %v1122
        %v1124 = vrot.slane %v1116, %v1123
        %v1126 = vunpack.c.l.s4 1983009808
        %v1127 = vunpack.c.0.s8 %v1126
        %v1128 = vlaneseq
        %v1129 = vshrl.u32 %v1128, 7
        %v1130 = vsub.s32 %v1127, %v1129
        %v1131 = vrot.slane %v1117, %v1130
        %v1132 = vcombine.low %v1099, %v1111
        %v1133 = vcombine.high %v1099, %v1111
        %v1135 = vunpack.c.l.s4 1983009808
        %v1136 = vunpack.c.0.s8 %v1135
        %v1137 = vlaneseq
        %v1138 = vshrl.u32 %v1137, 7
        %v1139 = vsub.s32 %v1136, %v1138
        %v1140 = vrot.slane %v1132, %v1139
        %v1142 = vunpack.c.l.s4 1983009808
        %v1143 = vunpack.c.0.s8 %v1142
        %v1144 = vlaneseq
        %v1145 = vshrl.u32 %v1144, 7
        %v1146 = vsub.s32 %v1143, %v1145
        %v1147 = vrot.slane %v1133, %v1146
        %v1148 = vcombine.low %v1124, %v1140
        %v1149 = vcombine.high %v1124, %v1140
        %v1151 = vunpack.c.l.s4 1934713408
        %v1152 = vunpack.c.0.s8 %v1151
        %v1153 = vlaneseq
        %v1154 = vshrl.u32 %v1153, 7
        %v1155 = vsub.s32 %v1152, %v1154
        %v1156 = vrot.slane %v1148, %v1155
        %v1158 = vunpack.c.l.s4 1934713408
        %v1159 = vunpack.c.0.s8 %v1158
        %v1160 = vlaneseq
        %v1161 = vshrl.u32 %v1160, 7
        %v1162 = vsub.s32 %v1159, %v1161
        %v1163 = vrot.slane %v1149, %v1162
        %v1164 = vcombine.low %v1131, %v1147
        %v1165 = vcombine.high %v1131, %v1147
        %v1167 = vunpack.c.l.s4 1934713408
        %v1168 = vunpack.c.0.s8 %v1167
        %v1169 = vlaneseq
        %v1170 = vshrl.u32 %v1169, 7
        %v1171 = vsub.s32 %v1168, %v1170
        %v1172 = vrot.slane %v1164, %v1171
        %v1174 = vunpack.c.l.s4 1934713408
        %v1175 = vunpack.c.0.s8 %v1174
        %v1176 = vlaneseq
        %v1177 = vshrl.u32 %v1176, 7
        %v1178 = vsub.s32 %v1175, %v1177
        %v1179 = vrot.slane %v1165, %v1178
        %v1180 = vcombine.high %v1156, 0.0
        %v1181 = vcombine.high %v1163, 0.0
        %v1182 = vcombine.high %v1172, 0.0
        %v1183 = vcombine.high %v1179, 0.0
        %v1184 = vcombine.low %v1095, %v1107
        %v1185 = vcombine.high %v1095, %v1107
        %v1187 = vunpack.c.l.s4 1983009808
        %v1188 = vunpack.c.0.s8 %v1187
        %v1189 = vlaneseq
        %v1190 = vshrl.u32 %v1189, 7
        %v1191 = vsub.s32 %v1188, %v1190
        %v1192 = vrot.slane %v1184, %v1191
        %v1194 = vunpack.c.l.s4 1983009808
        %v1195 = vunpack.c.0.s8 %v1194
        %v1196 = vlaneseq
        %v1197 = vshrl.u32 %v1196, 7
        %v1198 = vsub.s32 %v1195, %v1197
        %v1199 = vrot.slane %v1185, %v1198
        %v1200 = vcombine.low %v1101, %v1113
        %v1201 = vcombine.high %v1101, %v1113
        %v1203 = vunpack.c.l.s4 1983009808
        %v1204 = vunpack.c.0.s8 %v1203
        %v1205 = vlaneseq
        %v1206 = vshrl.u32 %v1205, 7
        %v1207 = vsub.s32 %v1204, %v1206
        %v1208 = vrot.slane %v1200, %v1207
        %v1210 = vunpack.c.l.s4 1983009808
        %v1211 = vunpack.c.0.s8 %v1210
        %v1212 = vlaneseq
        %v1213 = vshrl.u32 %v1212, 7
        %v1214 = vsub.s32 %v1211, %v1213
        %v1215 = vrot.slane %v1201, %v1214
        %v1216 = vcombine.low %v1192, %v1208
        %v1217 = vcombine.high %v1192, %v1208
        %v1219 = vunpack.c.l.s4 1934713408
        %v1220 = vunpack.c.0.s8 %v1219
        %v1221 = vlaneseq
        %v1222 = vshrl.u32 %v1221, 7
        %v1223 = vsub.s32 %v1220, %v1222
        %v1224 = vrot.slane %v1216, %v1223
        %v1226 = vunpack.c.l.s4 1934713408
        %v1227 = vunpack.c.0.s8 %v1226
        %v1228 = vlaneseq
        %v1229 = vshrl.u32 %v1228, 7
        %v1230 = vsub.s32 %v1227, %v1229
        %v1231 = vrot.slane %v1217, %v1230
        %v1232 = vcombine.low %v1199, %v1215
        %v1233 = vcombine.high %v1199, %v1215
        %v1235 = vunpack.c.l.s4 1934713408
        %v1236 = vunpack.c.0.s8 %v1235
        %v1237 = vlaneseq
        %v1238 = vshrl.u32 %v1237, 7
        %v1239 = vsub.s32 %v1236, %v1238
        %v1240 = vrot.slane %v1232, %v1239
        %v1242 = vunpack.c.l.s4 1934713408
        %v1243 = vunpack.c.0.s8 %v1242
        %v1244 = vlaneseq
        %v1245 = vshrl.u32 %v1244, 7
        %v1246 = vsub.s32 %v1243, %v1245
        %v1247 = vrot.slane %v1233, %v1246
        %v1248 = vcombine.high %v1224, 0.0
        %v1249 = vcombine.high %v1231, 0.0
        %v1250 = vcombine.high %v1240, 0.0
        %v1251 = vcombine.high %v1247, 0.0
        %v1252 = vcombine.low %v1156, %v1163
        %v1254 = vunpack.c.l.s4 1983009808
        %v1255 = vunpack.c.0.s8 %v1254
        %v1256 = vlaneseq
        %v1257 = vshrl.u32 %v1256, 7
        %v1258 = vsub.s32 %v1255, %v1257
        %v1259 = vrot.slane %v1252, %v1258
        %v1260 = vcombine.low %v1180, %v1181
        %v1262 = vunpack.c.l.s4 1983009808
        %v1263 = vunpack.c.0.s8 %v1262
        %v1264 = vlaneseq
        %v1265 = vshrl.u32 %v1264, 7
        %v1266 = vsub.s32 %v1263, %v1265
        %v1267 = vrot.slane %v1260, %v1266
        %v1268 = vcombine.low %v1172, %v1179
        %v1270 = vunpack.c.l.s4 1983009808
        %v1271 = vunpack.c.0.s8 %v1270
        %v1272 = vlaneseq
        %v1273 = vshrl.u32 %v1272, 7
        %v1274 = vsub.s32 %v1271, %v1273
        %v1275 = vrot.slane %v1268, %v1274
        %v1276 = vcombine.low %v1182, %v1183
        %v1278 = vunpack.c.l.s4 1983009808
        %v1279 = vunpack.c.0.s8 %v1278
        %v1280 = vlaneseq
        %v1281 = vshrl.u32 %v1280, 7
        %v1282 = vsub.s32 %v1279, %v1281
        %v1283 = vrot.slane %v1276, %v1282
        %v1284 = vcombine.low %v1259, %v1267
        %v1285 = vcombine.high %v1259, %v1267
        %v1287 = vunpack.c.l.s4 1934713408
        %v1288 = vunpack.c.0.s8 %v1287
        %v1289 = vlaneseq
        %v1290 = vshrl.u32 %v1289, 7
        %v1291 = vsub.s32 %v1288, %v1290
        %v1292 = vrot.slane %v1284, %v1291
        %v1294 = vunpack.c.l.s4 1934713408
        %v1295 = vunpack.c.0.s8 %v1294
        %v1296 = vlaneseq
        %v1297 = vshrl.u32 %v1296, 7
        %v1298 = vsub.s32 %v1295, %v1297
        %v1299 = vrot.slane %v1285, %v1298
        %v1300 = vcombine.low %v1275, %v1283
        %v1301 = vcombine.high %v1275, %v1283
        %v1303 = vunpack.c.l.s4 1934713408
        %v1304 = vunpack.c.0.s8 %v1303
        %v1305 = vlaneseq
        %v1306 = vshrl.u32 %v1305, 7
        %v1307 = vsub.s32 %v1304, %v1306
        %v1308 = vrot.slane %v1300, %v1307
        %v1310 = vunpack.c.l.s4 1934713408
        %v1311 = vunpack.c.0.s8 %v1310
        %v1312 = vlaneseq
        %v1313 = vshrl.u32 %v1312, 7
        %v1314 = vsub.s32 %v1311, %v1313
        %v1315 = vrot.slane %v1301, %v1314
        %v1316 = vcombine.low %v1292, %v1308
        %v1317 = vcombine.high %v1292, %v1308
        %v1318 = vcombine.low %v1299, %v1315
        %v1319 = vcombine.high %v1299, %v1315
        %v1320 = vcombine.low %v1224, %v1231
        %v1322 = vunpack.c.l.s4 1983009808
        %v1323 = vunpack.c.0.s8 %v1322
        %v1324 = vlaneseq
        %v1325 = vshrl.u32 %v1324, 7
        %v1326 = vsub.s32 %v1323, %v1325
        %v1327 = vrot.slane %v1320, %v1326
        %v1328 = vcombine.low %v1248, %v1249
        %v1330 = vunpack.c.l.s4 1983009808
        %v1331 = vunpack.c.0.s8 %v1330
        %v1332 = vlaneseq
        %v1333 = vshrl.u32 %v1332, 7
        %v1334 = vsub.s32 %v1331, %v1333
        %v1335 = vrot.slane %v1328, %v1334
        %v1336 = vcombine.low %v1240, %v1247
        %v1338 = vunpack.c.l.s4 1983009808
        %v1339 = vunpack.c.0.s8 %v1338
        %v1340 = vlaneseq
        %v1341 = vshrl.u32 %v1340, 7
        %v1342 = vsub.s32 %v1339, %v1341
        %v1343 = vrot.slane %v1336, %v1342
        %v1344 = vcombine.low %v1250, %v1251
        %v1346 = vunpack.c.l.s4 1983009808
        %v1347 = vunpack.c.0.s8 %v1346
        %v1348 = vlaneseq
        %v1349 = vshrl.u32 %v1348, 7
        %v1350 = vsub.s32 %v1347, %v1349
        %v1351 = vrot.slane %v1344, %v1350
        %v1352 = vcombine.low %v1327, %v1335
        %v1353 = vcombine.high %v1327, %v1335
        %v1355 = vunpack.c.l.s4 1934713408
        %v1356 = vunpack.c.0.s8 %v1355
        %v1357 = vlaneseq
        %v1358 = vshrl.u32 %v1357, 7
        %v1359 = vsub.s32 %v1356, %v1358
        %v1360 = vrot.slane %v1352, %v1359
        %v1362 = vunpack.c.l.s4 1934713408
        %v1363 = vunpack.c.0.s8 %v1362
        %v1364 = vlaneseq
        %v1365 = vshrl.u32 %v1364, 7
        %v1366 = vsub.s32 %v1363, %v1365
        %v1367 = vrot.slane %v1353, %v1366
        %v1368 = vcombine.low %v1343, %v1351
        %v1369 = vcombine.high %v1343, %v1351
        %v1371 = vunpack.c.l.s4 1934713408
        %v1372 = vunpack.c.0.s8 %v1371
        %v1373 = vlaneseq
        %v1374 = vshrl.u32 %v1373, 7
        %v1375 = vsub.s32 %v1372, %v1374
        %v1376 = vrot.slane %v1368, %v1375
        %v1378 = vunpack.c.l.s4 1934713408
        %v1379 = vunpack.c.0.s8 %v1378
        %v1380 = vlaneseq
        %v1381 = vshrl.u32 %v1380, 7
        %v1382 = vsub.s32 %v1379, %v1381
        %v1383 = vrot.slane %v1369, %v1382
        %v1384 = vcombine.low %v1360, %v1376
        %v1385 = vcombine.high %v1360, %v1376
        %v1386 = vcombine.low %v1367, %v1383
        %v1387 = vcombine.high %v1367, %v1383
        %v1388 = vpack.c.bf16 %v1384, %v1316
        %v1389 = vpack.c.bf16 %v1385, %v1317
        %v1390 = vpack.c.bf16 %v1386, %v1318
        %v1391 = vpack.c.bf16 %v1387, %v1319
        %1394 = vrot.lane.b32.xlu0 %v1047, 96
        %v1395 = vpop.permute.xlu0 %1394
        %1396 = vrot.lane.b32.xlu0 %v1051, 96
        %v1397 = vpop.permute.xlu0 %1396
        %1400 = vrot.lane.b32.xlu0 %v1047, 64
        %v1401 = vpop.permute.xlu0 %1400
        %1402 = vrot.lane.b32.xlu0 %v1051, 64
        %v1403 = vpop.permute.xlu0 %1402
        %1406 = vrot.lane.b32.xlu0 %v1047, 32
        %v1407 = vpop.permute.xlu0 %1406
        %1408 = vrot.lane.b32.xlu0 %v1051, 32
        %v1409 = vpop.permute.xlu0 %1408
        %v1412 = vcombine.low %v1047, %v1401
        %v1413 = vcombine.high %v1047, %v1401
        %v1415 = vunpack.c.l.s4 1983009808
        %v1416 = vunpack.c.0.s8 %v1415
        %v1417 = vlaneseq
        %v1418 = vshrl.u32 %v1417, 7
        %v1419 = vsub.s32 %v1416, %v1418
        %v1420 = vrot.slane %v1412, %v1419
        %v1422 = vunpack.c.l.s4 1983009808
        %v1423 = vunpack.c.0.s8 %v1422
        %v1424 = vlaneseq
        %v1425 = vshrl.u32 %v1424, 7
        %v1426 = vsub.s32 %v1423, %v1425
        %v1427 = vrot.slane %v1413, %v1426
        %v1428 = vcombine.low %v1395, %v1407
        %v1429 = vcombine.high %v1395, %v1407
        %v1431 = vunpack.c.l.s4 1983009808
        %v1432 = vunpack.c.0.s8 %v1431
        %v1433 = vlaneseq
        %v1434 = vshrl.u32 %v1433, 7
        %v1435 = vsub.s32 %v1432, %v1434
        %v1436 = vrot.slane %v1428, %v1435
        %v1438 = vunpack.c.l.s4 1983009808
        %v1439 = vunpack.c.0.s8 %v1438
        %v1440 = vlaneseq
        %v1441 = vshrl.u32 %v1440, 7
        %v1442 = vsub.s32 %v1439, %v1441
        %v1443 = vrot.slane %v1429, %v1442
        %v1444 = vcombine.low %v1420, %v1436
        %v1445 = vcombine.high %v1420, %v1436
        %v1447 = vunpack.c.l.s4 1934713408
        %v1448 = vunpack.c.0.s8 %v1447
        %v1449 = vlaneseq
        %v1450 = vshrl.u32 %v1449, 7
        %v1451 = vsub.s32 %v1448, %v1450
        %v1452 = vrot.slane %v1444, %v1451
        %v1454 = vunpack.c.l.s4 1934713408
        %v1455 = vunpack.c.0.s8 %v1454
        %v1456 = vlaneseq
        %v1457 = vshrl.u32 %v1456, 7
        %v1458 = vsub.s32 %v1455, %v1457
        %v1459 = vrot.slane %v1445, %v1458
        %v1460 = vcombine.low %v1427, %v1443
        %v1461 = vcombine.high %v1427, %v1443
        %v1463 = vunpack.c.l.s4 1934713408
        %v1464 = vunpack.c.0.s8 %v1463
        %v1465 = vlaneseq
        %v1466 = vshrl.u32 %v1465, 7
        %v1467 = vsub.s32 %v1464, %v1466
        %v1468 = vrot.slane %v1460, %v1467
        %v1470 = vunpack.c.l.s4 1934713408
        %v1471 = vunpack.c.0.s8 %v1470
        %v1472 = vlaneseq
        %v1473 = vshrl.u32 %v1472, 7
        %v1474 = vsub.s32 %v1471, %v1473
        %v1475 = vrot.slane %v1461, %v1474
        %v1476 = vcombine.high %v1452, 0.0
        %v1477 = vcombine.high %v1459, 0.0
        %v1478 = vcombine.high %v1468, 0.0
        %v1479 = vcombine.high %v1475, 0.0
        %v1480 = vcombine.low %v1051, %v1403
        %v1481 = vcombine.high %v1051, %v1403
        %v1483 = vunpack.c.l.s4 1983009808
        %v1484 = vunpack.c.0.s8 %v1483
        %v1485 = vlaneseq
        %v1486 = vshrl.u32 %v1485, 7
        %v1487 = vsub.s32 %v1484, %v1486
        %v1488 = vrot.slane %v1480, %v1487
        %v1490 = vunpack.c.l.s4 1983009808
        %v1491 = vunpack.c.0.s8 %v1490
        %v1492 = vlaneseq
        %v1493 = vshrl.u32 %v1492, 7
        %v1494 = vsub.s32 %v1491, %v1493
        %v1495 = vrot.slane %v1481, %v1494
        %v1496 = vcombine.low %v1397, %v1409
        %v1497 = vcombine.high %v1397, %v1409
        %v1499 = vunpack.c.l.s4 1983009808
        %v1500 = vunpack.c.0.s8 %v1499
        %v1501 = vlaneseq
        %v1502 = vshrl.u32 %v1501, 7
        %v1503 = vsub.s32 %v1500, %v1502
        %v1504 = vrot.slane %v1496, %v1503
        %v1506 = vunpack.c.l.s4 1983009808
        %v1507 = vunpack.c.0.s8 %v1506
        %v1508 = vlaneseq
        %v1509 = vshrl.u32 %v1508, 7
        %v1510 = vsub.s32 %v1507, %v1509
        %v1511 = vrot.slane %v1497, %v1510
        %v1512 = vcombine.low %v1488, %v1504
        %v1513 = vcombine.high %v1488, %v1504
        %v1515 = vunpack.c.l.s4 1934713408
        %v1516 = vunpack.c.0.s8 %v1515
        %v1517 = vlaneseq
        %v1518 = vshrl.u32 %v1517, 7
        %v1519 = vsub.s32 %v1516, %v1518
        %v1520 = vrot.slane %v1512, %v1519
        %v1522 = vunpack.c.l.s4 1934713408
        %v1523 = vunpack.c.0.s8 %v1522
        %v1524 = vlaneseq
        %v1525 = vshrl.u32 %v1524, 7
        %v1526 = vsub.s32 %v1523, %v1525
        %v1527 = vrot.slane %v1513, %v1526
        %v1528 = vcombine.low %v1495, %v1511
        %v1529 = vcombine.high %v1495, %v1511
        %v1531 = vunpack.c.l.s4 1934713408
        %v1532 = vunpack.c.0.s8 %v1531
        %v1533 = vlaneseq
        %v1534 = vshrl.u32 %v1533, 7
        %v1535 = vsub.s32 %v1532, %v1534
        %v1536 = vrot.slane %v1528, %v1535
        %v1538 = vunpack.c.l.s4 1934713408
        %v1539 = vunpack.c.0.s8 %v1538
        %v1540 = vlaneseq
        %v1541 = vshrl.u32 %v1540, 7
        %v1542 = vsub.s32 %v1539, %v1541
        %v1543 = vrot.slane %v1529, %v1542
        %v1544 = vcombine.high %v1520, 0.0
        %v1545 = vcombine.high %v1527, 0.0
        %v1546 = vcombine.high %v1536, 0.0
        %v1547 = vcombine.high %v1543, 0.0
        %v1548 = vcombine.low %v1452, %v1459
        %v1550 = vunpack.c.l.s4 1983009808
        %v1551 = vunpack.c.0.s8 %v1550
        %v1552 = vlaneseq
        %v1553 = vshrl.u32 %v1552, 7
        %v1554 = vsub.s32 %v1551, %v1553
        %v1555 = vrot.slane %v1548, %v1554
        %v1556 = vcombine.low %v1476, %v1477
        %v1558 = vunpack.c.l.s4 1983009808
        %v1559 = vunpack.c.0.s8 %v1558
        %v1560 = vlaneseq
        %v1561 = vshrl.u32 %v1560, 7
        %v1562 = vsub.s32 %v1559, %v1561
        %v1563 = vrot.slane %v1556, %v1562
        %v1564 = vcombine.low %v1468, %v1475
        %v1566 = vunpack.c.l.s4 1983009808
        %v1567 = vunpack.c.0.s8 %v1566
        %v1568 = vlaneseq
        %v1569 = vshrl.u32 %v1568, 7
        %v1570 = vsub.s32 %v1567, %v1569
        %v1571 = vrot.slane %v1564, %v1570
        %v1572 = vcombine.low %v1478, %v1479
        %v1574 = vunpack.c.l.s4 1983009808
        %v1575 = vunpack.c.0.s8 %v1574
        %v1576 = vlaneseq
        %v1577 = vshrl.u32 %v1576, 7
        %v1578 = vsub.s32 %v1575, %v1577
        %v1579 = vrot.slane %v1572, %v1578
        %v1580 = vcombine.low %v1555, %v1563
        %v1581 = vcombine.high %v1555, %v1563
        %v1583 = vunpack.c.l.s4 1934713408
        %v1584 = vunpack.c.0.s8 %v1583
        %v1585 = vlaneseq
        %v1586 = vshrl.u32 %v1585, 7
        %v1587 = vsub.s32 %v1584, %v1586
        %v1588 = vrot.slane %v1580, %v1587
        %v1590 = vunpack.c.l.s4 1934713408
        %v1591 = vunpack.c.0.s8 %v1590
        %v1592 = vlaneseq
        %v1593 = vshrl.u32 %v1592, 7
        %v1594 = vsub.s32 %v1591, %v1593
        %v1595 = vrot.slane %v1581, %v1594
        %v1596 = vcombine.low %v1571, %v1579
        %v1597 = vcombine.high %v1571, %v1579
        %v1599 = vunpack.c.l.s4 1934713408
        %v1600 = vunpack.c.0.s8 %v1599
        %v1601 = vlaneseq
        %v1602 = vshrl.u32 %v1601, 7
        %v1603 = vsub.s32 %v1600, %v1602
        %v1604 = vrot.slane %v1596, %v1603
        %v1606 = vunpack.c.l.s4 1934713408
        %v1607 = vunpack.c.0.s8 %v1606
        %v1608 = vlaneseq
        %v1609 = vshrl.u32 %v1608, 7
        %v1610 = vsub.s32 %v1607, %v1609
        %v1611 = vrot.slane %v1597, %v1610
        %v1612 = vcombine.low %v1588, %v1604
        %v1613 = vcombine.high %v1588, %v1604
        %v1614 = vcombine.low %v1595, %v1611
        %v1615 = vcombine.high %v1595, %v1611
        %v1616 = vcombine.low %v1520, %v1527
        %v1618 = vunpack.c.l.s4 1983009808
        %v1619 = vunpack.c.0.s8 %v1618
        %v1620 = vlaneseq
        %v1621 = vshrl.u32 %v1620, 7
        %v1622 = vsub.s32 %v1619, %v1621
        %v1623 = vrot.slane %v1616, %v1622
        %v1624 = vcombine.low %v1544, %v1545
        %v1626 = vunpack.c.l.s4 1983009808
        %v1627 = vunpack.c.0.s8 %v1626
        %v1628 = vlaneseq
        %v1629 = vshrl.u32 %v1628, 7
        %v1630 = vsub.s32 %v1627, %v1629
        %v1631 = vrot.slane %v1624, %v1630
        %v1632 = vcombine.low %v1536, %v1543
        %v1634 = vunpack.c.l.s4 1983009808
        %v1635 = vunpack.c.0.s8 %v1634
        %v1636 = vlaneseq
        %v1637 = vshrl.u32 %v1636, 7
        %v1638 = vsub.s32 %v1635, %v1637
        %v1639 = vrot.slane %v1632, %v1638
        %v1640 = vcombine.low %v1546, %v1547
        %v1642 = vunpack.c.l.s4 1983009808
        %v1643 = vunpack.c.0.s8 %v1642
        %v1644 = vlaneseq
        %v1645 = vshrl.u32 %v1644, 7
        %v1646 = vsub.s32 %v1643, %v1645
        %v1647 = vrot.slane %v1640, %v1646
        %v1648 = vcombine.low %v1623, %v1631
        %v1649 = vcombine.high %v1623, %v1631
        %v1651 = vunpack.c.l.s4 1934713408
        %v1652 = vunpack.c.0.s8 %v1651
        %v1653 = vlaneseq
        %v1654 = vshrl.u32 %v1653, 7
        %v1655 = vsub.s32 %v1652, %v1654
        %v1656 = vrot.slane %v1648, %v1655
        %v1658 = vunpack.c.l.s4 1934713408
        %v1659 = vunpack.c.0.s8 %v1658
        %v1660 = vlaneseq
        %v1661 = vshrl.u32 %v1660, 7
        %v1662 = vsub.s32 %v1659, %v1661
        %v1663 = vrot.slane %v1649, %v1662
        %v1664 = vcombine.low %v1639, %v1647
        %v1665 = vcombine.high %v1639, %v1647
        %v1667 = vunpack.c.l.s4 1934713408
        %v1668 = vunpack.c.0.s8 %v1667
        %v1669 = vlaneseq
        %v1670 = vshrl.u32 %v1669, 7
        %v1671 = vsub.s32 %v1668, %v1670
        %v1672 = vrot.slane %v1664, %v1671
        %v1674 = vunpack.c.l.s4 1934713408
        %v1675 = vunpack.c.0.s8 %v1674
        %v1676 = vlaneseq
        %v1677 = vshrl.u32 %v1676, 7
        %v1678 = vsub.s32 %v1675, %v1677
        %v1679 = vrot.slane %v1665, %v1678
        %v1680 = vcombine.low %v1656, %v1672
        %v1681 = vcombine.high %v1656, %v1672
        %v1682 = vcombine.low %v1663, %v1679
        %v1683 = vcombine.high %v1663, %v1679
        %v1684 = vpack.c.bf16 %v1680, %v1612
        %v1685 = vpack.c.bf16 %v1681, %v1613
        %v1686 = vpack.c.bf16 %v1682, %v1614
        %v1687 = vpack.c.bf16 %v1683, %v1615
        %1690 = vrot.lane.b32.xlu0 %v1088, 96
        %v1691 = vpop.permute.xlu0 %1690
        %1692 = vrot.lane.b32.xlu0 %v1091, 96
        %v1693 = vpop.permute.xlu0 %1692
        %1696 = vrot.lane.b32.xlu0 %v1088, 64
        %v1697 = vpop.permute.xlu0 %1696
        %1698 = vrot.lane.b32.xlu0 %v1091, 64
        %v1699 = vpop.permute.xlu0 %1698
        %1702 = vrot.lane.b32.xlu0 %v1088, 32
        %v1703 = vpop.permute.xlu0 %1702
        %1704 = vrot.lane.b32.xlu0 %v1091, 32
        %v1705 = vpop.permute.xlu0 %1704
        %v1708 = vcombine.low %v1088, %v1697
        %v1709 = vcombine.high %v1088, %v1697
        %v1711 = vunpack.c.l.s4 1983009808
        %v1712 = vunpack.c.0.s8 %v1711
        %v1713 = vlaneseq
        %v1714 = vshrl.u32 %v1713, 7
        %v1715 = vsub.s32 %v1712, %v1714
        %v1716 = vrot.slane %v1708, %v1715
        %v1718 = vunpack.c.l.s4 1983009808
        %v1719 = vunpack.c.0.s8 %v1718
        %v1720 = vlaneseq
        %v1721 = vshrl.u32 %v1720, 7
        %v1722 = vsub.s32 %v1719, %v1721
        %v1723 = vrot.slane %v1709, %v1722
        %v1724 = vcombine.low %v1691, %v1703
        %v1725 = vcombine.high %v1691, %v1703
        %v1727 = vunpack.c.l.s4 1983009808
        %v1728 = vunpack.c.0.s8 %v1727
        %v1729 = vlaneseq
        %v1730 = vshrl.u32 %v1729, 7
        %v1731 = vsub.s32 %v1728, %v1730
        %v1732 = vrot.slane %v1724, %v1731
        %v1734 = vunpack.c.l.s4 1983009808
        %v1735 = vunpack.c.0.s8 %v1734
        %v1736 = vlaneseq
        %v1737 = vshrl.u32 %v1736, 7
        %v1738 = vsub.s32 %v1735, %v1737
        %v1739 = vrot.slane %v1725, %v1738
        %v1740 = vcombine.low %v1716, %v1732
        %v1741 = vcombine.high %v1716, %v1732
        %v1743 = vunpack.c.l.s4 1934713408
        %v1744 = vunpack.c.0.s8 %v1743
        %v1745 = vlaneseq
        %v1746 = vshrl.u32 %v1745, 7
        %v1747 = vsub.s32 %v1744, %v1746
        %v1748 = vrot.slane %v1740, %v1747
        %v1750 = vunpack.c.l.s4 1934713408
        %v1751 = vunpack.c.0.s8 %v1750
        %v1752 = vlaneseq
        %v1753 = vshrl.u32 %v1752, 7
        %v1754 = vsub.s32 %v1751, %v1753
        %v1755 = vrot.slane %v1741, %v1754
        %v1756 = vcombine.low %v1723, %v1739
        %v1757 = vcombine.high %v1723, %v1739
        %v1759 = vunpack.c.l.s4 1934713408
        %v1760 = vunpack.c.0.s8 %v1759
        %v1761 = vlaneseq
        %v1762 = vshrl.u32 %v1761, 7
        %v1763 = vsub.s32 %v1760, %v1762
        %v1764 = vrot.slane %v1756, %v1763
        %v1766 = vunpack.c.l.s4 1934713408
        %v1767 = vunpack.c.0.s8 %v1766
        %v1768 = vlaneseq
        %v1769 = vshrl.u32 %v1768, 7
        %v1770 = vsub.s32 %v1767, %v1769
        %v1771 = vrot.slane %v1757, %v1770
        %v1772 = vcombine.high %v1748, 0.0
        %v1773 = vcombine.high %v1755, 0.0
        %v1774 = vcombine.high %v1764, 0.0
        %v1775 = vcombine.high %v1771, 0.0
        %v1776 = vcombine.low %v1091, %v1699
        %v1777 = vcombine.high %v1091, %v1699
        %v1779 = vunpack.c.l.s4 1983009808
        %v1780 = vunpack.c.0.s8 %v1779
        %v1781 = vlaneseq
        %v1782 = vshrl.u32 %v1781, 7
        %v1783 = vsub.s32 %v1780, %v1782
        %v1784 = vrot.slane %v1776, %v1783
        %v1786 = vunpack.c.l.s4 1983009808
        %v1787 = vunpack.c.0.s8 %v1786
        %v1788 = vlaneseq
        %v1789 = vshrl.u32 %v1788, 7
        %v1790 = vsub.s32 %v1787, %v1789
        %v1791 = vrot.slane %v1777, %v1790
        %v1792 = vcombine.low %v1693, %v1705
        %v1793 = vcombine.high %v1693, %v1705
        %v1795 = vunpack.c.l.s4 1983009808
        %v1796 = vunpack.c.0.s8 %v1795
        %v1797 = vlaneseq
        %v1798 = vshrl.u32 %v1797, 7
        %v1799 = vsub.s32 %v1796, %v1798
        %v1800 = vrot.slane %v1792, %v1799
        %v1802 = vunpack.c.l.s4 1983009808
        %v1803 = vunpack.c.0.s8 %v1802
        %v1804 = vlaneseq
        %v1805 = vshrl.u32 %v1804, 7
        %v1806 = vsub.s32 %v1803, %v1805
        %v1807 = vrot.slane %v1793, %v1806
        %v1808 = vcombine.low %v1784, %v1800
        %v1809 = vcombine.high %v1784, %v1800
        %v1811 = vunpack.c.l.s4 1934713408
        %v1812 = vunpack.c.0.s8 %v1811
        %v1813 = vlaneseq
        %v1814 = vshrl.u32 %v1813, 7
        %v1815 = vsub.s32 %v1812, %v1814
        %v1816 = vrot.slane %v1808, %v1815
        %v1818 = vunpack.c.l.s4 1934713408
        %v1819 = vunpack.c.0.s8 %v1818
        %v1820 = vlaneseq
        %v1821 = vshrl.u32 %v1820, 7
        %v1822 = vsub.s32 %v1819, %v1821
        %v1823 = vrot.slane %v1809, %v1822
        %v1824 = vcombine.low %v1791, %v1807
        %v1825 = vcombine.high %v1791, %v1807
        %v1827 = vunpack.c.l.s4 1934713408
        %v1828 = vunpack.c.0.s8 %v1827
        %v1829 = vlaneseq
        %v1830 = vshrl.u32 %v1829, 7
        %v1831 = vsub.s32 %v1828, %v1830
        %v1832 = vrot.slane %v1824, %v1831
        %v1834 = vunpack.c.l.s4 1934713408
        %v1835 = vunpack.c.0.s8 %v1834
        %v1836 = vlaneseq
        %v1837 = vshrl.u32 %v1836, 7
        %v1838 = vsub.s32 %v1835, %v1837
        %v1839 = vrot.slane %v1825, %v1838
        %v1840 = vcombine.high %v1816, 0.0
        %v1841 = vcombine.high %v1823, 0.0
        %v1842 = vcombine.high %v1832, 0.0
        %v1843 = vcombine.high %v1839, 0.0
        %v1844 = vcombine.low %v1748, %v1755
        %v1846 = vunpack.c.l.s4 1983009808
        %v1847 = vunpack.c.0.s8 %v1846
        %v1848 = vlaneseq
        %v1849 = vshrl.u32 %v1848, 7
        %v1850 = vsub.s32 %v1847, %v1849
        %v1851 = vrot.slane %v1844, %v1850
        %v1852 = vcombine.low %v1772, %v1773
        %v1854 = vunpack.c.l.s4 1983009808
        %v1855 = vunpack.c.0.s8 %v1854
        %v1856 = vlaneseq
        %v1857 = vshrl.u32 %v1856, 7
        %v1858 = vsub.s32 %v1855, %v1857
        %v1859 = vrot.slane %v1852, %v1858
        %v1860 = vcombine.low %v1764, %v1771
        %v1862 = vunpack.c.l.s4 1983009808
        %v1863 = vunpack.c.0.s8 %v1862
        %v1864 = vlaneseq
        %v1865 = vshrl.u32 %v1864, 7
        %v1866 = vsub.s32 %v1863, %v1865
        %v1867 = vrot.slane %v1860, %v1866
        %v1868 = vcombine.low %v1774, %v1775
        %v1870 = vunpack.c.l.s4 1983009808
        %v1871 = vunpack.c.0.s8 %v1870
        %v1872 = vlaneseq
        %v1873 = vshrl.u32 %v1872, 7
        %v1874 = vsub.s32 %v1871, %v1873
        %v1875 = vrot.slane %v1868, %v1874
        %v1876 = vcombine.low %v1851, %v1859
        %v1877 = vcombine.high %v1851, %v1859
        %v1879 = vunpack.c.l.s4 1934713408
        %v1880 = vunpack.c.0.s8 %v1879
        %v1881 = vlaneseq
        %v1882 = vshrl.u32 %v1881, 7
        %v1883 = vsub.s32 %v1880, %v1882
        %v1884 = vrot.slane %v1876, %v1883
        %v1886 = vunpack.c.l.s4 1934713408
        %v1887 = vunpack.c.0.s8 %v1886
        %v1888 = vlaneseq
        %v1889 = vshrl.u32 %v1888, 7
        %v1890 = vsub.s32 %v1887, %v1889
        %v1891 = vrot.slane %v1877, %v1890
        %v1892 = vcombine.low %v1867, %v1875
        %v1893 = vcombine.high %v1867, %v1875
        %v1895 = vunpack.c.l.s4 1934713408
        %v1896 = vunpack.c.0.s8 %v1895
        %v1897 = vlaneseq
        %v1898 = vshrl.u32 %v1897, 7
        %v1899 = vsub.s32 %v1896, %v1898
        %v1900 = vrot.slane %v1892, %v1899
        %v1902 = vunpack.c.l.s4 1934713408
        %v1903 = vunpack.c.0.s8 %v1902
        %v1904 = vlaneseq
        %v1905 = vshrl.u32 %v1904, 7
        %v1906 = vsub.s32 %v1903, %v1905
        %v1907 = vrot.slane %v1893, %v1906
        %v1908 = vcombine.low %v1884, %v1900
        %v1909 = vcombine.high %v1884, %v1900
        %v1910 = vcombine.low %v1891, %v1907
        %v1911 = vcombine.high %v1891, %v1907
        %v1912 = vcombine.low %v1816, %v1823
        %v1914 = vunpack.c.l.s4 1983009808
        %v1915 = vunpack.c.0.s8 %v1914
        %v1916 = vlaneseq
        %v1917 = vshrl.u32 %v1916, 7
        %v1918 = vsub.s32 %v1915, %v1917
        %v1919 = vrot.slane %v1912, %v1918
        %v1920 = vcombine.low %v1840, %v1841
        %v1922 = vunpack.c.l.s4 1983009808
        %v1923 = vunpack.c.0.s8 %v1922
        %v1924 = vlaneseq
        %v1925 = vshrl.u32 %v1924, 7
        %v1926 = vsub.s32 %v1923, %v1925
        %v1927 = vrot.slane %v1920, %v1926
        %v1928 = vcombine.low %v1832, %v1839
        %v1930 = vunpack.c.l.s4 1983009808
        %v1931 = vunpack.c.0.s8 %v1930
        %v1932 = vlaneseq
        %v1933 = vshrl.u32 %v1932, 7
        %v1934 = vsub.s32 %v1931, %v1933
        %v1935 = vrot.slane %v1928, %v1934
        %v1936 = vcombine.low %v1842, %v1843
        %v1938 = vunpack.c.l.s4 1983009808
        %v1939 = vunpack.c.0.s8 %v1938
        %v1940 = vlaneseq
        %v1941 = vshrl.u32 %v1940, 7
        %v1942 = vsub.s32 %v1939, %v1941
        %v1943 = vrot.slane %v1936, %v1942
        %v1944 = vcombine.low %v1919, %v1927
        %v1945 = vcombine.high %v1919, %v1927
        %v1947 = vunpack.c.l.s4 1934713408
        %v1948 = vunpack.c.0.s8 %v1947
        %v1949 = vlaneseq
        %v1950 = vshrl.u32 %v1949, 7
        %v1951 = vsub.s32 %v1948, %v1950
        %v1952 = vrot.slane %v1944, %v1951
        %v1954 = vunpack.c.l.s4 1934713408
        %v1955 = vunpack.c.0.s8 %v1954
        %v1956 = vlaneseq
        %v1957 = vshrl.u32 %v1956, 7
        %v1958 = vsub.s32 %v1955, %v1957
        %v1959 = vrot.slane %v1945, %v1958
        %v1960 = vcombine.low %v1935, %v1943
        %v1961 = vcombine.high %v1935, %v1943
        %v1963 = vunpack.c.l.s4 1934713408
        %v1964 = vunpack.c.0.s8 %v1963
        %v1965 = vlaneseq
        %v1966 = vshrl.u32 %v1965, 7
        %v1967 = vsub.s32 %v1964, %v1966
        %v1968 = vrot.slane %v1960, %v1967
        %v1970 = vunpack.c.l.s4 1934713408
        %v1971 = vunpack.c.0.s8 %v1970
        %v1972 = vlaneseq
        %v1973 = vshrl.u32 %v1972, 7
        %v1974 = vsub.s32 %v1971, %v1973
        %v1975 = vrot.slane %v1961, %v1974
        %v1976 = vcombine.low %v1952, %v1968
        %v1977 = vcombine.high %v1952, %v1968
        %v1978 = vcombine.low %v1959, %v1975
        %v1979 = vcombine.high %v1959, %v1975
        %v1980 = vpack.c.bf16 %v1976, %v1908
        %v1981 = vpack.c.bf16 %v1977, %v1909
        %v1982 = vpack.c.bf16 %v1978, %v1910
        %v1983 = vpack.c.bf16 %v1979, %v1911
        %vm1984 = vcmask 261120
        %v1986 = vsel %vm1984, %v1388, 0
        %v1989 = vsel %vm1984, %v1684, 0
        %1991 = vmatprep.subr.bf16.mxu0 0
        %1992 = vmatpush1.bf16.xpose.msra.mxu0 %v1989
        %1993 = vmatprep.subr.bf16.mxu0 0
        %1994 = vmatpush1.bf16.xpose.msra.mxu0 0
        %1995 = vmatprep.subr.bf16.mxu0 0
        %1996 = vmatpush1.bf16.xpose.msra.mxu0 0
        %1997 = vmatprep.subr.bf16.mxu0 0
        %1998 = vmatpush1.bf16.xpose.msra.mxu0 0
        %1999 = vmatprep.subr.bf16.mxu0 0
        %2000 = vmatpush1.bf16.xpose.msra.mxu0 0
        %2001 = vmatprep.subr.bf16.mxu0 0
        %2002 = vmatpush1.bf16.xpose.msra.mxu0 0
        %2003 = vmatprep.subr.bf16.mxu0 0
        %2004 = vmatpush1.bf16.xpose.msra.mxu0 0
        %2005 = vmatprep.subr.bf16.mxu0 0
        %2006 = vmatpush1.bf16.xpose.msra.mxu0 0
        %2007 = vmatprep.subr.bf16.mxu0 0
        %2008 = vmatpush1.bf16.xpose.msra.mxu0 0
        %2009 = vmatprep.subr.bf16.mxu0 0
        %2010 = vmatpush1.bf16.xpose.msra.mxu0 0
        %2011 = vmatprep.subr.bf16.mxu0 0
        %2012 = vmatpush1.bf16.xpose.msra.mxu0 0
        %2013 = vmatprep.subr.bf16.mxu0 0
        %2014 = vmatpush1.bf16.xpose.msra.mxu0 0
        %2015 = vmatprep.subr.bf16.mxu0 0
        %2016 = vmatpush1.bf16.xpose.msra.mxu0 0
        %2017 = vmatprep.subr.bf16.mxu0 0
        %2018 = vmatpush1.bf16.xpose.msra.mxu0 0
        %2019 = vmatprep.subr.bf16.mxu0 0
        %2020 = vmatpush1.bf16.xpose.msra.mxu0 0
        %2021 = vmatprep.subr.bf16.mxu0 0
        %2022 = vmatpush1.bf16.xpose.msra.mxu0 0
        %2023 = vmatprep.mubr.bf16.mxu0 0
        %2024 = vmatmul.mubr.bf16.gmra.mrb[0].mxu0 %v1986
        %v2025 = vpop.f32.mrb[0].mxu0
        %v2026 = vadd.f32 0.0, %v2025
        %v2027 = vpop.f32.mrb[0].mxu0
        %v2028 = vpop.f32.mrb[0].mxu0
        %v2029 = vadd.f32 0.0, %v2028
        %v2030 = vpop.f32.mrb[0].mxu0
        %2031 = vdwg.mxu0
        %v2033 = vsel %vm1984, %v1389, 0
        %v2036 = vsel %vm1984, %v1685, 0
        %2038 = vmatprep.subr.bf16.mxu0 0
        %2039 = vmatpush1.bf16.xpose.msra.mxu0 %v2036
        %2040 = vmatprep.subr.bf16.mxu0 0
        %2041 = vmatpush1.bf16.xpose.msra.mxu0 0
        %2042 = vmatprep.subr.bf16.mxu0 0
        %2043 = vmatpush1.bf16.xpose.msra.mxu0 0
        %2044 = vmatprep.subr.bf16.mxu0 0
        %2045 = vmatpush1.bf16.xpose.msra.mxu0 0
        %2046 = vmatprep.subr.bf16.mxu0 0
        %2047 = vmatpush1.bf16.xpose.msra.mxu0 0
        %2048 = vmatprep.subr.bf16.mxu0 0
        %2049 = vmatpush1.bf16.xpose.msra.mxu0 0
        %2050 = vmatprep.subr.bf16.mxu0 0
        %2051 = vmatpush1.bf16.xpose.msra.mxu0 0
        %2052 = vmatprep.subr.bf16.mxu0 0
        %2053 = vmatpush1.bf16.xpose.msra.mxu0 0
        %2054 = vmatprep.subr.bf16.mxu0 0
        %2055 = vmatpush1.bf16.xpose.msra.mxu0 0
        %2056 = vmatprep.subr.bf16.mxu0 0
        %2057 = vmatpush1.bf16.xpose.msra.mxu0 0
        %2058 = vmatprep.subr.bf16.mxu0 0
        %2059 = vmatpush1.bf16.xpose.msra.mxu0 0
        %2060 = vmatprep.subr.bf16.mxu0 0
        %2061 = vmatpush1.bf16.xpose.msra.mxu0 0
        %2062 = vmatprep.subr.bf16.mxu0 0
        %2063 = vmatpush1.bf16.xpose.msra.mxu0 0
        %2064 = vmatprep.subr.bf16.mxu0 0
        %2065 = vmatpush1.bf16.xpose.msra.mxu0 0
        %2066 = vmatprep.subr.bf16.mxu0 0
        %2067 = vmatpush1.bf16.xpose.msra.mxu0 0
        %2068 = vmatprep.subr.bf16.mxu0 0
        %2069 = vmatpush1.bf16.xpose.msra.mxu0 0
        %2070 = vmatprep.mubr.bf16.mxu0 0
        %2071 = vmatmul.mubr.bf16.gmra.mrb[0].mxu0 %v2033
        %v2072 = vpop.f32.mrb[0].mxu0
        %v2073 = vadd.f32 0.0, %v2072
        %v2074 = vpop.f32.mrb[0].mxu0
        %v2075 = vpop.f32.mrb[0].mxu0
        %v2076 = vadd.f32 0.0, %v2075
        %v2077 = vpop.f32.mrb[0].mxu0
        %2078 = vdwg.mxu0
        %v2080 = vsel %vm1984, %v1390, 0
        %v2083 = vsel %vm1984, %v1686, 0
        %2085 = vmatprep.subr.bf16.mxu0 0
        %2086 = vmatpush1.bf16.xpose.msra.mxu0 %v2083
        %2087 = vmatprep.subr.bf16.mxu0 0
        %2088 = vmatpush1.bf16.xpose.msra.mxu0 0
        %2089 = vmatprep.subr.bf16.mxu0 0
        %2090 = vmatpush1.bf16.xpose.msra.mxu0 0
        %2091 = vmatprep.subr.bf16.mxu0 0
        %2092 = vmatpush1.bf16.xpose.msra.mxu0 0
        %2093 = vmatprep.subr.bf16.mxu0 0
        %2094 = vmatpush1.bf16.xpose.msra.mxu0 0
        %2095 = vmatprep.subr.bf16.mxu0 0
        %2096 = vmatpush1.bf16.xpose.msra.mxu0 0
        %2097 = vmatprep.subr.bf16.mxu0 0
        %2098 = vmatpush1.bf16.xpose.msra.mxu0 0
        %2099 = vmatprep.subr.bf16.mxu0 0
        %2100 = vmatpush1.bf16.xpose.msra.mxu0 0
        %2101 = vmatprep.subr.bf16.mxu0 0
        %2102 = vmatpush1.bf16.xpose.msra.mxu0 0
        %2103 = vmatprep.subr.bf16.mxu0 0
        %2104 = vmatpush1.bf16.xpose.msra.mxu0 0
        %2105 = vmatprep.subr.bf16.mxu0 0
        %2106 = vmatpush1.bf16.xpose.msra.mxu0 0
        %2107 = vmatprep.subr.bf16.mxu0 0
        %2108 = vmatpush1.bf16.xpose.msra.mxu0 0
        %2109 = vmatprep.subr.bf16.mxu0 0
        %2110 = vmatpush1.bf16.xpose.msra.mxu0 0
        %2111 = vmatprep.subr.bf16.mxu0 0
        %2112 = vmatpush1.bf16.xpose.msra.mxu0 0
        %2113 = vmatprep.subr.bf16.mxu0 0
        %2114 = vmatpush1.bf16.xpose.msra.mxu0 0
        %2115 = vmatprep.subr.bf16.mxu0 0
        %2116 = vmatpush1.bf16.xpose.msra.mxu0 0
        %2117 = vmatprep.mubr.bf16.mxu0 0
        %2118 = vmatmul.mubr.bf16.gmra.mrb[0].mxu0 %v2080
        %v2119 = vpop.f32.mrb[0].mxu0
        %v2120 = vadd.f32 0.0, %v2119
        %v2121 = vpop.f32.mrb[0].mxu0
        %v2122 = vpop.f32.mrb[0].mxu0
        %v2123 = vadd.f32 0.0, %v2122
        %v2124 = vpop.f32.mrb[0].mxu0
        %2125 = vdwg.mxu0
        %v2127 = vsel %vm1984, %v1391, 0
        %v2130 = vsel %vm1984, %v1687, 0
        %2132 = vmatprep.subr.bf16.mxu0 0
        %2133 = vmatpush1.bf16.xpose.msra.mxu0 %v2130
        %2134 = vmatprep.subr.bf16.mxu0 0
        %2135 = vmatpush1.bf16.xpose.msra.mxu0 0
        %2136 = vmatprep.subr.bf16.mxu0 0
        %2137 = vmatpush1.bf16.xpose.msra.mxu0 0
        %2138 = vmatprep.subr.bf16.mxu0 0
        %2139 = vmatpush1.bf16.xpose.msra.mxu0 0
        %2140 = vmatprep.subr.bf16.mxu0 0
        %2141 = vmatpush1.bf16.xpose.msra.mxu0 0
        %2142 = vmatprep.subr.bf16.mxu0 0
        %2143 = vmatpush1.bf16.xpose.msra.mxu0 0
        %2144 = vmatprep.subr.bf16.mxu0 0
        %2145 = vmatpush1.bf16.xpose.msra.mxu0 0
        %2146 = vmatprep.subr.bf16.mxu0 0
        %2147 = vmatpush1.bf16.xpose.msra.mxu0 0
        %2148 = vmatprep.subr.bf16.mxu0 0
        %2149 = vmatpush1.bf16.xpose.msra.mxu0 0
        %2150 = vmatprep.subr.bf16.mxu0 0
        %2151 = vmatpush1.bf16.xpose.msra.mxu0 0
        %2152 = vmatprep.subr.bf16.mxu0 0
        %2153 = vmatpush1.bf16.xpose.msra.mxu0 0
        %2154 = vmatprep.subr.bf16.mxu0 0
        %2155 = vmatpush1.bf16.xpose.msra.mxu0 0
        %2156 = vmatprep.subr.bf16.mxu0 0
        %2157 = vmatpush1.bf16.xpose.msra.mxu0 0
        %2158 = vmatprep.subr.bf16.mxu0 0
        %2159 = vmatpush1.bf16.xpose.msra.mxu0 0
        %2160 = vmatprep.subr.bf16.mxu0 0
        %2161 = vmatpush1.bf16.xpose.msra.mxu0 0
        %2162 = vmatprep.subr.bf16.mxu0 0
        %2163 = vmatpush1.bf16.xpose.msra.mxu0 0
        %2164 = vmatprep.mubr.bf16.mxu0 0
        %2165 = vmatmul.mubr.bf16.gmra.mrb[0].mxu0 %v2127
        %v2166 = vpop.f32.mrb[0].mxu0
        %v2167 = vadd.f32 0.0, %v2166
        %v2168 = vpop.f32.mrb[0].mxu0
        %v2169 = vpop.f32.mrb[0].mxu0
        %v2170 = vadd.f32 0.0, %v2169
        %v2171 = vpop.f32.mrb[0].mxu0
        %2172 = vdwg.mxu0
        %vm2173 = vcmask 130048
        %v2174 = vsel %vm2173, %v2026, -inf
        %2175 = vmax.xlane.f32.xlu0 %v2174
        %v2176 = vpop.xlane.xlu0 %2175
        %v2177 = vsel %vm2173, %v2029, -inf
        %2178 = vmax.xlane.f32.xlu0 %v2177
        %v2179 = vpop.xlane.xlu0 %2178
        %v2180 = vsel %vm2173, %v2073, -inf
        %2181 = vmax.xlane.f32.xlu0 %v2180
        %v2182 = vpop.xlane.xlu0 %2181
        %v2183 = vsel %vm2173, %v2076, -inf
        %2184 = vmax.xlane.f32.xlu0 %v2183
        %v2185 = vpop.xlane.xlu0 %2184
        %v2186 = vsel %vm2173, %v2120, -inf
        %2187 = vmax.xlane.f32.xlu0 %v2186
        %v2188 = vpop.xlane.xlu0 %2187
        %v2189 = vsel %vm2173, %v2123, -inf
        %2190 = vmax.xlane.f32.xlu0 %v2189
        %v2191 = vpop.xlane.xlu0 %2190
        %v2192 = vsel %vm2173, %v2167, -inf
        %2193 = vmax.xlane.f32.xlu0 %v2192
        %v2194 = vpop.xlane.xlu0 %2193
        %v2195 = vsel %vm2173, %v2170, -inf
        %2196 = vmax.xlane.f32.xlu0 %v2195
        %v2197 = vpop.xlane.xlu0 %2196
        %v2198 = vsub.f32 %v2026, %v2176
        %v2199 = vsub.f32 %v2029, %v2179
        %v2200 = vsub.f32 %v2073, %v2182
        %v2201 = vsub.f32 %v2076, %v2185
        %v2202 = vsub.f32 %v2120, %v2188
        %v2203 = vsub.f32 %v2123, %v2191
        %v2204 = vsub.f32 %v2167, %v2194
        %v2205 = vsub.f32 %v2170, %v2197
        %v2206 = vmul.f32 %v2198, 1.442695
        %v2207 = vpow.pop %v2206
        %v2208 = vmul.f32 %v2199, 1.442695
        %v2209 = vpow.pop %v2208
        %v2210 = vmul.f32 %v2200, 1.442695
        %v2211 = vpow.pop %v2210
        %v2212 = vmul.f32 %v2201, 1.442695
        %v2213 = vpow.pop %v2212
        %v2214 = vmul.f32 %v2202, 1.442695
        %v2215 = vpow.pop %v2214
        %v2216 = vmul.f32 %v2203, 1.442695
        %v2217 = vpow.pop %v2216
        %v2218 = vmul.f32 %v2204, 1.442695
        %v2219 = vpow.pop %v2218
        %v2220 = vmul.f32 %v2205, 1.442695
        %v2221 = vpow.pop %v2220
        %v2222 = vsel %vm2173, %v2207, 0.0
        %2223 = vadd.xlane.f32.xlu0 %v2222
        %v2224 = vpop.xlane.xlu0 %2223
        %v2225 = vsel %vm2173, %v2209, 0.0
        %2226 = vadd.xlane.f32.xlu0 %v2225
        %v2227 = vpop.xlane.xlu0 %2226
        %v2228 = vsel %vm2173, %v2211, 0.0
        %2229 = vadd.xlane.f32.xlu0 %v2228
        %v2230 = vpop.xlane.xlu0 %2229
        %v2231 = vsel %vm2173, %v2213, 0.0
        %2232 = vadd.xlane.f32.xlu0 %v2231
        %v2233 = vpop.xlane.xlu0 %2232
        %v2234 = vsel %vm2173, %v2215, 0.0
        %2235 = vadd.xlane.f32.xlu0 %v2234
        %v2236 = vpop.xlane.xlu0 %2235
        %v2237 = vsel %vm2173, %v2217, 0.0
        %2238 = vadd.xlane.f32.xlu0 %v2237
        %v2239 = vpop.xlane.xlu0 %2238
        %v2240 = vsel %vm2173, %v2219, 0.0
        %2241 = vadd.xlane.f32.xlu0 %v2240
        %v2242 = vpop.xlane.xlu0 %2241
        %v2243 = vsel %vm2173, %v2221, 0.0
        %2244 = vadd.xlane.f32.xlu0 %v2243
        %v2245 = vpop.xlane.xlu0 %2244
        %v2246 = vrcp.pop %v2224
        %v2247 = vrcp.pop %v2227
        %v2248 = vrcp.pop %v2230
        %v2249 = vrcp.pop %v2233
        %v2250 = vrcp.pop %v2236
        %v2251 = vrcp.pop %v2239
        %v2252 = vrcp.pop %v2242
        %v2253 = vrcp.pop %v2245
        %v2254 = vmul.f32 %v2207, %v2246
        %v2255 = vmul.f32 %v2209, %v2247
        %v2256 = vmul.f32 %v2211, %v2248
        %v2257 = vmul.f32 %v2213, %v2249
        %v2258 = vmul.f32 %v2215, %v2250
        %v2259 = vmul.f32 %v2217, %v2251
        %v2260 = vmul.f32 %v2219, %v2252
        %v2261 = vmul.f32 %v2221, %v2253
        %v2262 = vpack.c.bf16 %v2255, %v2254
        %v2263 = vpack.c.bf16 %v2257, %v2256
        %v2264 = vpack.c.bf16 %v2259, %v2258
        %v2265 = vpack.c.bf16 %v2261, %v2260
        %v2267 = vsel %vm2173, %v2262, 0
        %2269 = vmatprep.subr.bf16.mxu0 0
        %2270 = vmatpush1.bf16.msra.mxu0 %v1980
        %2271 = vmatprep.subr.bf16.mxu0 0
        %2272 = vmatpush1.bf16.msra.mxu0 0
        %2273 = vmatprep.subr.bf16.mxu0 0
        %2274 = vmatpush1.bf16.msra.mxu0 0
        %2275 = vmatprep.subr.bf16.mxu0 0
        %2276 = vmatpush1.bf16.msra.mxu0 0
        %2277 = vmatprep.subr.bf16.mxu0 0
        %2278 = vmatpush1.bf16.msra.mxu0 0
        %2279 = vmatprep.subr.bf16.mxu0 0
        %2280 = vmatpush1.bf16.msra.mxu0 0
        %2281 = vmatprep.subr.bf16.mxu0 0
        %2282 = vmatpush1.bf16.msra.mxu0 0
        %2283 = vmatprep.subr.bf16.mxu0 0
        %2284 = vmatpush1.bf16.msra.mxu0 0
        %2285 = vmatprep.subr.bf16.mxu0 0
        %2286 = vmatpush1.bf16.msra.mxu0 0
        %2287 = vmatprep.subr.bf16.mxu0 0
        %2288 = vmatpush1.bf16.msra.mxu0 0
        %2289 = vmatprep.subr.bf16.mxu0 0
        %2290 = vmatpush1.bf16.msra.mxu0 0
        %2291 = vmatprep.subr.bf16.mxu0 0
        %2292 = vmatpush1.bf16.msra.mxu0 0
        %2293 = vmatprep.subr.bf16.mxu0 0
        %2294 = vmatpush1.bf16.msra.mxu0 0
        %2295 = vmatprep.subr.bf16.mxu0 0
        %2296 = vmatpush1.bf16.msra.mxu0 0
        %2297 = vmatprep.subr.bf16.mxu0 0
        %2298 = vmatpush1.bf16.msra.mxu0 0
        %2299 = vmatprep.subr.bf16.mxu0 0
        %2300 = vmatpush1.bf16.msra.mxu0 0
        %2301 = vmatprep.mubr.bf16.mxu0 0
        %2302 = vmatmul.mubr.bf16.gmra.mrb[0].mxu0 %v2267
        %v2303 = vpop.f32.mrb[0].mxu0
        %v2304 = vadd.f32 0.0, %v2303
        %v2305 = vpop.f32.mrb[0].mxu0
        %v2306 = vpop.f32.mrb[0].mxu0
        %v2307 = vadd.f32 0.0, %v2306
        %v2308 = vpop.f32.mrb[0].mxu0
        %2309 = vdwg.mxu0
        %v2311 = vsel %vm2173, %v2263, 0
        %2313 = vmatprep.subr.bf16.mxu0 0
        %2314 = vmatpush1.bf16.msra.mxu0 %v1981
        %2315 = vmatprep.subr.bf16.mxu0 0
        %2316 = vmatpush1.bf16.msra.mxu0 0
        %2317 = vmatprep.subr.bf16.mxu0 0
        %2318 = vmatpush1.bf16.msra.mxu0 0
        %2319 = vmatprep.subr.bf16.mxu0 0
        %2320 = vmatpush1.bf16.msra.mxu0 0
        %2321 = vmatprep.subr.bf16.mxu0 0
        %2322 = vmatpush1.bf16.msra.mxu0 0
        %2323 = vmatprep.subr.bf16.mxu0 0
        %2324 = vmatpush1.bf16.msra.mxu0 0
        %2325 = vmatprep.subr.bf16.mxu0 0
        %2326 = vmatpush1.bf16.msra.mxu0 0
        %2327 = vmatprep.subr.bf16.mxu0 0
        %2328 = vmatpush1.bf16.msra.mxu0 0
        %2329 = vmatprep.subr.bf16.mxu0 0
        %2330 = vmatpush1.bf16.msra.mxu0 0
        %2331 = vmatprep.subr.bf16.mxu0 0
        %2332 = vmatpush1.bf16.msra.mxu0 0
        %2333 = vmatprep.subr.bf16.mxu0 0
        %2334 = vmatpush1.bf16.msra.mxu0 0
        %2335 = vmatprep.subr.bf16.mxu0 0
        %2336 = vmatpush1.bf16.msra.mxu0 0
        %2337 = vmatprep.subr.bf16.mxu0 0
        %2338 = vmatpush1.bf16.msra.mxu0 0
        %2339 = vmatprep.subr.bf16.mxu0 0
        %2340 = vmatpush1.bf16.msra.mxu0 0
        %2341 = vmatprep.subr.bf16.mxu0 0
        %2342 = vmatpush1.bf16.msra.mxu0 0
        %2343 = vmatprep.subr.bf16.mxu0 0
        %2344 = vmatpush1.bf16.msra.mxu0 0
        %2345 = vmatprep.mubr.bf16.mxu0 0
        %2346 = vmatmul.mubr.bf16.gmra.mrb[0].mxu0 %v2311
        %v2347 = vpop.f32.mrb[0].mxu0
        %v2348 = vadd.f32 0.0, %v2347
        %v2349 = vpop.f32.mrb[0].mxu0
        %v2350 = vpop.f32.mrb[0].mxu0
        %v2351 = vadd.f32 0.0, %v2350
        %v2352 = vpop.f32.mrb[0].mxu0
        %2353 = vdwg.mxu0
        %v2355 = vsel %vm2173, %v2264, 0
        %2357 = vmatprep.subr.bf16.mxu0 0
        %2358 = vmatpush1.bf16.msra.mxu0 %v1982
        %2359 = vmatprep.subr.bf16.mxu0 0
        %2360 = vmatpush1.bf16.msra.mxu0 0
        %2361 = vmatprep.subr.bf16.mxu0 0
        %2362 = vmatpush1.bf16.msra.mxu0 0
        %2363 = vmatprep.subr.bf16.mxu0 0
        %2364 = vmatpush1.bf16.msra.mxu0 0
        %2365 = vmatprep.subr.bf16.mxu0 0
        %2366 = vmatpush1.bf16.msra.mxu0 0
        %2367 = vmatprep.subr.bf16.mxu0 0
        %2368 = vmatpush1.bf16.msra.mxu0 0
        %2369 = vmatprep.subr.bf16.mxu0 0
        %2370 = vmatpush1.bf16.msra.mxu0 0
        %2371 = vmatprep.subr.bf16.mxu0 0
        %2372 = vmatpush1.bf16.msra.mxu0 0
        %2373 = vmatprep.subr.bf16.mxu0 0
        %2374 = vmatpush1.bf16.msra.mxu0 0
        %2375 = vmatprep.subr.bf16.mxu0 0
        %2376 = vmatpush1.bf16.msra.mxu0 0
        %2377 = vmatprep.subr.bf16.mxu0 0
        %2378 = vmatpush1.bf16.msra.mxu0 0
        %2379 = vmatprep.subr.bf16.mxu0 0
        %2380 = vmatpush1.bf16.msra.mxu0 0
        %2381 = vmatprep.subr.bf16.mxu0 0
        %2382 = vmatpush1.bf16.msra.mxu0 0
        %2383 = vmatprep.subr.bf16.mxu0 0
        %2384 = vmatpush1.bf16.msra.mxu0 0
        %2385 = vmatprep.subr.bf16.mxu0 0
        %2386 = vmatpush1.bf16.msra.mxu0 0
        %2387 = vmatprep.subr.bf16.mxu0 0
        %2388 = vmatpush1.bf16.msra.mxu0 0
        %2389 = vmatprep.mubr.bf16.mxu0 0
        %2390 = vmatmul.mubr.bf16.gmra.mrb[0].mxu0 %v2355
        %v2391 = vpop.f32.mrb[0].mxu0
        %v2392 = vadd.f32 0.0, %v2391
        %v2393 = vpop.f32.mrb[0].mxu0
        %v2394 = vpop.f32.mrb[0].mxu0
        %v2395 = vadd.f32 0.0, %v2394
        %v2396 = vpop.f32.mrb[0].mxu0
        %2397 = vdwg.mxu0
        %v2399 = vsel %vm2173, %v2265, 0
        %2401 = vmatprep.subr.bf16.mxu0 0
        %2402 = vmatpush1.bf16.msra.mxu0 %v1983
        %2403 = vmatprep.subr.bf16.mxu0 0
        %2404 = vmatpush1.bf16.msra.mxu0 0
        %2405 = vmatprep.subr.bf16.mxu0 0
        %2406 = vmatpush1.bf16.msra.mxu0 0
        %2407 = vmatprep.subr.bf16.mxu0 0
        %2408 = vmatpush1.bf16.msra.mxu0 0
        %2409 = vmatprep.subr.bf16.mxu0 0
        %2410 = vmatpush1.bf16.msra.mxu0 0
        %2411 = vmatprep.subr.bf16.mxu0 0
        %2412 = vmatpush1.bf16.msra.mxu0 0
        %2413 = vmatprep.subr.bf16.mxu0 0
        %2414 = vmatpush1.bf16.msra.mxu0 0
        %2415 = vmatprep.subr.bf16.mxu0 0
        %2416 = vmatpush1.bf16.msra.mxu0 0
        %2417 = vmatprep.subr.bf16.mxu0 0
        %2418 = vmatpush1.bf16.msra.mxu0 0
        %2419 = vmatprep.subr.bf16.mxu0 0
        %2420 = vmatpush1.bf16.msra.mxu0 0
        %2421 = vmatprep.subr.bf16.mxu0 0
        %2422 = vmatpush1.bf16.msra.mxu0 0
        %2423 = vmatprep.subr.bf16.mxu0 0
        %2424 = vmatpush1.bf16.msra.mxu0 0
        %2425 = vmatprep.subr.bf16.mxu0 0
        %2426 = vmatpush1.bf16.msra.mxu0 0
        %2427 = vmatprep.subr.bf16.mxu0 0
        %2428 = vmatpush1.bf16.msra.mxu0 0
        %2429 = vmatprep.subr.bf16.mxu0 0
        %2430 = vmatpush1.bf16.msra.mxu0 0
        %2431 = vmatprep.subr.bf16.mxu0 0
        %2432 = vmatpush1.bf16.msra.mxu0 0
        %2433 = vmatprep.mubr.bf16.mxu0 0
        %2434 = vmatmul.mubr.bf16.gmra.mrb[0].mxu0 %v2399
        %v2435 = vpop.f32.mrb[0].mxu0
        %v2436 = vadd.f32 0.0, %v2435
        %v2437 = vpop.f32.mrb[0].mxu0
        %v2438 = vpop.f32.mrb[0].mxu0
        %v2439 = vadd.f32 0.0, %v2438
        %v2440 = vpop.f32.mrb[0].mxu0
        %2441 = vdwg.mxu0
        %v2442 = vcombine.low %v2304, %v2392
        %v2443 = vcombine.high %v2304, %v2392
        %v2445 = vunpack.c.l.s4 1983009808
        %v2446 = vunpack.c.0.s8 %v2445
        %v2447 = vlaneseq
        %v2448 = vshrl.u32 %v2447, 7
        %v2449 = vsub.s32 %v2446, %v2448
        %v2450 = vrot.slane %v2442, %v2449
        %v2452 = vunpack.c.l.s4 1983009808
        %v2453 = vunpack.c.0.s8 %v2452
        %v2454 = vlaneseq
        %v2455 = vshrl.u32 %v2454, 7
        %v2456 = vsub.s32 %v2453, %v2455
        %v2457 = vrot.slane %v2443, %v2456
        %v2458 = vcombine.low %v2348, %v2436
        %v2459 = vcombine.high %v2348, %v2436
        %v2461 = vunpack.c.l.s4 1983009808
        %v2462 = vunpack.c.0.s8 %v2461
        %v2463 = vlaneseq
        %v2464 = vshrl.u32 %v2463, 7
        %v2465 = vsub.s32 %v2462, %v2464
        %v2466 = vrot.slane %v2458, %v2465
        %v2468 = vunpack.c.l.s4 1983009808
        %v2469 = vunpack.c.0.s8 %v2468
        %v2470 = vlaneseq
        %v2471 = vshrl.u32 %v2470, 7
        %v2472 = vsub.s32 %v2469, %v2471
        %v2473 = vrot.slane %v2459, %v2472
        %v2474 = vcombine.low %v2450, %v2466
        %v2475 = vcombine.high %v2450, %v2466
        %v2477 = vunpack.c.l.s4 1934713408
        %v2478 = vunpack.c.0.s8 %v2477
        %v2479 = vlaneseq
        %v2480 = vshrl.u32 %v2479, 7
        %v2481 = vsub.s32 %v2478, %v2480
        %v2482 = vrot.slane %v2474, %v2481
        %v2484 = vunpack.c.l.s4 1934713408
        %v2485 = vunpack.c.0.s8 %v2484
        %v2486 = vlaneseq
        %v2487 = vshrl.u32 %v2486, 7
        %v2488 = vsub.s32 %v2485, %v2487
        %v2489 = vrot.slane %v2475, %v2488
        %v2490 = vcombine.low %v2457, %v2473
        %v2491 = vcombine.high %v2457, %v2473
        %v2493 = vunpack.c.l.s4 1934713408
        %v2494 = vunpack.c.0.s8 %v2493
        %v2495 = vlaneseq
        %v2496 = vshrl.u32 %v2495, 7
        %v2497 = vsub.s32 %v2494, %v2496
        %v2498 = vrot.slane %v2490, %v2497
        %v2500 = vunpack.c.l.s4 1934713408
        %v2501 = vunpack.c.0.s8 %v2500
        %v2502 = vlaneseq
        %v2503 = vshrl.u32 %v2502, 7
        %v2504 = vsub.s32 %v2501, %v2503
        %v2505 = vrot.slane %v2491, %v2504
        %v2506 = vcombine.high %v2482, 0.0
        %v2507 = vcombine.high %v2489, 0.0
        %v2508 = vcombine.high %v2498, 0.0
        %v2509 = vcombine.high %v2505, 0.0
        %v2510 = vcombine.low %v2307, %v2395
        %v2511 = vcombine.high %v2307, %v2395
        %v2513 = vunpack.c.l.s4 1983009808
        %v2514 = vunpack.c.0.s8 %v2513
        %v2515 = vlaneseq
        %v2516 = vshrl.u32 %v2515, 7
        %v2517 = vsub.s32 %v2514, %v2516
        %v2518 = vrot.slane %v2510, %v2517
        %v2520 = vunpack.c.l.s4 1983009808
        %v2521 = vunpack.c.0.s8 %v2520
        %v2522 = vlaneseq
        %v2523 = vshrl.u32 %v2522, 7
        %v2524 = vsub.s32 %v2521, %v2523
        %v2525 = vrot.slane %v2511, %v2524
        %v2526 = vcombine.low %v2351, %v2439
        %v2527 = vcombine.high %v2351, %v2439
        %v2529 = vunpack.c.l.s4 1983009808
        %v2530 = vunpack.c.0.s8 %v2529
        %v2531 = vlaneseq
        %v2532 = vshrl.u32 %v2531, 7
        %v2533 = vsub.s32 %v2530, %v2532
        %v2534 = vrot.slane %v2526, %v2533
        %v2536 = vunpack.c.l.s4 1983009808
        %v2537 = vunpack.c.0.s8 %v2536
        %v2538 = vlaneseq
        %v2539 = vshrl.u32 %v2538, 7
        %v2540 = vsub.s32 %v2537, %v2539
        %v2541 = vrot.slane %v2527, %v2540
        %v2542 = vcombine.low %v2518, %v2534
        %v2543 = vcombine.high %v2518, %v2534
        %v2545 = vunpack.c.l.s4 1934713408
        %v2546 = vunpack.c.0.s8 %v2545
        %v2547 = vlaneseq
        %v2548 = vshrl.u32 %v2547, 7
        %v2549 = vsub.s32 %v2546, %v2548
        %v2550 = vrot.slane %v2542, %v2549
        %v2552 = vunpack.c.l.s4 1934713408
        %v2553 = vunpack.c.0.s8 %v2552
        %v2554 = vlaneseq
        %v2555 = vshrl.u32 %v2554, 7
        %v2556 = vsub.s32 %v2553, %v2555
        %v2557 = vrot.slane %v2543, %v2556
        %v2558 = vcombine.low %v2525, %v2541
        %v2559 = vcombine.high %v2525, %v2541
        %v2561 = vunpack.c.l.s4 1934713408
        %v2562 = vunpack.c.0.s8 %v2561
        %v2563 = vlaneseq
        %v2564 = vshrl.u32 %v2563, 7
        %v2565 = vsub.s32 %v2562, %v2564
        %v2566 = vrot.slane %v2558, %v2565
        %v2568 = vunpack.c.l.s4 1934713408
        %v2569 = vunpack.c.0.s8 %v2568
        %v2570 = vlaneseq
        %v2571 = vshrl.u32 %v2570, 7
        %v2572 = vsub.s32 %v2569, %v2571
        %v2573 = vrot.slane %v2559, %v2572
        %v2574 = vcombine.high %v2550, 0.0
        %v2575 = vcombine.high %v2557, 0.0
        %v2576 = vcombine.high %v2566, 0.0
        %v2577 = vcombine.high %v2573, 0.0
        %v2578 = vcombine.low %v2482, %v2489
        %v2580 = vunpack.c.l.s4 1983009808
        %v2581 = vunpack.c.0.s8 %v2580
        %v2582 = vlaneseq
        %v2583 = vshrl.u32 %v2582, 7
        %v2584 = vsub.s32 %v2581, %v2583
        %v2585 = vrot.slane %v2578, %v2584
        %v2586 = vcombine.low %v2506, %v2507
        %v2588 = vunpack.c.l.s4 1983009808
        %v2589 = vunpack.c.0.s8 %v2588
        %v2590 = vlaneseq
        %v2591 = vshrl.u32 %v2590, 7
        %v2592 = vsub.s32 %v2589, %v2591
        %v2593 = vrot.slane %v2586, %v2592
        %v2594 = vcombine.low %v2498, %v2505
        %v2596 = vunpack.c.l.s4 1983009808
        %v2597 = vunpack.c.0.s8 %v2596
        %v2598 = vlaneseq
        %v2599 = vshrl.u32 %v2598, 7
        %v2600 = vsub.s32 %v2597, %v2599
        %v2601 = vrot.slane %v2594, %v2600
        %v2602 = vcombine.low %v2508, %v2509
        %v2604 = vunpack.c.l.s4 1983009808
        %v2605 = vunpack.c.0.s8 %v2604
        %v2606 = vlaneseq
        %v2607 = vshrl.u32 %v2606, 7
        %v2608 = vsub.s32 %v2605, %v2607
        %v2609 = vrot.slane %v2602, %v2608
        %v2610 = vcombine.low %v2585, %v2593
        %v2611 = vcombine.high %v2585, %v2593
        %v2613 = vunpack.c.l.s4 1934713408
        %v2614 = vunpack.c.0.s8 %v2613
        %v2615 = vlaneseq
        %v2616 = vshrl.u32 %v2615, 7
        %v2617 = vsub.s32 %v2614, %v2616
        %v2618 = vrot.slane %v2610, %v2617
        %v2620 = vunpack.c.l.s4 1934713408
        %v2621 = vunpack.c.0.s8 %v2620
        %v2622 = vlaneseq
        %v2623 = vshrl.u32 %v2622, 7
        %v2624 = vsub.s32 %v2621, %v2623
        %v2625 = vrot.slane %v2611, %v2624
        %v2626 = vcombine.low %v2601, %v2609
        %v2627 = vcombine.high %v2601, %v2609
        %v2629 = vunpack.c.l.s4 1934713408
        %v2630 = vunpack.c.0.s8 %v2629
        %v2631 = vlaneseq
        %v2632 = vshrl.u32 %v2631, 7
        %v2633 = vsub.s32 %v2630, %v2632
        %v2634 = vrot.slane %v2626, %v2633
        %v2636 = vunpack.c.l.s4 1934713408
        %v2637 = vunpack.c.0.s8 %v2636
        %v2638 = vlaneseq
        %v2639 = vshrl.u32 %v2638, 7
        %v2640 = vsub.s32 %v2637, %v2639
        %v2641 = vrot.slane %v2627, %v2640
        %v2642 = vcombine.low %v2618, %v2634
        %v2643 = vcombine.high %v2618, %v2634
        %v2644 = vcombine.low %v2625, %v2641
        %v2645 = vcombine.high %v2625, %v2641
        %v2646 = vcombine.low %v2550, %v2557
        %v2648 = vunpack.c.l.s4 1983009808
        %v2649 = vunpack.c.0.s8 %v2648
        %v2650 = vlaneseq
        %v2651 = vshrl.u32 %v2650, 7
        %v2652 = vsub.s32 %v2649, %v2651
        %v2653 = vrot.slane %v2646, %v2652
        %v2654 = vcombine.low %v2574, %v2575
        %v2656 = vunpack.c.l.s4 1983009808
        %v2657 = vunpack.c.0.s8 %v2656
        %v2658 = vlaneseq
        %v2659 = vshrl.u32 %v2658, 7
        %v2660 = vsub.s32 %v2657, %v2659
        %v2661 = vrot.slane %v2654, %v2660
        %v2662 = vcombine.low %v2566, %v2573
        %v2664 = vunpack.c.l.s4 1983009808
        %v2665 = vunpack.c.0.s8 %v2664
        %v2666 = vlaneseq
        %v2667 = vshrl.u32 %v2666, 7
        %v2668 = vsub.s32 %v2665, %v2667
        %v2669 = vrot.slane %v2662, %v2668
        %v2670 = vcombine.low %v2576, %v2577
        %v2672 = vunpack.c.l.s4 1983009808
        %v2673 = vunpack.c.0.s8 %v2672
        %v2674 = vlaneseq
        %v2675 = vshrl.u32 %v2674, 7
        %v2676 = vsub.s32 %v2673, %v2675
        %v2677 = vrot.slane %v2670, %v2676
        %v2678 = vcombine.low %v2653, %v2661
        %v2679 = vcombine.high %v2653, %v2661
        %v2681 = vunpack.c.l.s4 1934713408
        %v2682 = vunpack.c.0.s8 %v2681
        %v2683 = vlaneseq
        %v2684 = vshrl.u32 %v2683, 7
        %v2685 = vsub.s32 %v2682, %v2684
        %v2686 = vrot.slane %v2678, %v2685
        %v2688 = vunpack.c.l.s4 1934713408
        %v2689 = vunpack.c.0.s8 %v2688
        %v2690 = vlaneseq
        %v2691 = vshrl.u32 %v2690, 7
        %v2692 = vsub.s32 %v2689, %v2691
        %v2693 = vrot.slane %v2679, %v2692
        %v2694 = vcombine.low %v2669, %v2677
        %v2695 = vcombine.high %v2669, %v2677
        %v2697 = vunpack.c.l.s4 1934713408
        %v2698 = vunpack.c.0.s8 %v2697
        %v2699 = vlaneseq
        %v2700 = vshrl.u32 %v2699, 7
        %v2701 = vsub.s32 %v2698, %v2700
        %v2702 = vrot.slane %v2694, %v2701
        %v2704 = vunpack.c.l.s4 1934713408
        %v2705 = vunpack.c.0.s8 %v2704
        %v2706 = vlaneseq
        %v2707 = vshrl.u32 %v2706, 7
        %v2708 = vsub.s32 %v2705, %v2707
        %v2709 = vrot.slane %v2695, %v2708
        %v2710 = vcombine.low %v2686, %v2702
        %v2711 = vcombine.high %v2686, %v2702
        %v2712 = vcombine.low %v2693, %v2709
        %v2713 = vcombine.high %v2693, %v2709
        %2716 = vrot.lane.b32.xlu0 %v2643, 32
        %v2717 = vpop.permute.xlu0 %2716
        %2718 = vrot.lane.b32.xlu0 %v2711, 32
        %v2719 = vpop.permute.xlu0 %2718
        %2724 = vrot.lane.b32.xlu0 %v2644, 64
        %v2725 = vpop.permute.xlu0 %2724
        %2726 = vrot.lane.b32.xlu0 %v2712, 64
        %v2727 = vpop.permute.xlu0 %2726
        %2732 = vrot.lane.b32.xlu0 %v2645, 96
        %v2733 = vpop.permute.xlu0 %2732
        %2734 = vrot.lane.b32.xlu0 %v2713, 96
        %v2735 = vpop.permute.xlu0 %2734
        %v2738 = vsel %vm1984, %v2642, %v2717
        %v2739 = vsel %vm1984, %v2710, %v2719
        %vm2740 = vcmask 523264
        %v2741 = vsel %vm2740, %v2738, %v2725
        %v2742 = vsel %vm2740, %v2739, %v2727
        %vm2743 = vcmask 785408
        %v2744 = vsel %vm2743, %v2741, %v2733
        %v2745 = vsel %vm2743, %v2742, %v2735
        %v2746 = vpack.c.bf16 %v2745, %v2744
        %v2747 = vld [vmem:[%s651] sm:$0xf]
        %v2748 = vld [vmem:[%s651 + $0x4] sm:$0xf]
        %v2749 = vld [vmem:[%s651 + $0x8] sm:$0xf]
        %v2750 = vld [vmem:[%s651 + $0xc] sm:$0xf]
        %v2751 = vld [vmem:[%s651 + $0x10] sm:$0xf]
        %v2752 = vld [vmem:[%s651 + $0x14] sm:$0xf]
        %v2753 = vld [vmem:[%s651 + $0x18] sm:$0xf]
        %v2754 = vld [vmem:[%s651 + $0x1c] sm:$0xf]
        %v2755 = vld [vmem:[%s651 + $0x20] sm:$0xf]
        %v2756 = vld [vmem:[%s651 + $0x24] sm:$0xf]
        %v2757 = vld [vmem:[%s651 + $0x28] sm:$0xf]
        %v2758 = vld [vmem:[%s651 + $0x2c] sm:$0xf]
        %v2759 = vld [vmem:[%s651 + $0x30] sm:$0xf]
        %v2760 = vld [vmem:[%s651 + $0x34] sm:$0xf]
        %v2761 = vld [vmem:[%s651 + $0x38] sm:$0xf]
        %v2762 = vld [vmem:[%s651 + $0x3c] sm:$0xf]
        %v2763 = vld [vmem:[%s766] sm:$0x1]
        %v2765 = vlaneseq
        %v2766 = vshrl.u32 %v2765, 7
        %v2767 = vsub.s32 0, %v2766
        %v2768 = vrot.slane %v2763, %v2767
        %v2786 = vunpack.c.l.b16 %v2747
        %v2787 = vunpack.c.l.b16 %v2748
        %v2788 = vunpack.c.l.b16 %v2749
        %v2789 = vunpack.c.l.b16 %v2750
        %v2790 = vunpack.c.l.b16 %v2751
        %v2791 = vunpack.c.l.b16 %v2752
        %v2792 = vunpack.c.l.b16 %v2753
        %v2793 = vunpack.c.l.b16 %v2754
        %v2794 = vunpack.c.l.b16 %v2755
        %v2795 = vunpack.c.l.b16 %v2756
        %v2796 = vunpack.c.l.b16 %v2757
        %v2797 = vunpack.c.l.b16 %v2758
        %v2798 = vunpack.c.l.b16 %v2759
        %v2799 = vunpack.c.l.b16 %v2760
        %v2800 = vunpack.c.l.b16 %v2761
        %v2801 = vunpack.c.l.b16 %v2762
        %v2802 = vpack.c.b16 %v2787, %v2786
        %v2803 = vpack.c.b16 %v2789, %v2788
        %v2804 = vpack.c.b16 %v2791, %v2790
        %v2805 = vpack.c.b16 %v2793, %v2792
        %v2806 = vpack.c.b16 %v2795, %v2794
        %v2807 = vpack.c.b16 %v2797, %v2796
        %v2808 = vpack.c.b16 %v2799, %v2798
        %v2809 = vpack.c.b16 %v2801, %v2800
        %2818 = vmatprep.subr.bf16.mxu0 0
        %2819 = vmatpush1.bf16.msra.mxu0 %v2802
        %2820 = vmatprep.subr.bf16.mxu0 0
        %2821 = vmatpush1.bf16.msra.mxu0 %v2803
        %2822 = vmatprep.subr.bf16.mxu0 0
        %2823 = vmatpush1.bf16.msra.mxu0 %v2804
        %2824 = vmatprep.subr.bf16.mxu0 0
        %2825 = vmatpush1.bf16.msra.mxu0 %v2805
        %2826 = vmatprep.subr.bf16.mxu0 0
        %2827 = vmatpush1.bf16.msra.mxu0 %v2806
        %2828 = vmatprep.subr.bf16.mxu0 0
        %2829 = vmatpush1.bf16.msra.mxu0 %v2807
        %2830 = vmatprep.subr.bf16.mxu0 0
        %2831 = vmatpush1.bf16.msra.mxu0 %v2808
        %2832 = vmatprep.subr.bf16.mxu0 0
        %2833 = vmatpush1.bf16.msra.mxu0 %v2809
        %2834 = vmatprep.subr.bf16.mxu0 0
        %2835 = vmatpush1.bf16.msra.mxu0 0
        %2836 = vmatprep.subr.bf16.mxu0 0
        %2837 = vmatpush1.bf16.msra.mxu0 0
        %2838 = vmatprep.subr.bf16.mxu0 0
        %2839 = vmatpush1.bf16.msra.mxu0 0
        %2840 = vmatprep.subr.bf16.mxu0 0
        %2841 = vmatpush1.bf16.msra.mxu0 0
        %2842 = vmatprep.subr.bf16.mxu0 0
        %2843 = vmatpush1.bf16.msra.mxu0 0
        %2844 = vmatprep.subr.bf16.mxu0 0
        %2845 = vmatpush1.bf16.msra.mxu0 0
        %2846 = vmatprep.subr.bf16.mxu0 0
        %2847 = vmatpush1.bf16.msra.mxu0 0
        %2848 = vmatprep.subr.bf16.mxu0 0
        %2849 = vmatpush1.bf16.msra.mxu0 0
        %2850 = vmatprep.mubr.bf16.mxu0 0
        %2851 = vmatmul.mubr.bf16.gmra.mrb[0].mxu0 %v2746
        %v2852 = vpop.f32.mrb[0].mxu0
        %v2853 = vadd.f32 %v2768, %v2852
        %v2854 = vpop.f32.mrb[0].mxu0
        %v2855 = vpop.f32.mrb[0].mxu0
        %v2856 = vadd.f32 %v2768, %v2855
        %v2857 = vpop.f32.mrb[0].mxu0
        %2858 = vdwg.mxu0
        %v2859 = vadd.f32 %v789, %v2853
        %v2860 = vadd.f32 %v790, %v2856
        %v2861 = vld [vmem:[%s769] sm:$0x1]
        %v2862 = vld [vmem:[%s772] sm:$0x1]
        %2863 = vadd.xlane.f32.xlu0 %v2859
        %v2864 = vpop.xlane.xlu0 %2863
        %2865 = vadd.xlane.f32.xlu0 %v2860
        %v2866 = vpop.xlane.xlu0 %2865
        %v2867 = vmul.f32 %v2864, %v797
        %v2868 = vmul.f32 %v2866, %v797
        %v2869 = vsub.f32 %v2859, %v2867
        %v2870 = vsub.f32 %v2860, %v2868
        %v2871 = vmul.f32 %v2869, %v2869
        %v2872 = vmul.f32 %v2870, %v2870
        %2873 = vadd.xlane.f32.xlu0 %v2871
        %v2874 = vpop.xlane.xlu0 %2873
        %2875 = vadd.xlane.f32.xlu0 %v2872
        %v2876 = vpop.xlane.xlu0 %2875
        %v2877 = vmul.f32 %v2874, %v797
        %v2878 = vmul.f32 %v2876, %v797
        %v2879 = vadd.f32 %v2877, 1e-05
        %v2880 = vadd.f32 %v2878, 1e-05
        %v2881 = vrsqrt.pop %v2879
        %v2882 = vrsqrt.pop %v2880
        %v2883 = vmul.f32 %v2869, %v2881
        %v2884 = vmul.f32 %v2870, %v2882
        %v2886 = vlaneseq
        %v2887 = vshrl.u32 %v2886, 7
        %v2888 = vsub.s32 0, %v2887
        %v2889 = vrot.slane %v2861, %v2888
        %v2891 = vmul.f32 %v2883, %v2889
        %v2892 = vmul.f32 %v2884, %v2889
        %v2894 = vlaneseq
        %v2895 = vshrl.u32 %v2894, 7
        %v2896 = vsub.s32 0, %v2895
        %v2897 = vrot.slane %v2862, %v2896
        %v2899 = vadd.f32 %v2891, %v2897
        %v2900 = vadd.f32 %v2892, %v2897
        %v2901 = vpack.c.bf16 %v2900, %v2899
        %v2902 = vld [vmem:[%s660] sm:$0xff]
        %v2903 = vld [vmem:[%s660 + $0x8] sm:$0xff]
        %v2904 = vld [vmem:[%s660 + $0x10] sm:$0xff]
        %v2905 = vld [vmem:[%s660 + $0x18] sm:$0xff]
        %v2906 = vld [vmem:[%s660 + $0x20] sm:$0xff]
        %v2907 = vld [vmem:[%s660 + $0x28] sm:$0xff]
        %v2908 = vld [vmem:[%s660 + $0x30] sm:$0xff]
        %v2909 = vld [vmem:[%s660 + $0x38] sm:$0xff]
        %v2910 = vld [vmem:[%s660 + $0x40] sm:$0xff]
        %v2911 = vld [vmem:[%s660 + $0x48] sm:$0xff]
        %v2912 = vld [vmem:[%s660 + $0x50] sm:$0xff]
        %v2913 = vld [vmem:[%s660 + $0x58] sm:$0xff]
        %v2914 = vld [vmem:[%s660 + $0x60] sm:$0xff]
        %v2915 = vld [vmem:[%s660 + $0x68] sm:$0xff]
        %v2916 = vld [vmem:[%s660 + $0x70] sm:$0xff]
        %v2917 = vld [vmem:[%s660 + $0x78] sm:$0xff]
        %v2918 = vld [vmem:[%s776] sm:$0x3]
        %v2920 = vlaneseq
        %v2921 = vshrl.u32 %v2920, 7
        %v2922 = vsub.s32 0, %v2921
        %v2923 = vrot.slane %v2918, %v2922
        %v2924 = vlaneseq
        %v2925 = vshrl.u32 %v2924, 7
        %v2926 = vsub.s32 1, %v2925
        %v2927 = vrot.slane %v2918, %v2926
        %v2946 = vunpack.c.l.b16 %v2902
        %v2947 = vunpack.c.h.b16 %v2902
        %v2948 = vunpack.c.l.b16 %v2903
        %v2949 = vunpack.c.h.b16 %v2903
        %v2950 = vunpack.c.l.b16 %v2904
        %v2951 = vunpack.c.h.b16 %v2904
        %v2952 = vunpack.c.l.b16 %v2905
        %v2953 = vunpack.c.h.b16 %v2905
        %v2954 = vunpack.c.l.b16 %v2906
        %v2955 = vunpack.c.h.b16 %v2906
        %v2956 = vunpack.c.l.b16 %v2907
        %v2957 = vunpack.c.h.b16 %v2907
        %v2958 = vunpack.c.l.b16 %v2908
        %v2959 = vunpack.c.h.b16 %v2908
        %v2960 = vunpack.c.l.b16 %v2909
        %v2961 = vunpack.c.h.b16 %v2909
        %v2962 = vunpack.c.l.b16 %v2910
        %v2963 = vunpack.c.h.b16 %v2910
        %v2964 = vunpack.c.l.b16 %v2911
        %v2965 = vunpack.c.h.b16 %v2911
        %v2966 = vunpack.c.l.b16 %v2912
        %v2967 = vunpack.c.h.b16 %v2912
        %v2968 = vunpack.c.l.b16 %v2913
        %v2969 = vunpack.c.h.b16 %v2913
        %v2970 = vunpack.c.l.b16 %v2914
        %v2971 = vunpack.c.h.b16 %v2914
        %v2972 = vunpack.c.l.b16 %v2915
        %v2973 = vunpack.c.h.b16 %v2915
        %v2974 = vunpack.c.l.b16 %v2916
        %v2975 = vunpack.c.h.b16 %v2916
        %v2976 = vunpack.c.l.b16 %v2917
        %v2977 = vunpack.c.h.b16 %v2917
        %v2978 = vpack.c.b16 %v2948, %v2946
        %v2979 = vpack.c.b16 %v2949, %v2947
        %v2980 = vpack.c.b16 %v2952, %v2950
        %v2981 = vpack.c.b16 %v2953, %v2951
        %v2982 = vpack.c.b16 %v2956, %v2954
        %v2983 = vpack.c.b16 %v2957, %v2955
        %v2984 = vpack.c.b16 %v2960, %v2958
        %v2985 = vpack.c.b16 %v2961, %v2959
        %v2986 = vpack.c.b16 %v2964, %v2962
        %v2987 = vpack.c.b16 %v2965, %v2963
        %v2988 = vpack.c.b16 %v2968, %v2966
        %v2989 = vpack.c.b16 %v2969, %v2967
        %v2990 = vpack.c.b16 %v2972, %v2970
        %v2991 = vpack.c.b16 %v2973, %v2971
        %v2992 = vpack.c.b16 %v2976, %v2974
        %v2993 = vpack.c.b16 %v2977, %v2975
        %3010 = vmatprep.subr.bf16.mxu0 %v2979
        %3011 = vmatpush1.bf16.msra.mxu0 %v2978
        %3012 = vmatprep.subr.bf16.mxu0 %v2981
        %3013 = vmatpush1.bf16.msra.mxu0 %v2980
        %3014 = vmatprep.subr.bf16.mxu0 %v2983
        %3015 = vmatpush1.bf16.msra.mxu0 %v2982
        %3016 = vmatprep.subr.bf16.mxu0 %v2985
        %3017 = vmatpush1.bf16.msra.mxu0 %v2984
        %3018 = vmatprep.subr.bf16.mxu0 %v2987
        %3019 = vmatpush1.bf16.msra.mxu0 %v2986
        %3020 = vmatprep.subr.bf16.mxu0 %v2989
        %3021 = vmatpush1.bf16.msra.mxu0 %v2988
        %3022 = vmatprep.subr.bf16.mxu0 %v2991
        %3023 = vmatpush1.bf16.msra.mxu0 %v2990
        %3024 = vmatprep.subr.bf16.mxu0 %v2993
        %3025 = vmatpush1.bf16.msra.mxu0 %v2992
        %3026 = vmatprep.subr.bf16.mxu0 0
        %3027 = vmatpush1.bf16.msra.mxu0 0
        %3028 = vmatprep.subr.bf16.mxu0 0
        %3029 = vmatpush1.bf16.msra.mxu0 0
        %3030 = vmatprep.subr.bf16.mxu0 0
        %3031 = vmatpush1.bf16.msra.mxu0 0
        %3032 = vmatprep.subr.bf16.mxu0 0
        %3033 = vmatpush1.bf16.msra.mxu0 0
        %3034 = vmatprep.subr.bf16.mxu0 0
        %3035 = vmatpush1.bf16.msra.mxu0 0
        %3036 = vmatprep.subr.bf16.mxu0 0
        %3037 = vmatpush1.bf16.msra.mxu0 0
        %3038 = vmatprep.subr.bf16.mxu0 0
        %3039 = vmatpush1.bf16.msra.mxu0 0
        %3040 = vmatprep.subr.bf16.mxu0 0
        %3041 = vmatpush1.bf16.msra.mxu0 0
        %3042 = vmatprep.mubr.bf16.mxu0 0
        %3043 = vmatmul.mubr.bf16.gmra.mrb[0].mxu0 %v2901
        %v3044 = vpop.f32.mrb[0].mxu0
        %v3045 = vadd.f32 %v2923, %v3044
        %v3046 = vpop.f32.mrb[0].mxu0
        %v3047 = vadd.f32 %v2927, %v3046
        %v3048 = vpop.f32.mrb[0].mxu0
        %v3049 = vadd.f32 %v2923, %v3048
        %v3050 = vpop.f32.mrb[0].mxu0
        %v3051 = vadd.f32 %v2927, %v3050
        %3052 = vdwg.mxu0
        %v3053 = vmul.f32 %v3045, 0.5
        %v3054 = vmul.f32 %v3047, 0.5
        %v3055 = vmul.f32 %v3049, 0.5
        %v3056 = vmul.f32 %v3051, 0.5
        %v3057 = vmul.f32 %v3045, 0.70710677
        %v3058 = vmul.f32 %v3047, 0.70710677
        %v3059 = vmul.f32 %v3049, 0.70710677
        %v3060 = vmul.f32 %v3051, 0.70710677
        %v3061 = verf.f32.pop %v3057
        %v3062 = verf.f32.pop %v3058
        %v3063 = verf.f32.pop %v3059
        %v3064 = verf.f32.pop %v3060
        %v3065 = vadd.f32 %v3061, 1.0
        %v3066 = vadd.f32 %v3062, 1.0
        %v3067 = vadd.f32 %v3063, 1.0
        %v3068 = vadd.f32 %v3064, 1.0
        %v3069 = vmul.f32 %v3053, %v3065
        %v3070 = vmul.f32 %v3054, %v3066
        %v3071 = vmul.f32 %v3055, %v3067
        %v3072 = vmul.f32 %v3056, %v3068
        %v3073 = vpack.c.bf16 %v3071, %v3069
        %v3074 = vpack.c.bf16 %v3072, %v3070
        %v3075 = vld [vmem:[%s669] sm:$0xf]
        %v3076 = vld [vmem:[%s669 + $0x4] sm:$0xf]
        %v3077 = vld [vmem:[%s669 + $0x8] sm:$0xf]
        %v3078 = vld [vmem:[%s669 + $0xc] sm:$0xf]
        %v3079 = vld [vmem:[%s669 + $0x10] sm:$0xf]
        %v3080 = vld [vmem:[%s669 + $0x14] sm:$0xf]
        %v3081 = vld [vmem:[%s669 + $0x18] sm:$0xf]
        %v3082 = vld [vmem:[%s669 + $0x1c] sm:$0xf]
        %v3083 = vld [vmem:[%s669 + $0x20] sm:$0xf]
        %v3084 = vld [vmem:[%s669 + $0x24] sm:$0xf]
        %v3085 = vld [vmem:[%s669 + $0x28] sm:$0xf]
        %v3086 = vld [vmem:[%s669 + $0x2c] sm:$0xf]
        %v3087 = vld [vmem:[%s669 + $0x30] sm:$0xf]
        %v3088 = vld [vmem:[%s669 + $0x34] sm:$0xf]
        %v3089 = vld [vmem:[%s669 + $0x38] sm:$0xf]
        %v3090 = vld [vmem:[%s669 + $0x3c] sm:$0xf]
        %v3091 = vld [vmem:[%s669 + $0x40] sm:$0xf]
        %v3092 = vld [vmem:[%s669 + $0x44] sm:$0xf]
        %v3093 = vld [vmem:[%s669 + $0x48] sm:$0xf]
        %v3094 = vld [vmem:[%s669 + $0x4c] sm:$0xf]
        %v3095 = vld [vmem:[%s669 + $0x50] sm:$0xf]
        %v3096 = vld [vmem:[%s669 + $0x54] sm:$0xf]
        %v3097 = vld [vmem:[%s669 + $0x58] sm:$0xf]
        %v3098 = vld [vmem:[%s669 + $0x5c] sm:$0xf]
        %v3099 = vld [vmem:[%s669 + $0x60] sm:$0xf]
        %v3100 = vld [vmem:[%s669 + $0x64] sm:$0xf]
        %v3101 = vld [vmem:[%s669 + $0x68] sm:$0xf]
        %v3102 = vld [vmem:[%s669 + $0x6c] sm:$0xf]
        %v3103 = vld [vmem:[%s669 + $0x70] sm:$0xf]
        %v3104 = vld [vmem:[%s669 + $0x74] sm:$0xf]
        %v3105 = vld [vmem:[%s669 + $0x78] sm:$0xf]
        %v3106 = vld [vmem:[%s669 + $0x7c] sm:$0xf]
        %v3107 = vld [vmem:[%s779] sm:$0x1]
        %v3109 = vlaneseq
        %v3110 = vshrl.u32 %v3109, 7
        %v3111 = vsub.s32 0, %v3110
        %v3112 = vrot.slane %v3107, %v3111
        %v3146 = vunpack.c.l.b16 %v3075
        %v3147 = vunpack.c.l.b16 %v3076
        %v3148 = vunpack.c.l.b16 %v3077
        %v3149 = vunpack.c.l.b16 %v3078
        %v3150 = vunpack.c.l.b16 %v3079
        %v3151 = vunpack.c.l.b16 %v3080
        %v3152 = vunpack.c.l.b16 %v3081
        %v3153 = vunpack.c.l.b16 %v3082
        %v3154 = vunpack.c.l.b16 %v3083
        %v3155 = vunpack.c.l.b16 %v3084
        %v3156 = vunpack.c.l.b16 %v3085
        %v3157 = vunpack.c.l.b16 %v3086
        %v3158 = vunpack.c.l.b16 %v3087
        %v3159 = vunpack.c.l.b16 %v3088
        %v3160 = vunpack.c.l.b16 %v3089
        %v3161 = vunpack.c.l.b16 %v3090
        %v3162 = vunpack.c.l.b16 %v3091
        %v3163 = vunpack.c.l.b16 %v3092
        %v3164 = vunpack.c.l.b16 %v3093
        %v3165 = vunpack.c.l.b16 %v3094
        %v3166 = vunpack.c.l.b16 %v3095
        %v3167 = vunpack.c.l.b16 %v3096
        %v3168 = vunpack.c.l.b16 %v3097
        %v3169 = vunpack.c.l.b16 %v3098
        %v3170 = vunpack.c.l.b16 %v3099
        %v3171 = vunpack.c.l.b16 %v3100
        %v3172 = vunpack.c.l.b16 %v3101
        %v3173 = vunpack.c.l.b16 %v3102
        %v3174 = vunpack.c.l.b16 %v3103
        %v3175 = vunpack.c.l.b16 %v3104
        %v3176 = vunpack.c.l.b16 %v3105
        %v3177 = vunpack.c.l.b16 %v3106
        %v3178 = vpack.c.b16 %v3147, %v3146
        %v3179 = vpack.c.b16 %v3149, %v3148
        %v3180 = vpack.c.b16 %v3151, %v3150
        %v3181 = vpack.c.b16 %v3153, %v3152
        %v3182 = vpack.c.b16 %v3155, %v3154
        %v3183 = vpack.c.b16 %v3157, %v3156
        %v3184 = vpack.c.b16 %v3159, %v3158
        %v3185 = vpack.c.b16 %v3161, %v3160
        %v3186 = vpack.c.b16 %v3163, %v3162
        %v3187 = vpack.c.b16 %v3165, %v3164
        %v3188 = vpack.c.b16 %v3167, %v3166
        %v3189 = vpack.c.b16 %v3169, %v3168
        %v3190 = vpack.c.b16 %v3171, %v3170
        %v3191 = vpack.c.b16 %v3173, %v3172
        %v3192 = vpack.c.b16 %v3175, %v3174
        %v3193 = vpack.c.b16 %v3177, %v3176
        %3210 = vmatprep.subr.bf16.mxu0 0
        %3211 = vmatpush1.bf16.msra.mxu0 %v3178
        %3212 = vmatprep.subr.bf16.mxu0 0
        %3213 = vmatpush1.bf16.msra.mxu0 %v3179
        %3214 = vmatprep.subr.bf16.mxu0 0
        %3215 = vmatpush1.bf16.msra.mxu0 %v3180
        %3216 = vmatprep.subr.bf16.mxu0 0
        %3217 = vmatpush1.bf16.msra.mxu0 %v3181
        %3218 = vmatprep.subr.bf16.mxu0 0
        %3219 = vmatpush1.bf16.msra.mxu0 %v3182
        %3220 = vmatprep.subr.bf16.mxu0 0
        %3221 = vmatpush1.bf16.msra.mxu0 %v3183
        %3222 = vmatprep.subr.bf16.mxu0 0
        %3223 = vmatpush1.bf16.msra.mxu0 %v3184
        %3224 = vmatprep.subr.bf16.mxu0 0
        %3225 = vmatpush1.bf16.msra.mxu0 %v3185
        %3226 = vmatprep.subr.bf16.mxu0 0
        %3227 = vmatpush1.bf16.msra.mxu0 %v3186
        %3228 = vmatprep.subr.bf16.mxu0 0
        %3229 = vmatpush1.bf16.msra.mxu0 %v3187
        %3230 = vmatprep.subr.bf16.mxu0 0
        %3231 = vmatpush1.bf16.msra.mxu0 %v3188
        %3232 = vmatprep.subr.bf16.mxu0 0
        %3233 = vmatpush1.bf16.msra.mxu0 %v3189
        %3234 = vmatprep.subr.bf16.mxu0 0
        %3235 = vmatpush1.bf16.msra.mxu0 %v3190
        %3236 = vmatprep.subr.bf16.mxu0 0
        %3237 = vmatpush1.bf16.msra.mxu0 %v3191
        %3238 = vmatprep.subr.bf16.mxu0 0
        %3239 = vmatpush1.bf16.msra.mxu0 %v3192
        %3240 = vmatprep.subr.bf16.mxu0 0
        %3241 = vmatpush1.bf16.msra.mxu0 %v3193
        %3242 = vmatprep.mubr.bf16.mxu0 %v3074
        %3243 = vmatmul.mubr.bf16.gmra.mrb[0].mxu0 %v3073
        %v3244 = vpop.f32.mrb[0].mxu0
        %v3245 = vadd.f32 %v3112, %v3244
        %v3246 = vpop.f32.mrb[0].mxu0
        %v3247 = vpop.f32.mrb[0].mxu0
        %v3248 = vadd.f32 %v3112, %v3247
        %v3249 = vpop.f32.mrb[0].mxu0
        %3250 = vdwg.mxu0
        %v3251 = vadd.f32 %v2859, %v3245
        %v3252 = vadd.f32 %v2860, %v3248
        %3253 = vst [vmem:[#allocation2] sm:$0xff] %v3251
        %3254 = vst [vmem:[#allocation2 + $0x8] sm:$0xff] %v3252
        %p3255 = scmp.eq.s32.totalorder %s44, 1
        // Predicated region
        $region105: #{tpu_custom_call.1} parent=71 // pred_check
          %p3256 = pneg %p3255
        $region106: #{tpu_custom_call.1} parent=71 // pred_check_branch
          %3258 = sbr.rel (%p3256) target = $region108
        $region107: #{tpu_custom_call.1} parent=71 // pred_region
          %3259 = vst [vmem:[%s759] sm:$0xff] %v3251
          %3260 = vst [vmem:[%s759 + $0x8] sm:$0xff] %v3252
        $region108: #{tpu_custom_call.1} parent=71 // pred_fallthru
          _
        %s3261 = sand.u32 %s397, 1
        %s3262 = scalar_lea.sflag [#allocation5], %s3261
        %s3263 = sand.u32 %s397, 1
        %s3264 = smul.addr %s3263, 16
        %s3265 = scalar_lea.vmem [#allocation15], %s3264
        // Predicated region
        $region109: #{tpu_custom_call.1} parent=71 // pred_check
          %p3266 = pneg %p407
        $region110: #{tpu_custom_call.1} parent=71 // pred_check_branch
          %3268 = sbr.rel (%p3266) target = $region112
        $region111: #{tpu_custom_call.1} parent=71 // pred_region
          %s3270 = ssub.s32 256, 256
          %3271 = vsyncadd %s3262, %s3270
          %s3272 = smul.addr %s43, 2
          %s3273 = smul.addr %s3272, 128
          %s3274 = scalar_lea.hbm %s13, %s3273
          %s3275 = sshll.u32 %s3265, 4
          %s3276 = int_to_ptr.vmem [resolvable:$true] %s3275
          %3281 = dma.vmem_to_hbm [thread:$0]  %s3276, 256, %s3274, %s3262, 128, 128, 8
        $region112: #{tpu_custom_call.1} parent=71 // pred_fallthru
          _
      $region72: #{tpu_custom_call.1} parent=5 // pred_fallthru
        _
      %p3282 = scmp.le.s32.totalorder 2, %s34
      // Predicated region
      $region113: #{tpu_custom_call.1} parent=5 // pred_check
        %p3283 = pneg %p3282
      $region114: #{tpu_custom_call.1} parent=5 // pred_check_branch
        %3285 = sbr.rel (%p3283) target = $region116
      $region115: #{tpu_custom_call.1} parent=5 // pred_region
        %s3286 = ssub.s32 %s34, 2
        // Predicated region
        $region117: #{tpu_custom_call.1} parent=115 // pred_check
          %p3287 = pneg %p413
        $region118: #{tpu_custom_call.1} parent=115 // pred_check_branch
          %3289 = sbr.rel (%p3287) target = $region120
        $region119: #{tpu_custom_call.1} parent=115 // pred_region
          %s3290 = sand.u32 %s398, 1
          %s3291 = scalar_lea.sflag [#allocation5], %s3290
          %s3292 = sand.u32 %s398, 1
          %s3293 = smul.addr %s3292, 16
          %s3294 = scalar_lea.vmem [#allocation15], %s3293
          %3295 = dma.done %s3291, 256
        $region120: #{tpu_custom_call.1} parent=115 // pred_fallthru
          _
      $region116: #{tpu_custom_call.1} parent=5 // pred_fallthru
        _
    $region6: #{tpu_custom_call.1} parent=1 // loop_footer
      %s38 = sadd.s32 1, %s34
    $region7: #{tpu_custom_call.1} parent=1 // loop_footer_branch
      %33 = sbr.rel target = $region3
    $region8: #{tpu_custom_call.1} parent=1 // loop_exit
      _
    %3296 = vsyncpa [#allocation4], 1
    %s3297 = scalar_lea.sflag [#allocation4], 1
    %3298 = vsyncpa %s3297, 1
    %3299 = vsyncpa [#allocation7], 1
    %s3300 = scalar_lea.sflag [#allocation7], 1
    %3301 = vsyncpa %s3300, 1
    %3302 = vsyncpa [#allocation10], 1
    %s3303 = scalar_lea.sflag [#allocation10], 1
    %3304 = vsyncpa %s3303, 1
    %3305 = vsyncpa [#allocation13], 1
    %s3306 = scalar_lea.sflag [#allocation13], 1
    %3307 = vsyncpa %s3306, 1
    %3308 = vsyncpa [#allocation5], 1
    %s3309 = scalar_lea.sflag [#allocation5], 1
    %3310 = vsyncpa %s3309, 1

</llo_original>
